<compile_context>
chip_gen: v7x
topology: tpu7x:2x2x1
jax: 0.10.0
libtpu: 0.0.40
codegen_flags: <defaults>
</compile_context>

<pallas_src>
import numpy as np
import jax
import jax.numpy as jnp
from jax.experimental import pallas as pl
from jax.experimental.pallas import tpu as pltpu  # noqa: F401  (TPU backend)


def _round_up(x, m):
    return (x + m - 1) // m * m


# ---------------------------------------------------------------------------
# Fused forward kernel.  PyTorch GRU packed gate order is (r, z, n):
#   r = sigmoid(Wir x + bir + Whr h + bhr)
#   z = sigmoid(Wiz x + biz + Whz h + bhz)
#   n = tanh  (Win x + bin + r * (Whn h + bhn))
#   h' = (1 - z) * n + z * h
# ---------------------------------------------------------------------------
def _make_fused_kernel(L, S, B, H, Cp):
    H3 = 3 * H

    def kernel(*refs):
        gi0_ref, hs_ref = refs[0], refs[1]
        rest = refs[2:]
        whh = [rest[2 * l] for l in range(L)]
        bhh = [rest[2 * l + 1] for l in range(L)]
        off = 2 * L
        wih = [None] + [rest[off + 2 * (l - 1)] for l in range(1, L)]
        bih = [None] + [rest[off + 2 * (l - 1) + 1] for l in range(1, L)]
        off += 2 * (L - 1)
        pw_ref, pb_ref = rest[off], rest[off + 1]
        logits_ref, hlast_ref = rest[off + 2], rest[off + 3]

        prev_flat = None  # time-major (S*B, H) outputs of the previous layer
        for l in range(L):
            if l == 0:
                # Layer-0 input projection was folded into the embedding table
                # (gather happens outside the kernel); bias already included.
                gi_flat = gi0_ref[...]                              # (S*B, 3H)
            else:
                # Hoisted input projection for the whole sequence: one matmul.
                gi_flat = (jnp.dot(prev_flat, wih[l][...],
                                   preferred_element_type=jnp.float32)
                           + bih[l][...])                           # (S*B, 3H)

            whh_t = whh[l][...]                                     # (H, 3H)
            bhh_l = bhh[l][...]                                     # (1, 3H)
            h = hs_ref[l]                                           # (B, H)
            outs = []
            for t in range(S):  # static trip count -> fully unrolled
                gi_t = gi_flat[t * B:(t + 1) * B]                   # (B, 3H)
                gh = jnp.dot(h, whh_t,
                             preferred_element_type=jnp.float32) + bhh_l
                r = jax.nn.sigmoid(gi_t[:, 0:H] + gh[:, 0:H])
                z = jax.nn.sigmoid(gi_t[:, H:2 * H] + gh[:, H:2 * H])
                n = jnp.tanh(gi_t[:, 2 * H:H3] + r * gh[:, 2 * H:H3])
                h = (1.0 - z) * n + z * h
                outs.append(h)
            hlast_ref[l] = h                                        # once/layer
            prev_flat = jnp.concatenate(outs, axis=0)               # (S*B, H)

        # Final Linear over all rows; Cp is a lane-dense multiple of 128.
        logits_ref[...] = (jnp.dot(prev_flat, pw_ref[...],
                                   preferred_element_type=jnp.float32)
                           + pb_ref[...])

    return kernel


# ---------------------------------------------------------------------------
# Parameters (PyTorch layout) + one-time kernel-friendly preparation.
# ---------------------------------------------------------------------------
def init_char_rnn_params(key, char_classes, embed_dim, hidden_size, rnn_layers):
    keys = jax.random.split(key, 3 + 6 * rnn_layers)
    k = iter(keys)
    params = {
        "char_classes": char_classes,
        "embed_dim": embed_dim,
        "hidden_size": hidden_size,
        "rnn_layers": rnn_layers,
        "embedding": jax.random.normal(next(k), (char_classes, embed_dim),
                                       jnp.float32),
    }
    bound = 1.0 / jnp.sqrt(hidden_size)
    for l in range(rnn_layers):
        in_dim = embed_dim if l == 0 else hidden_size
        params[f"w_ih_{l}"] = jax.random.uniform(
            next(k), (3 * hidden_size, in_dim), jnp.float32, -bound, bound)
        params[f"w_hh_{l}"] = jax.random.uniform(
            next(k), (3 * hidden_size, hidden_size), jnp.float32, -bound, bound)
        params[f"b_ih_{l}"] = jax.random.uniform(
            next(k), (3 * hidden_size,), jnp.float32, -bound, bound)
        params[f"b_hh_{l}"] = jax.random.uniform(
            next(k), (3 * hidden_size,), jnp.float32, -bound, bound)
    params["proj_w"] = jax.random.uniform(
        next(k), (char_classes, hidden_size), jnp.float32, -bound, bound)
    params["proj_b"] = jax.random.uniform(
        next(k), (char_classes,), jnp.float32, -bound, bound)
    return params


def prepare_params(params):
    """One-time conversion of PyTorch-layout weights into kernel layouts:
    pre-transposed GRU/Linear weights, (1,3H) biases, layer-0 input projection
    folded into the embedding table, projection padded to lane-dense width."""
    L, H, C = params["rnn_layers"], params["hidden_size"], params["char_classes"]
    Cp = max(128, _round_up(C, 128))
    prep = {"rnn_layers": L, "hidden_size": H,
            "char_classes": C, "padded_classes": Cp}
    # (char_classes, 3H): gather of this table == W_ih_0 @ emb(x) + b_ih_0.
    prep["emb_gi0"] = (jnp.dot(params["embedding"],
                               jnp.transpose(params["w_ih_0"]))
                       + params["b_ih_0"][None, :])
    for l in range(L):
        prep[f"whh_t_{l}"] = jnp.transpose(params[f"w_hh_{l}"])     # (H, 3H)
        prep[f"bhh_{l}"] = params[f"b_hh_{l}"].reshape(1, 3 * H)
        if l > 0:
            prep[f"wih_t_{l}"] = jnp.transpose(params[f"w_ih_{l}"])  # (H, 3H)
            prep[f"bih_{l}"] = params[f"b_ih_{l}"].reshape(1, 3 * H)
    pw = jnp.zeros((H, Cp), jnp.float32).at[:, :C].set(
        jnp.transpose(params["proj_w"]))
    pb = jnp.zeros((1, Cp), jnp.float32).at[:, :C].set(
        params["proj_b"][None, :])
    prep["proj_w_t"] = pw
    prep["proj_b"] = pb
    return prep


# ---------------------------------------------------------------------------
# Forward pass (matches CharRNN.forward semantics, eval mode).
# ---------------------------------------------------------------------------
def char_rnn_forward(prep, x, hs=None):
    """x: (batch, seq) int32.  Returns (logits (batch*seq, C), h0 (L, B, H))."""
    B, S = x.shape
    L, H = prep["rnn_layers"], prep["hidden_size"]
    C, Cp = prep["char_classes"], prep["padded_classes"]
    Bp = max(8, _round_up(B, 8))                        # pad batch to sublanes

    if hs is None:
        hs = jnp.zeros((L, B, H), jnp.float32)

    # Layer-0 input path: pure gather of the pre-projected table (JAX glue).
    gi0 = jnp.take(prep["emb_gi0"], x, axis=0)          # (B, S, 3H)
    gi0 = jnp.transpose(gi0, (1, 0, 2))                 # (S, B, 3H) time-major
    gi0 = jnp.pad(gi0, ((0, 0), (0, Bp - B), (0, 0)))   # pad batch
    gi0 = gi0.reshape(S * Bp, 3 * H)
    hs_p = jnp.pad(hs.astype(jnp.float32), ((0, 0), (0, Bp - B), (0, 0)))

    inputs = [gi0, hs_p]
    for l in range(L):
        inputs += [prep[f"whh_t_{l}"], prep[f"bhh_{l}"]]
    for l in range(1, L):
        inputs += [prep[f"wih_t_{l}"], prep[f"bih_{l}"]]
    inputs += [prep["proj_w_t"], prep["proj_b"]]

    logits_flat, h_last = pl.pallas_call(
        _make_fused_kernel(L, S, Bp, H, Cp),
        out_shape=(jax.ShapeDtypeStruct((S * Bp, Cp), jnp.float32),
                   jax.ShapeDtypeStruct((L, Bp, H), jnp.float32)),
    )(*inputs)

    logits = logits_flat.reshape(S, Bp, Cp)[:, :B, :C]  # drop padding
    logits = jnp.transpose(logits, (1, 0, 2)).reshape(B * S, C)
    h0 = h_last[:, :B, :]
    # TODO(synk): nn.GRU inter-layer dropout is train-only; eval forward has none.
    return logits, h0


# ---------------------------------------------------------------------------
# Plain-JAX reference of the PyTorch forward (for correctness checking).
# ---------------------------------------------------------------------------
def _reference_forward(params, x, hs=None):
    B, S = x.shape
    L, H = params["rnn_layers"], params["hidden_size"]
    if hs is None:
        hs = jnp.zeros((L, B, H), jnp.float32)
    emb = jnp.take(params["embedding"], x, axis=0)      # (B, S, E)
    layer_in = jnp.transpose(emb, (1, 0, 2))            # (S, B, E)
    h_fin = []
    for l in range(L):
        w_ih, w_hh = params[f"w_ih_{l}"], params[f"w_hh_{l}"]
        b_ih, b_hh = params[f"b_ih_{l}"], params[f"b_hh_{l}"]
        h = hs[l]
        outs = []
        for t in range(S):
            gi = layer_in[t] @ w_ih.T + b_ih
            gh = h @ w_hh.T + b_hh
            r = jax.nn.sigmoid(gi[:, :H] + gh[:, :H])
            z = jax.nn.sigmoid(gi[:, H:2 * H] + gh[:, H:2 * H])
            n = jnp.tanh(gi[:, 2 * H:] + r * gh[:, 2 * H:])
            h = (1.0 - z) * n + z * h
            outs.append(h)
        layer_in = jnp.stack(outs, axis=0)
        h_fin.append(h)
    h0 = jnp.stack(h_fin, axis=0)
    flat = layer_in.reshape(S * B, H)
    logits = flat @ params["proj_w"].T + params["proj_b"][None, :]
    logits = logits.reshape(S, B, -1)
    logits = jnp.transpose(logits, (1, 0, 2)).reshape(B * S, -1)
    return logits, h0


if __name__ == "__main__":
    char_classes = 96
    embed_dim = 64
    hidden_size = 128
    rnn_layers = 2
    dropout = 0.1  # unused in eval forward
    batch, seq = 2, 8

    key = jax.random.PRNGKey(0)
    pkey, xkey = jax.random.split(key)
    params = init_char_rnn_params(pkey, char_classes, embed_dim,
                                  hidden_size, rnn_layers)
    prep = prepare_params(params)
    x = jax.random.randint(xkey, (batch, seq), 0, char_classes, dtype=jnp.int32)

    logits, h0 = char_rnn_forward(prep, x)
    jax.block_until_ready((logits, h0))

    assert logits.shape == (batch * seq, char_classes), logits.shape
    assert h0.shape == (rnn_layers, batch, hidden_size), h0.shape

    # Numerical check against the plain-JAX PyTorch-equivalent reference.
    ref_logits, ref_h0 = _reference_forward(params, x)
    np.testing.assert_allclose(np.asarray(logits), np.asarray(ref_logits),
                               rtol=5e-2, atol=5e-2)
    np.testing.assert_allclose(np.asarray(h0), np.asarray(ref_h0),
                               rtol=5e-2, atol=5e-2)
    print("KERNEL_OK")
</pallas_src>

<mosaic_0001>
module attributes {stable_mosaic.version = 11 : i64} {
  func.func @kernel(%arg0: memref<64x384xf32, #tpu.memory_space<vmem>>, %arg1: memref<2x8x128xf32, #tpu.memory_space<vmem>>, %arg2: memref<128x384xf32, #tpu.memory_space<vmem>>, %arg3: memref<1x384xf32, #tpu.memory_space<vmem>>, %arg4: memref<128x384xf32, #tpu.memory_space<vmem>>, %arg5: memref<1x384xf32, #tpu.memory_space<vmem>>, %arg6: memref<128x384xf32, #tpu.memory_space<vmem>>, %arg7: memref<1x384xf32, #tpu.memory_space<vmem>>, %arg8: memref<128x128xf32, #tpu.memory_space<vmem>>, %arg9: memref<1x128xf32, #tpu.memory_space<vmem>>, %arg10: memref<64x128xf32, #tpu.memory_space<vmem>>, %arg11: memref<2x8x128xf32, #tpu.memory_space<vmem>>) attributes {dimension_semantics = [], scalar_prefetch = 0 : i64, scratch_operands = 0 : i64, tpu.core_type = #tpu.core_type<tc>} {
    %c0 = arith.constant 0 : index
    %c0_0 = arith.constant 0 : index
    %0 = vector.load %arg0[%c0, %c0_0] : memref<64x384xf32, #tpu.memory_space<vmem>>, vector<64x384xf32>
    %c0_1 = arith.constant 0 : index
    %c0_2 = arith.constant 0 : index
    %1 = vector.load %arg2[%c0_1, %c0_2] : memref<128x384xf32, #tpu.memory_space<vmem>>, vector<128x384xf32>
    %c0_3 = arith.constant 0 : index
    %c0_4 = arith.constant 0 : index
    %2 = vector.load %arg3[%c0_3, %c0_4] : memref<1x384xf32, #tpu.memory_space<vmem>>, vector<1x384xf32>
    %c0_5 = arith.constant 0 : index
    %c0_6 = arith.constant 0 : index
    %c0_7 = arith.constant 0 : index
    %3 = vector.load %arg1[%c0_5, %c0_6, %c0_7] : memref<2x8x128xf32, #tpu.memory_space<vmem>>, vector<1x8x128xf32>
    %4 = vector.shape_cast %3 : vector<1x8x128xf32> to vector<8x128xf32>
    %5 = vector.extract_strided_slice %0 {offsets = [0, 0], sizes = [8, 384], strides = [1, 1]} : vector<64x384xf32> to vector<8x384xf32>
    %cst = arith.constant dense<0.000000e+00> : vector<8x384xf32>
    %6 = tpu.matmul %4, %1, %cst {dimension_numbers = #tpu.dot_dimension_numbers<[1], [0], [0], [1], [0, 0, 1, 1], [], []>} : vector<8x128xf32>, vector<128x384xf32>, vector<8x384xf32> -> vector<8x384xf32>
    %7 = vector.broadcast %2 : vector<1x384xf32> to vector<8x384xf32>
    %8 = arith.addf %6, %7 : vector<8x384xf32>
    %9 = vector.extract_strided_slice %5 {offsets = [0, 0], sizes = [8, 128], strides = [1, 1]} : vector<8x384xf32> to vector<8x128xf32>
    %10 = vector.extract_strided_slice %8 {offsets = [0, 0], sizes = [8, 128], strides = [1, 1]} : vector<8x384xf32> to vector<8x128xf32>
    %11 = arith.addf %9, %10 : vector<8x128xf32>
    %12 = arith.negf %11 : vector<8x128xf32>
    %13 = math.exp %12 : vector<8x128xf32>
    %cst_8 = arith.constant 1.000000e+00 : f32
    %14 = vector.broadcast %cst_8 : f32 to vector<8x128xf32>
    %15 = arith.addf %14, %13 : vector<8x128xf32>
    %16 = arith.divf %14, %15 : vector<8x128xf32>
    %17 = vector.extract_strided_slice %5 {offsets = [0, 128], sizes = [8, 128], strides = [1, 1]} : vector<8x384xf32> to vector<8x128xf32>
    %18 = vector.extract_strided_slice %8 {offsets = [0, 128], sizes = [8, 128], strides = [1, 1]} : vector<8x384xf32> to vector<8x128xf32>
    %19 = arith.addf %17, %18 : vector<8x128xf32>
    %20 = arith.negf %19 : vector<8x128xf32>
    %21 = math.exp %20 : vector<8x128xf32>
    %cst_9 = arith.constant 1.000000e+00 : f32
    %22 = vector.broadcast %cst_9 : f32 to vector<8x128xf32>
    %23 = arith.addf %22, %21 : vector<8x128xf32>
    %24 = arith.divf %22, %23 : vector<8x128xf32>
    %25 = vector.extract_strided_slice %5 {offsets = [0, 256], sizes = [8, 128], strides = [1, 1]} : vector<8x384xf32> to vector<8x128xf32>
    %26 = vector.extract_strided_slice %8 {offsets = [0, 256], sizes = [8, 128], strides = [1, 1]} : vector<8x384xf32> to vector<8x128xf32>
    %27 = arith.mulf %16, %26 : vector<8x128xf32>
    %28 = arith.addf %25, %27 : vector<8x128xf32>
    %29 = math.tanh %28 : vector<8x128xf32>
    %cst_10 = arith.constant 1.000000e+00 : f32
    %30 = vector.broadcast %cst_10 : f32 to vector<8x128xf32>
    %31 = arith.subf %30, %24 : vector<8x128xf32>
    %32 = arith.mulf %31, %29 : vector<8x128xf32>
    %33 = arith.mulf %24, %4 : vector<8x128xf32>
    %34 = arith.addf %32, %33 : vector<8x128xf32>
    %35 = vector.extract_strided_slice %0 {offsets = [8, 0], sizes = [8, 384], strides = [1, 1]} : vector<64x384xf32> to vector<8x384xf32>
    %cst_11 = arith.constant dense<0.000000e+00> : vector<8x384xf32>
    %36 = tpu.matmul %34, %1, %cst_11 {dimension_numbers = #tpu.dot_dimension_numbers<[1], [0], [0], [1], [0, 0, 1, 1], [], []>} : vector<8x128xf32>, vector<128x384xf32>, vector<8x384xf32> -> vector<8x384xf32>
    %37 = vector.broadcast %2 : vector<1x384xf32> to vector<8x384xf32>
    %38 = arith.addf %36, %37 : vector<8x384xf32>
    %39 = vector.extract_strided_slice %35 {offsets = [0, 0], sizes = [8, 128], strides = [1, 1]} : vector<8x384xf32> to vector<8x128xf32>
    %40 = vector.extract_strided_slice %38 {offsets = [0, 0], sizes = [8, 128], strides = [1, 1]} : vector<8x384xf32> to vector<8x128xf32>
    %41 = arith.addf %39, %40 : vector<8x128xf32>
    %42 = arith.negf %41 : vector<8x128xf32>
    %43 = math.exp %42 : vector<8x128xf32>
    %cst_12 = arith.constant 1.000000e+00 : f32
    %44 = vector.broadcast %cst_12 : f32 to vector<8x128xf32>
    %45 = arith.addf %44, %43 : vector<8x128xf32>
    %46 = arith.divf %44, %45 : vector<8x128xf32>
    %47 = vector.extract_strided_slice %35 {offsets = [0, 128], sizes = [8, 128], strides = [1, 1]} : vector<8x384xf32> to vector<8x128xf32>
    %48 = vector.extract_strided_slice %38 {offsets = [0, 128], sizes = [8, 128], strides = [1, 1]} : vector<8x384xf32> to vector<8x128xf32>
    %49 = arith.addf %47, %48 : vector<8x128xf32>
    %50 = arith.negf %49 : vector<8x128xf32>
    %51 = math.exp %50 : vector<8x128xf32>
    %cst_13 = arith.constant 1.000000e+00 : f32
    %52 = vector.broadcast %cst_13 : f32 to vector<8x128xf32>
    %53 = arith.addf %52, %51 : vector<8x128xf32>
    %54 = arith.divf %52, %53 : vector<8x128xf32>
    %55 = vector.extract_strided_slice %35 {offsets = [0, 256], sizes = [8, 128], strides = [1, 1]} : vector<8x384xf32> to vector<8x128xf32>
    %56 = vector.extract_strided_slice %38 {offsets = [0, 256], sizes = [8, 128], strides = [1, 1]} : vector<8x384xf32> to vector<8x128xf32>
    %57 = arith.mulf %46, %56 : vector<8x128xf32>
    %58 = arith.addf %55, %57 : vector<8x128xf32>
    %59 = math.tanh %58 : vector<8x128xf32>
    %cst_14 = arith.constant 1.000000e+00 : f32
    %60 = vector.broadcast %cst_14 : f32 to vector<8x128xf32>
    %61 = arith.subf %60, %54 : vector<8x128xf32>
    %62 = arith.mulf %61, %59 : vector<8x128xf32>
    %63 = arith.mulf %54, %34 : vector<8x128xf32>
    %64 = arith.addf %62, %63 : vector<8x128xf32>
    %65 = vector.extract_strided_slice %0 {offsets = [16, 0], sizes = [8, 384], strides = [1, 1]} : vector<64x384xf32> to vector<8x384xf32>
    %cst_15 = arith.constant dense<0.000000e+00> : vector<8x384xf32>
    %66 = tpu.matmul %64, %1, %cst_15 {dimension_numbers = #tpu.dot_dimension_numbers<[1], [0], [0], [1], [0, 0, 1, 1], [], []>} : vector<8x128xf32>, vector<128x384xf32>, vector<8x384xf32> -> vector<8x384xf32>
    %67 = vector.broadcast %2 : vector<1x384xf32> to vector<8x384xf32>
    %68 = arith.addf %66, %67 : vector<8x384xf32>
    %69 = vector.extract_strided_slice %65 {offsets = [0, 0], sizes = [8, 128], strides = [1, 1]} : vector<8x384xf32> to vector<8x128xf32>
    %70 = vector.extract_strided_slice %68 {offsets = [0, 0], sizes = [8, 128], strides = [1, 1]} : vector<8x384xf32> to vector<8x128xf32>
    %71 = arith.addf %69, %70 : vector<8x128xf32>
    %72 = arith.negf %71 : vector<8x128xf32>
    %73 = math.exp %72 : vector<8x128xf32>
    %cst_16 = arith.constant 1.000000e+00 : f32
    %74 = vector.broadcast %cst_16 : f32 to vector<8x128xf32>
    %75 = arith.addf %74, %73 : vector<8x128xf32>
    %76 = arith.divf %74, %75 : vector<8x128xf32>
    %77 = vector.extract_strided_slice %65 {offsets = [0, 128], sizes = [8, 128], strides = [1, 1]} : vector<8x384xf32> to vector<8x128xf32>
    %78 = vector.extract_strided_slice %68 {offsets = [0, 128], sizes = [8, 128], strides = [1, 1]} : vector<8x384xf32> to vector<8x128xf32>
    %79 = arith.addf %77, %78 : vector<8x128xf32>
    %80 = arith.negf %79 : vector<8x128xf32>
    %81 = math.exp %80 : vector<8x128xf32>
    %cst_17 = arith.constant 1.000000e+00 : f32
    %82 = vector.broadcast %cst_17 : f32 to vector<8x128xf32>
    %83 = arith.addf %82, %81 : vector<8x128xf32>
    %84 = arith.divf %82, %83 : vector<8x128xf32>
    %85 = vector.extract_strided_slice %65 {offsets = [0, 256], sizes = [8, 128], strides = [1, 1]} : vector<8x384xf32> to vector<8x128xf32>
    %86 = vector.extract_strided_slice %68 {offsets = [0, 256], sizes = [8, 128], strides = [1, 1]} : vector<8x384xf32> to vector<8x128xf32>
    %87 = arith.mulf %76, %86 : vector<8x128xf32>
    %88 = arith.addf %85, %87 : vector<8x128xf32>
    %89 = math.tanh %88 : vector<8x128xf32>
    %cst_18 = arith.constant 1.000000e+00 : f32
    %90 = vector.broadcast %cst_18 : f32 to vector<8x128xf32>
    %91 = arith.subf %90, %84 : vector<8x128xf32>
    %92 = arith.mulf %91, %89 : vector<8x128xf32>
    %93 = arith.mulf %84, %64 : vector<8x128xf32>
    %94 = arith.addf %92, %93 : vector<8x128xf32>
    %95 = vector.extract_strided_slice %0 {offsets = [24, 0], sizes = [8, 384], strides = [1, 1]} : vector<64x384xf32> to vector<8x384xf32>
    %cst_19 = arith.constant dense<0.000000e+00> : vector<8x384xf32>
    %96 = tpu.matmul %94, %1, %cst_19 {dimension_numbers = #tpu.dot_dimension_numbers<[1], [0], [0], [1], [0, 0, 1, 1], [], []>} : vector<8x128xf32>, vector<128x384xf32>, vector<8x384xf32> -> vector<8x384xf32>
    %97 = vector.broadcast %2 : vector<1x384xf32> to vector<8x384xf32>
    %98 = arith.addf %96, %97 : vector<8x384xf32>
    %99 = vector.extract_strided_slice %95 {offsets = [0, 0], sizes = [8, 128], strides = [1, 1]} : vector<8x384xf32> to vector<8x128xf32>
    %100 = vector.extract_strided_slice %98 {offsets = [0, 0], sizes = [8, 128], strides = [1, 1]} : vector<8x384xf32> to vector<8x128xf32>
    %101 = arith.addf %99, %100 : vector<8x128xf32>
    %102 = arith.negf %101 : vector<8x128xf32>
    %103 = math.exp %102 : vector<8x128xf32>
    %cst_20 = arith.constant 1.000000e+00 : f32
    %104 = vector.broadcast %cst_20 : f32 to vector<8x128xf32>
    %105 = arith.addf %104, %103 : vector<8x128xf32>
    %106 = arith.divf %104, %105 : vector<8x128xf32>
    %107 = vector.extract_strided_slice %95 {offsets = [0, 128], sizes = [8, 128], strides = [1, 1]} : vector<8x384xf32> to vector<8x128xf32>
    %108 = vector.extract_strided_slice %98 {offsets = [0, 128], sizes = [8, 128], strides = [1, 1]} : vector<8x384xf32> to vector<8x128xf32>
    %109 = arith.addf %107, %108 : vector<8x128xf32>
    %110 = arith.negf %109 : vector<8x128xf32>
    %111 = math.exp %110 : vector<8x128xf32>
    %cst_21 = arith.constant 1.000000e+00 : f32
    %112 = vector.broadcast %cst_21 : f32 to vector<8x128xf32>
    %113 = arith.addf %112, %111 : vector<8x128xf32>
    %114 = arith.divf %112, %113 : vector<8x128xf32>
    %115 = vector.extract_strided_slice %95 {offsets = [0, 256], sizes = [8, 128], strides = [1, 1]} : vector<8x384xf32> to vector<8x128xf32>
    %116 = vector.extract_strided_slice %98 {offsets = [0, 256], sizes = [8, 128], strides = [1, 1]} : vector<8x384xf32> to vector<8x128xf32>
    %117 = arith.mulf %106, %116 : vector<8x128xf32>
    %118 = arith.addf %115, %117 : vector<8x128xf32>
    %119 = math.tanh %118 : vector<8x128xf32>
    %cst_22 = arith.constant 1.000000e+00 : f32
    %120 = vector.broadcast %cst_22 : f32 to vector<8x128xf32>
    %121 = arith.subf %120, %114 : vector<8x128xf32>
    %122 = arith.mulf %121, %119 : vector<8x128xf32>
    %123 = arith.mulf %114, %94 : vector<8x128xf32>
    %124 = arith.addf %122, %123 : vector<8x128xf32>
    %125 = vector.extract_strided_slice %0 {offsets = [32, 0], sizes = [8, 384], strides = [1, 1]} : vector<64x384xf32> to vector<8x384xf32>
    %cst_23 = arith.constant dense<0.000000e+00> : vector<8x384xf32>
    %126 = tpu.matmul %124, %1, %cst_23 {dimension_numbers = #tpu.dot_dimension_numbers<[1], [0], [0], [1], [0, 0, 1, 1], [], []>} : vector<8x128xf32>, vector<128x384xf32>, vector<8x384xf32> -> vector<8x384xf32>
    %127 = vector.broadcast %2 : vector<1x384xf32> to vector<8x384xf32>
    %128 = arith.addf %126, %127 : vector<8x384xf32>
    %129 = vector.extract_strided_slice %125 {offsets = [0, 0], sizes = [8, 128], strides = [1, 1]} : vector<8x384xf32> to vector<8x128xf32>
    %130 = vector.extract_strided_slice %128 {offsets = [0, 0], sizes = [8, 128], strides = [1, 1]} : vector<8x384xf32> to vector<8x128xf32>
    %131 = arith.addf %129, %130 : vector<8x128xf32>
    %132 = arith.negf %131 : vector<8x128xf32>
    %133 = math.exp %132 : vector<8x128xf32>
    %cst_24 = arith.constant 1.000000e+00 : f32
    %134 = vector.broadcast %cst_24 : f32 to vector<8x128xf32>
    %135 = arith.addf %134, %133 : vector<8x128xf32>
    %136 = arith.divf %134, %135 : vector<8x128xf32>
    %137 = vector.extract_strided_slice %125 {offsets = [0, 128], sizes = [8, 128], strides = [1, 1]} : vector<8x384xf32> to vector<8x128xf32>
    %138 = vector.extract_strided_slice %128 {offsets = [0, 128], sizes = [8, 128], strides = [1, 1]} : vector<8x384xf32> to vector<8x128xf32>
    %139 = arith.addf %137, %138 : vector<8x128xf32>
    %140 = arith.negf %139 : vector<8x128xf32>
    %141 = math.exp %140 : vector<8x128xf32>
    %cst_25 = arith.constant 1.000000e+00 : f32
    %142 = vector.broadcast %cst_25 : f32 to vector<8x128xf32>
    %143 = arith.addf %142, %141 : vector<8x128xf32>
    %144 = arith.divf %142, %143 : vector<8x128xf32>
    %145 = vector.extract_strided_slice %125 {offsets = [0, 256], sizes = [8, 128], strides = [1, 1]} : vector<8x384xf32> to vector<8x128xf32>
    %146 = vector.extract_strided_slice %128 {offsets = [0, 256], sizes = [8, 128], strides = [1, 1]} : vector<8x384xf32> to vector<8x128xf32>
    %147 = arith.mulf %136, %146 : vector<8x128xf32>
    %148 = arith.addf %145, %147 : vector<8x128xf32>
    %149 = math.tanh %148 : vector<8x128xf32>
    %cst_26 = arith.constant 1.000000e+00 : f32
    %150 = vector.broadcast %cst_26 : f32 to vector<8x128xf32>
    %151 = arith.subf %150, %144 : vector<8x128xf32>
    %152 = arith.mulf %151, %149 : vector<8x128xf32>
    %153 = arith.mulf %144, %124 : vector<8x128xf32>
    %154 = arith.addf %152, %153 : vector<8x128xf32>
    %155 = vector.extract_strided_slice %0 {offsets = [40, 0], sizes = [8, 384], strides = [1, 1]} : vector<64x384xf32> to vector<8x384xf32>
    %cst_27 = arith.constant dense<0.000000e+00> : vector<8x384xf32>
    %156 = tpu.matmul %154, %1, %cst_27 {dimension_numbers = #tpu.dot_dimension_numbers<[1], [0], [0], [1], [0, 0, 1, 1], [], []>} : vector<8x128xf32>, vector<128x384xf32>, vector<8x384xf32> -> vector<8x384xf32>
    %157 = vector.broadcast %2 : vector<1x384xf32> to vector<8x384xf32>
    %158 = arith.addf %156, %157 : vector<8x384xf32>
    %159 = vector.extract_strided_slice %155 {offsets = [0, 0], sizes = [8, 128], strides = [1, 1]} : vector<8x384xf32> to vector<8x128xf32>
    %160 = vector.extract_strided_slice %158 {offsets = [0, 0], sizes = [8, 128], strides = [1, 1]} : vector<8x384xf32> to vector<8x128xf32>
    %161 = arith.addf %159, %160 : vector<8x128xf32>
    %162 = arith.negf %161 : vector<8x128xf32>
    %163 = math.exp %162 : vector<8x128xf32>
    %cst_28 = arith.constant 1.000000e+00 : f32
    %164 = vector.broadcast %cst_28 : f32 to vector<8x128xf32>
    %165 = arith.addf %164, %163 : vector<8x128xf32>
    %166 = arith.divf %164, %165 : vector<8x128xf32>
    %167 = vector.extract_strided_slice %155 {offsets = [0, 128], sizes = [8, 128], strides = [1, 1]} : vector<8x384xf32> to vector<8x128xf32>
    %168 = vector.extract_strided_slice %158 {offsets = [0, 128], sizes = [8, 128], strides = [1, 1]} : vector<8x384xf32> to vector<8x128xf32>
    %169 = arith.addf %167, %168 : vector<8x128xf32>
    %170 = arith.negf %169 : vector<8x128xf32>
    %171 = math.exp %170 : vector<8x128xf32>
    %cst_29 = arith.constant 1.000000e+00 : f32
    %172 = vector.broadcast %cst_29 : f32 to vector<8x128xf32>
    %173 = arith.addf %172, %171 : vector<8x128xf32>
    %174 = arith.divf %172, %173 : vector<8x128xf32>
    %175 = vector.extract_strided_slice %155 {offsets = [0, 256], sizes = [8, 128], strides = [1, 1]} : vector<8x384xf32> to vector<8x128xf32>
    %176 = vector.extract_strided_slice %158 {offsets = [0, 256], sizes = [8, 128], strides = [1, 1]} : vector<8x384xf32> to vector<8x128xf32>
    %177 = arith.mulf %166, %176 : vector<8x128xf32>
    %178 = arith.addf %175, %177 : vector<8x128xf32>
    %179 = math.tanh %178 : vector<8x128xf32>
    %cst_30 = arith.constant 1.000000e+00 : f32
    %180 = vector.broadcast %cst_30 : f32 to vector<8x128xf32>
    %181 = arith.subf %180, %174 : vector<8x128xf32>
    %182 = arith.mulf %181, %179 : vector<8x128xf32>
    %183 = arith.mulf %174, %154 : vector<8x128xf32>
    %184 = arith.addf %182, %183 : vector<8x128xf32>
    %185 = vector.extract_strided_slice %0 {offsets = [48, 0], sizes = [8, 384], strides = [1, 1]} : vector<64x384xf32> to vector<8x384xf32>
    %cst_31 = arith.constant dense<0.000000e+00> : vector<8x384xf32>
    %186 = tpu.matmul %184, %1, %cst_31 {dimension_numbers = #tpu.dot_dimension_numbers<[1], [0], [0], [1], [0, 0, 1, 1], [], []>} : vector<8x128xf32>, vector<128x384xf32>, vector<8x384xf32> -> vector<8x384xf32>
    %187 = vector.broadcast %2 : vector<1x384xf32> to vector<8x384xf32>
    %188 = arith.addf %186, %187 : vector<8x384xf32>
    %189 = vector.extract_strided_slice %185 {offsets = [0, 0], sizes = [8, 128], strides = [1, 1]} : vector<8x384xf32> to vector<8x128xf32>
    %190 = vector.extract_strided_slice %188 {offsets = [0, 0], sizes = [8, 128], strides = [1, 1]} : vector<8x384xf32> to vector<8x128xf32>
    %191 = arith.addf %189, %190 : vector<8x128xf32>
    %192 = arith.negf %191 : vector<8x128xf32>
    %193 = math.exp %192 : vector<8x128xf32>
    %cst_32 = arith.constant 1.000000e+00 : f32
    %194 = vector.broadcast %cst_32 : f32 to vector<8x128xf32>
    %195 = arith.addf %194, %193 : vector<8x128xf32>
    %196 = arith.divf %194, %195 : vector<8x128xf32>
    %197 = vector.extract_strided_slice %185 {offsets = [0, 128], sizes = [8, 128], strides = [1, 1]} : vector<8x384xf32> to vector<8x128xf32>
    %198 = vector.extract_strided_slice %188 {offsets = [0, 128], sizes = [8, 128], strides = [1, 1]} : vector<8x384xf32> to vector<8x128xf32>
    %199 = arith.addf %197, %198 : vector<8x128xf32>
    %200 = arith.negf %199 : vector<8x128xf32>
    %201 = math.exp %200 : vector<8x128xf32>
    %cst_33 = arith.constant 1.000000e+00 : f32
    %202 = vector.broadcast %cst_33 : f32 to vector<8x128xf32>
    %203 = arith.addf %202, %201 : vector<8x128xf32>
    %204 = arith.divf %202, %203 : vector<8x128xf32>
    %205 = vector.extract_strided_slice %185 {offsets = [0, 256], sizes = [8, 128], strides = [1, 1]} : vector<8x384xf32> to vector<8x128xf32>
    %206 = vector.extract_strided_slice %188 {offsets = [0, 256], sizes = [8, 128], strides = [1, 1]} : vector<8x384xf32> to vector<8x128xf32>
    %207 = arith.mulf %196, %206 : vector<8x128xf32>
    %208 = arith.addf %205, %207 : vector<8x128xf32>
    %209 = math.tanh %208 : vector<8x128xf32>
    %cst_34 = arith.constant 1.000000e+00 : f32
    %210 = vector.broadcast %cst_34 : f32 to vector<8x128xf32>
    %211 = arith.subf %210, %204 : vector<8x128xf32>
    %212 = arith.mulf %211, %209 : vector<8x128xf32>
    %213 = arith.mulf %204, %184 : vector<8x128xf32>
    %214 = arith.addf %212, %213 : vector<8x128xf32>
    %215 = vector.extract_strided_slice %0 {offsets = [56, 0], sizes = [8, 384], strides = [1, 1]} : vector<64x384xf32> to vector<8x384xf32>
    %cst_35 = arith.constant dense<0.000000e+00> : vector<8x384xf32>
    %216 = tpu.matmul %214, %1, %cst_35 {dimension_numbers = #tpu.dot_dimension_numbers<[1], [0], [0], [1], [0, 0, 1, 1], [], []>} : vector<8x128xf32>, vector<128x384xf32>, vector<8x384xf32> -> vector<8x384xf32>
    %217 = vector.broadcast %2 : vector<1x384xf32> to vector<8x384xf32>
    %218 = arith.addf %216, %217 : vector<8x384xf32>
    %219 = vector.extract_strided_slice %215 {offsets = [0, 0], sizes = [8, 128], strides = [1, 1]} : vector<8x384xf32> to vector<8x128xf32>
    %220 = vector.extract_strided_slice %218 {offsets = [0, 0], sizes = [8, 128], strides = [1, 1]} : vector<8x384xf32> to vector<8x128xf32>
    %221 = arith.addf %219, %220 : vector<8x128xf32>
    %222 = arith.negf %221 : vector<8x128xf32>
    %223 = math.exp %222 : vector<8x128xf32>
    %cst_36 = arith.constant 1.000000e+00 : f32
    %224 = vector.broadcast %cst_36 : f32 to vector<8x128xf32>
    %225 = arith.addf %224, %223 : vector<8x128xf32>
    %226 = arith.divf %224, %225 : vector<8x128xf32>
    %227 = vector.extract_strided_slice %215 {offsets = [0, 128], sizes = [8, 128], strides = [1, 1]} : vector<8x384xf32> to vector<8x128xf32>
    %228 = vector.extract_strided_slice %218 {offsets = [0, 128], sizes = [8, 128], strides = [1, 1]} : vector<8x384xf32> to vector<8x128xf32>
    %229 = arith.addf %227, %228 : vector<8x128xf32>
    %230 = arith.negf %229 : vector<8x128xf32>
    %231 = math.exp %230 : vector<8x128xf32>
    %cst_37 = arith.constant 1.000000e+00 : f32
    %232 = vector.broadcast %cst_37 : f32 to vector<8x128xf32>
    %233 = arith.addf %232, %231 : vector<8x128xf32>
    %234 = arith.divf %232, %233 : vector<8x128xf32>
    %235 = vector.extract_strided_slice %215 {offsets = [0, 256], sizes = [8, 128], strides = [1, 1]} : vector<8x384xf32> to vector<8x128xf32>
    %236 = vector.extract_strided_slice %218 {offsets = [0, 256], sizes = [8, 128], strides = [1, 1]} : vector<8x384xf32> to vector<8x128xf32>
    %237 = arith.mulf %226, %236 : vector<8x128xf32>
    %238 = arith.addf %235, %237 : vector<8x128xf32>
    %239 = math.tanh %238 : vector<8x128xf32>
    %cst_38 = arith.constant 1.000000e+00 : f32
    %240 = vector.broadcast %cst_38 : f32 to vector<8x128xf32>
    %241 = arith.subf %240, %234 : vector<8x128xf32>
    %242 = arith.mulf %241, %239 : vector<8x128xf32>
    %243 = arith.mulf %234, %214 : vector<8x128xf32>
    %244 = arith.addf %242, %243 : vector<8x128xf32>
    %c0_39 = arith.constant 0 : index
    %c0_40 = arith.constant 0 : index
    %c0_41 = arith.constant 0 : index
    %245 = vector.load %arg11[%c0_39, %c0_40, %c0_41] : memref<2x8x128xf32, #tpu.memory_space<vmem>>, vector<1x8x128xf32>
    %246 = vector.shape_cast %245 : vector<1x8x128xf32> to vector<8x128xf32>
    %247 = vector.shape_cast %244 : vector<8x128xf32> to vector<1x8x128xf32>
    tpu.vector_store %arg11[%c0_39, %c0_40, %c0_41], %247 {strides = array<i32>} : memref<2x8x128xf32, #tpu.memory_space<vmem>>, vector<1x8x128xf32>,
    %248 = tpu.concatenate %34, %64, %94, %124, %154, %184, %214, %244 in 0 : vector<8x128xf32>, vector<8x128xf32>, vector<8x128xf32>, vector<8x128xf32>, vector<8x128xf32>, vector<8x128xf32>, vector<8x128xf32>, vector<8x128xf32> -> vector<64x128xf32>
    %c0_42 = arith.constant 0 : index
    %c0_43 = arith.constant 0 : index
    %249 = vector.load %arg6[%c0_42, %c0_43] : memref<128x384xf32, #tpu.memory_space<vmem>>, vector<128x384xf32>
    %cst_44 = arith.constant dense<0.000000e+00> : vector<64x384xf32>
    %250 = tpu.matmul %248, %249, %cst_44 {dimension_numbers = #tpu.dot_dimension_numbers<[1], [0], [0], [1], [0, 0, 1, 1], [], []>} : vector<64x128xf32>, vector<128x384xf32>, vector<64x384xf32> -> vector<64x384xf32>
    %c0_45 = arith.constant 0 : index
    %c0_46 = arith.constant 0 : index
    %251 = vector.load %arg7[%c0_45, %c0_46] : memref<1x384xf32, #tpu.memory_space<vmem>>, vector<1x384xf32>
    %252 = vector.broadcast %251 : vector<1x384xf32> to vector<64x384xf32>
    %253 = arith.addf %250, %252 : vector<64x384xf32>
    %c0_47 = arith.constant 0 : index
    %c0_48 = arith.constant 0 : index
    %254 = vector.load %arg4[%c0_47, %c0_48] : memref<128x384xf32, #tpu.memory_space<vmem>>, vector<128x384xf32>
    %c0_49 = arith.constant 0 : index
    %c0_50 = arith.constant 0 : index
    %255 = vector.load %arg5[%c0_49, %c0_50] : memref<1x384xf32, #tpu.memory_space<vmem>>, vector<1x384xf32>
    %c1 = arith.constant 1 : index
    %c0_51 = arith.constant 0 : index
    %c0_52 = arith.constant 0 : index
    %256 = vector.load %arg1[%c1, %c0_51, %c0_52] : memref<2x8x128xf32, #tpu.memory_space<vmem>>, vector<1x8x128xf32>
    %257 = vector.shape_cast %256 : vector<1x8x128xf32> to vector<8x128xf32>
    %258 = vector.extract_strided_slice %253 {offsets = [0, 0], sizes = [8, 384], strides = [1, 1]} : vector<64x384xf32> to vector<8x384xf32>
    %cst_53 = arith.constant dense<0.000000e+00> : vector<8x384xf32>
    %259 = tpu.matmul %257, %254, %cst_53 {dimension_numbers = #tpu.dot_dimension_numbers<[1], [0], [0], [1], [0, 0, 1, 1], [], []>} : vector<8x128xf32>, vector<128x384xf32>, vector<8x384xf32> -> vector<8x384xf32>
    %260 = vector.broadcast %255 : vector<1x384xf32> to vector<8x384xf32>
    %261 = arith.addf %259, %260 : vector<8x384xf32>
    %262 = vector.extract_strided_slice %258 {offsets = [0, 0], sizes = [8, 128], strides = [1, 1]} : vector<8x384xf32> to vector<8x128xf32>
    %263 = vector.extract_strided_slice %261 {offsets = [0, 0], sizes = [8, 128], strides = [1, 1]} : vector<8x384xf32> to vector<8x128xf32>
    %264 = arith.addf %262, %263 : vector<8x128xf32>
    %265 = arith.negf %264 : vector<8x128xf32>
    %266 = math.exp %265 : vector<8x128xf32>
    %cst_54 = arith.constant 1.000000e+00 : f32
    %267 = vector.broadcast %cst_54 : f32 to vector<8x128xf32>
    %268 = arith.addf %267, %266 : vector<8x128xf32>
    %269 = arith.divf %267, %268 : vector<8x128xf32>
    %270 = vector.extract_strided_slice %258 {offsets = [0, 128], sizes = [8, 128], strides = [1, 1]} : vector<8x384xf32> to vector<8x128xf32>
    %271 = vector.extract_strided_slice %261 {offsets = [0, 128], sizes = [8, 128], strides = [1, 1]} : vector<8x384xf32> to vector<8x128xf32>
    %272 = arith.addf %270, %271 : vector<8x128xf32>
    %273 = arith.negf %272 : vector<8x128xf32>
    %274 = math.exp %273 : vector<8x128xf32>
    %cst_55 = arith.constant 1.000000e+00 : f32
    %275 = vector.broadcast %cst_55 : f32 to vector<8x128xf32>
    %276 = arith.addf %275, %274 : vector<8x128xf32>
    %277 = arith.divf %275, %276 : vector<8x128xf32>
    %278 = vector.extract_strided_slice %258 {offsets = [0, 256], sizes = [8, 128], strides = [1, 1]} : vector<8x384xf32> to vector<8x128xf32>
    %279 = vector.extract_strided_slice %261 {offsets = [0, 256], sizes = [8, 128], strides = [1, 1]} : vector<8x384xf32> to vector<8x128xf32>
    %280 = arith.mulf %269, %279 : vector<8x128xf32>
    %281 = arith.addf %278, %280 : vector<8x128xf32>
    %282 = math.tanh %281 : vector<8x128xf32>
    %cst_56 = arith.constant 1.000000e+00 : f32
    %283 = vector.broadcast %cst_56 : f32 to vector<8x128xf32>
    %284 = arith.subf %283, %277 : vector<8x128xf32>
    %285 = arith.mulf %284, %282 : vector<8x128xf32>
    %286 = arith.mulf %277, %257 : vector<8x128xf32>
    %287 = arith.addf %285, %286 : vector<8x128xf32>
    %288 = vector.extract_strided_slice %253 {offsets = [8, 0], sizes = [8, 384], strides = [1, 1]} : vector<64x384xf32> to vector<8x384xf32>
    %cst_57 = arith.constant dense<0.000000e+00> : vector<8x384xf32>
    %289 = tpu.matmul %287, %254, %cst_57 {dimension_numbers = #tpu.dot_dimension_numbers<[1], [0], [0], [1], [0, 0, 1, 1], [], []>} : vector<8x128xf32>, vector<128x384xf32>, vector<8x384xf32> -> vector<8x384xf32>
    %290 = vector.broadcast %255 : vector<1x384xf32> to vector<8x384xf32>
    %291 = arith.addf %289, %290 : vector<8x384xf32>
    %292 = vector.extract_strided_slice %288 {offsets = [0, 0], sizes = [8, 128], strides = [1, 1]} : vector<8x384xf32> to vector<8x128xf32>
    %293 = vector.extract_strided_slice %291 {offsets = [0, 0], sizes = [8, 128], strides = [1, 1]} : vector<8x384xf32> to vector<8x128xf32>
    %294 = arith.addf %292, %293 : vector<8x128xf32>
    %295 = arith.negf %294 : vector<8x128xf32>
    %296 = math.exp %295 : vector<8x128xf32>
    %cst_58 = arith.constant 1.000000e+00 : f32
    %297 = vector.broadcast %cst_58 : f32 to vector<8x128xf32>
    %298 = arith.addf %297, %296 : vector<8x128xf32>
    %299 = arith.divf %297, %298 : vector<8x128xf32>
    %300 = vector.extract_strided_slice %288 {offsets = [0, 128], sizes = [8, 128], strides = [1, 1]} : vector<8x384xf32> to vector<8x128xf32>
    %301 = vector.extract_strided_slice %291 {offsets = [0, 128], sizes = [8, 128], strides = [1, 1]} : vector<8x384xf32> to vector<8x128xf32>
    %302 = arith.addf %300, %301 : vector<8x128xf32>
    %303 = arith.negf %302 : vector<8x128xf32>
    %304 = math.exp %303 : vector<8x128xf32>
    %cst_59 = arith.constant 1.000000e+00 : f32
    %305 = vector.broadcast %cst_59 : f32 to vector<8x128xf32>
    %306 = arith.addf %305, %304 : vector<8x128xf32>
    %307 = arith.divf %305, %306 : vector<8x128xf32>
    %308 = vector.extract_strided_slice %288 {offsets = [0, 256], sizes = [8, 128], strides = [1, 1]} : vector<8x384xf32> to vector<8x128xf32>
    %309 = vector.extract_strided_slice %291 {offsets = [0, 256], sizes = [8, 128], strides = [1, 1]} : vector<8x384xf32> to vector<8x128xf32>
    %310 = arith.mulf %299, %309 : vector<8x128xf32>
    %311 = arith.addf %308, %310 : vector<8x128xf32>
    %312 = math.tanh %311 : vector<8x128xf32>
    %cst_60 = arith.constant 1.000000e+00 : f32
    %313 = vector.broadcast %cst_60 : f32 to vector<8x128xf32>
    %314 = arith.subf %313, %307 : vector<8x128xf32>
    %315 = arith.mulf %314, %312 : vector<8x128xf32>
    %316 = arith.mulf %307, %287 : vector<8x128xf32>
    %317 = arith.addf %315, %316 : vector<8x128xf32>
    %318 = vector.extract_strided_slice %253 {offsets = [16, 0], sizes = [8, 384], strides = [1, 1]} : vector<64x384xf32> to vector<8x384xf32>
    %cst_61 = arith.constant dense<0.000000e+00> : vector<8x384xf32>
    %319 = tpu.matmul %317, %254, %cst_61 {dimension_numbers = #tpu.dot_dimension_numbers<[1], [0], [0], [1], [0, 0, 1, 1], [], []>} : vector<8x128xf32>, vector<128x384xf32>, vector<8x384xf32> -> vector<8x384xf32>
    %320 = vector.broadcast %255 : vector<1x384xf32> to vector<8x384xf32>
    %321 = arith.addf %319, %320 : vector<8x384xf32>
    %322 = vector.extract_strided_slice %318 {offsets = [0, 0], sizes = [8, 128], strides = [1, 1]} : vector<8x384xf32> to vector<8x128xf32>
    %323 = vector.extract_strided_slice %321 {offsets = [0, 0], sizes = [8, 128], strides = [1, 1]} : vector<8x384xf32> to vector<8x128xf32>
    %324 = arith.addf %322, %323 : vector<8x128xf32>
    %325 = arith.negf %324 : vector<8x128xf32>
    %326 = math.exp %325 : vector<8x128xf32>
    %cst_62 = arith.constant 1.000000e+00 : f32
    %327 = vector.broadcast %cst_62 : f32 to vector<8x128xf32>
    %328 = arith.addf %327, %326 : vector<8x128xf32>
    %329 = arith.divf %327, %328 : vector<8x128xf32>
    %330 = vector.extract_strided_slice %318 {offsets = [0, 128], sizes = [8, 128], strides = [1, 1]} : vector<8x384xf32> to vector<8x128xf32>
    %331 = vector.extract_strided_slice %321 {offsets = [0, 128], sizes = [8, 128], strides = [1, 1]} : vector<8x384xf32> to vector<8x128xf32>
    %332 = arith.addf %330, %331 : vector<8x128xf32>
    %333 = arith.negf %332 : vector<8x128xf32>
    %334 = math.exp %333 : vector<8x128xf32>
    %cst_63 = arith.constant 1.000000e+00 : f32
    %335 = vector.broadcast %cst_63 : f32 to vector<8x128xf32>
    %336 = arith.addf %335, %334 : vector<8x128xf32>
    %337 = arith.divf %335, %336 : vector<8x128xf32>
    %338 = vector.extract_strided_slice %318 {offsets = [0, 256], sizes = [8, 128], strides = [1, 1]} : vector<8x384xf32> to vector<8x128xf32>
    %339 = vector.extract_strided_slice %321 {offsets = [0, 256], sizes = [8, 128], strides = [1, 1]} : vector<8x384xf32> to vector<8x128xf32>
    %340 = arith.mulf %329, %339 : vector<8x128xf32>
    %341 = arith.addf %338, %340 : vector<8x128xf32>
    %342 = math.tanh %341 : vector<8x128xf32>
    %cst_64 = arith.constant 1.000000e+00 : f32
    %343 = vector.broadcast %cst_64 : f32 to vector<8x128xf32>
    %344 = arith.subf %343, %337 : vector<8x128xf32>
    %345 = arith.mulf %344, %342 : vector<8x128xf32>
    %346 = arith.mulf %337, %317 : vector<8x128xf32>
    %347 = arith.addf %345, %346 : vector<8x128xf32>
    %348 = vector.extract_strided_slice %253 {offsets = [24, 0], sizes = [8, 384], strides = [1, 1]} : vector<64x384xf32> to vector<8x384xf32>
    %cst_65 = arith.constant dense<0.000000e+00> : vector<8x384xf32>
    %349 = tpu.matmul %347, %254, %cst_65 {dimension_numbers = #tpu.dot_dimension_numbers<[1], [0], [0], [1], [0, 0, 1, 1], [], []>} : vector<8x128xf32>, vector<128x384xf32>, vector<8x384xf32> -> vector<8x384xf32>
    %350 = vector.broadcast %255 : vector<1x384xf32> to vector<8x384xf32>
    %351 = arith.addf %349, %350 : vector<8x384xf32>
    %352 = vector.extract_strided_slice %348 {offsets = [0, 0], sizes = [8, 128], strides = [1, 1]} : vector<8x384xf32> to vector<8x128xf32>
    %353 = vector.extract_strided_slice %351 {offsets = [0, 0], sizes = [8, 128], strides = [1, 1]} : vector<8x384xf32> to vector<8x128xf32>
    %354 = arith.addf %352, %353 : vector<8x128xf32>
    %355 = arith.negf %354 : vector<8x128xf32>
    %356 = math.exp %355 : vector<8x128xf32>
    %cst_66 = arith.constant 1.000000e+00 : f32
    %357 = vector.broadcast %cst_66 : f32 to vector<8x128xf32>
    %358 = arith.addf %357, %356 : vector<8x128xf32>
    %359 = arith.divf %357, %358 : vector<8x128xf32>
    %360 = vector.extract_strided_slice %348 {offsets = [0, 128], sizes = [8, 128], strides = [1, 1]} : vector<8x384xf32> to vector<8x128xf32>
    %361 = vector.extract_strided_slice %351 {offsets = [0, 128], sizes = [8, 128], strides = [1, 1]} : vector<8x384xf32> to vector<8x128xf32>
    %362 = arith.addf %360, %361 : vector<8x128xf32>
    %363 = arith.negf %362 : vector<8x128xf32>
    %364 = math.exp %363 : vector<8x128xf32>
    %cst_67 = arith.constant 1.000000e+00 : f32
    %365 = vector.broadcast %cst_67 : f32 to vector<8x128xf32>
    %366 = arith.addf %365, %364 : vector<8x128xf32>
    %367 = arith.divf %365, %366 : vector<8x128xf32>
    %368 = vector.extract_strided_slice %348 {offsets = [0, 256], sizes = [8, 128], strides = [1, 1]} : vector<8x384xf32> to vector<8x128xf32>
    %369 = vector.extract_strided_slice %351 {offsets = [0, 256], sizes = [8, 128], strides = [1, 1]} : vector<8x384xf32> to vector<8x128xf32>
    %370 = arith.mulf %359, %369 : vector<8x128xf32>
    %371 = arith.addf %368, %370 : vector<8x128xf32>
    %372 = math.tanh %371 : vector<8x128xf32>
    %cst_68 = arith.constant 1.000000e+00 : f32
    %373 = vector.broadcast %cst_68 : f32 to vector<8x128xf32>
    %374 = arith.subf %373, %367 : vector<8x128xf32>
    %375 = arith.mulf %374, %372 : vector<8x128xf32>
    %376 = arith.mulf %367, %347 : vector<8x128xf32>
    %377 = arith.addf %375, %376 : vector<8x128xf32>
    %378 = vector.extract_strided_slice %253 {offsets = [32, 0], sizes = [8, 384], strides = [1, 1]} : vector<64x384xf32> to vector<8x384xf32>
    %cst_69 = arith.constant dense<0.000000e+00> : vector<8x384xf32>
    %379 = tpu.matmul %377, %254, %cst_69 {dimension_numbers = #tpu.dot_dimension_numbers<[1], [0], [0], [1], [0, 0, 1, 1], [], []>} : vector<8x128xf32>, vector<128x384xf32>, vector<8x384xf32> -> vector<8x384xf32>
    %380 = vector.broadcast %255 : vector<1x384xf32> to vector<8x384xf32>
    %381 = arith.addf %379, %380 : vector<8x384xf32>
    %382 = vector.extract_strided_slice %378 {offsets = [0, 0], sizes = [8, 128], strides = [1, 1]} : vector<8x384xf32> to vector<8x128xf32>
    %383 = vector.extract_strided_slice %381 {offsets = [0, 0], sizes = [8, 128], strides = [1, 1]} : vector<8x384xf32> to vector<8x128xf32>
    %384 = arith.addf %382, %383 : vector<8x128xf32>
    %385 = arith.negf %384 : vector<8x128xf32>
    %386 = math.exp %385 : vector<8x128xf32>
    %cst_70 = arith.constant 1.000000e+00 : f32
    %387 = vector.broadcast %cst_70 : f32 to vector<8x128xf32>
    %388 = arith.addf %387, %386 : vector<8x128xf32>
    %389 = arith.divf %387, %388 : vector<8x128xf32>
    %390 = vector.extract_strided_slice %378 {offsets = [0, 128], sizes = [8, 128], strides = [1, 1]} : vector<8x384xf32> to vector<8x128xf32>
    %391 = vector.extract_strided_slice %381 {offsets = [0, 128], sizes = [8, 128], strides = [1, 1]} : vector<8x384xf32> to vector<8x128xf32>
    %392 = arith.addf %390, %391 : vector<8x128xf32>
    %393 = arith.negf %392 : vector<8x128xf32>
    %394 = math.exp %393 : vector<8x128xf32>
    %cst_71 = arith.constant 1.000000e+00 : f32
    %395 = vector.broadcast %cst_71 : f32 to vector<8x128xf32>
    %396 = arith.addf %395, %394 : vector<8x128xf32>
    %397 = arith.divf %395, %396 : vector<8x128xf32>
    %398 = vector.extract_strided_slice %378 {offsets = [0, 256], sizes = [8, 128], strides = [1, 1]} : vector<8x384xf32> to vector<8x128xf32>
    %399 = vector.extract_strided_slice %381 {offsets = [0, 256], sizes = [8, 128], strides = [1, 1]} : vector<8x384xf32> to vector<8x128xf32>
    %400 = arith.mulf %389, %399 : vector<8x128xf32>
    %401 = arith.addf %398, %400 : vector<8x128xf32>
    %402 = math.tanh %401 : vector<8x128xf32>
    %cst_72 = arith.constant 1.000000e+00 : f32
    %403 = vector.broadcast %cst_72 : f32 to vector<8x128xf32>
    %404 = arith.subf %403, %397 : vector<8x128xf32>
    %405 = arith.mulf %404, %402 : vector<8x128xf32>
    %406 = arith.mulf %397, %377 : vector<8x128xf32>
    %407 = arith.addf %405, %406 : vector<8x128xf32>
    %408 = vector.extract_strided_slice %253 {offsets = [40, 0], sizes = [8, 384], strides = [1, 1]} : vector<64x384xf32> to vector<8x384xf32>
    %cst_73 = arith.constant dense<0.000000e+00> : vector<8x384xf32>
    %409 = tpu.matmul %407, %254, %cst_73 {dimension_numbers = #tpu.dot_dimension_numbers<[1], [0], [0], [1], [0, 0, 1, 1], [], []>} : vector<8x128xf32>, vector<128x384xf32>, vector<8x384xf32> -> vector<8x384xf32>
    %410 = vector.broadcast %255 : vector<1x384xf32> to vector<8x384xf32>
    %411 = arith.addf %409, %410 : vector<8x384xf32>
    %412 = vector.extract_strided_slice %408 {offsets = [0, 0], sizes = [8, 128], strides = [1, 1]} : vector<8x384xf32> to vector<8x128xf32>
    %413 = vector.extract_strided_slice %411 {offsets = [0, 0], sizes = [8, 128], strides = [1, 1]} : vector<8x384xf32> to vector<8x128xf32>
    %414 = arith.addf %412, %413 : vector<8x128xf32>
    %415 = arith.negf %414 : vector<8x128xf32>
    %416 = math.exp %415 : vector<8x128xf32>
    %cst_74 = arith.constant 1.000000e+00 : f32
    %417 = vector.broadcast %cst_74 : f32 to vector<8x128xf32>
    %418 = arith.addf %417, %416 : vector<8x128xf32>
    %419 = arith.divf %417, %418 : vector<8x128xf32>
    %420 = vector.extract_strided_slice %408 {offsets = [0, 128], sizes = [8, 128], strides = [1, 1]} : vector<8x384xf32> to vector<8x128xf32>
    %421 = vector.extract_strided_slice %411 {offsets = [0, 128], sizes = [8, 128], strides = [1, 1]} : vector<8x384xf32> to vector<8x128xf32>
    %422 = arith.addf %420, %421 : vector<8x128xf32>
    %423 = arith.negf %422 : vector<8x128xf32>
    %424 = math.exp %423 : vector<8x128xf32>
    %cst_75 = arith.constant 1.000000e+00 : f32
    %425 = vector.broadcast %cst_75 : f32 to vector<8x128xf32>
    %426 = arith.addf %425, %424 : vector<8x128xf32>
    %427 = arith.divf %425, %426 : vector<8x128xf32>
    %428 = vector.extract_strided_slice %408 {offsets = [0, 256], sizes = [8, 128], strides = [1, 1]} : vector<8x384xf32> to vector<8x128xf32>
    %429 = vector.extract_strided_slice %411 {offsets = [0, 256], sizes = [8, 128], strides = [1, 1]} : vector<8x384xf32> to vector<8x128xf32>
    %430 = arith.mulf %419, %429 : vector<8x128xf32>
    %431 = arith.addf %428, %430 : vector<8x128xf32>
    %432 = math.tanh %431 : vector<8x128xf32>
    %cst_76 = arith.constant 1.000000e+00 : f32
    %433 = vector.broadcast %cst_76 : f32 to vector<8x128xf32>
    %434 = arith.subf %433, %427 : vector<8x128xf32>
    %435 = arith.mulf %434, %432 : vector<8x128xf32>
    %436 = arith.mulf %427, %407 : vector<8x128xf32>
    %437 = arith.addf %435, %436 : vector<8x128xf32>
    %438 = vector.extract_strided_slice %253 {offsets = [48, 0], sizes = [8, 384], strides = [1, 1]} : vector<64x384xf32> to vector<8x384xf32>
    %cst_77 = arith.constant dense<0.000000e+00> : vector<8x384xf32>
    %439 = tpu.matmul %437, %254, %cst_77 {dimension_numbers = #tpu.dot_dimension_numbers<[1], [0], [0], [1], [0, 0, 1, 1], [], []>} : vector<8x128xf32>, vector<128x384xf32>, vector<8x384xf32> -> vector<8x384xf32>
    %440 = vector.broadcast %255 : vector<1x384xf32> to vector<8x384xf32>
    %441 = arith.addf %439, %440 : vector<8x384xf32>
    %442 = vector.extract_strided_slice %438 {offsets = [0, 0], sizes = [8, 128], strides = [1, 1]} : vector<8x384xf32> to vector<8x128xf32>
    %443 = vector.extract_strided_slice %441 {offsets = [0, 0], sizes = [8, 128], strides = [1, 1]} : vector<8x384xf32> to vector<8x128xf32>
    %444 = arith.addf %442, %443 : vector<8x128xf32>
    %445 = arith.negf %444 : vector<8x128xf32>
    %446 = math.exp %445 : vector<8x128xf32>
    %cst_78 = arith.constant 1.000000e+00 : f32
    %447 = vector.broadcast %cst_78 : f32 to vector<8x128xf32>
    %448 = arith.addf %447, %446 : vector<8x128xf32>
    %449 = arith.divf %447, %448 : vector<8x128xf32>
    %450 = vector.extract_strided_slice %438 {offsets = [0, 128], sizes = [8, 128], strides = [1, 1]} : vector<8x384xf32> to vector<8x128xf32>
    %451 = vector.extract_strided_slice %441 {offsets = [0, 128], sizes = [8, 128], strides = [1, 1]} : vector<8x384xf32> to vector<8x128xf32>
    %452 = arith.addf %450, %451 : vector<8x128xf32>
    %453 = arith.negf %452 : vector<8x128xf32>
    %454 = math.exp %453 : vector<8x128xf32>
    %cst_79 = arith.constant 1.000000e+00 : f32
    %455 = vector.broadcast %cst_79 : f32 to vector<8x128xf32>
    %456 = arith.addf %455, %454 : vector<8x128xf32>
    %457 = arith.divf %455, %456 : vector<8x128xf32>
    %458 = vector.extract_strided_slice %438 {offsets = [0, 256], sizes = [8, 128], strides = [1, 1]} : vector<8x384xf32> to vector<8x128xf32>
    %459 = vector.extract_strided_slice %441 {offsets = [0, 256], sizes = [8, 128], strides = [1, 1]} : vector<8x384xf32> to vector<8x128xf32>
    %460 = arith.mulf %449, %459 : vector<8x128xf32>
    %461 = arith.addf %458, %460 : vector<8x128xf32>
    %462 = math.tanh %461 : vector<8x128xf32>
    %cst_80 = arith.constant 1.000000e+00 : f32
    %463 = vector.broadcast %cst_80 : f32 to vector<8x128xf32>
    %464 = arith.subf %463, %457 : vector<8x128xf32>
    %465 = arith.mulf %464, %462 : vector<8x128xf32>
    %466 = arith.mulf %457, %437 : vector<8x128xf32>
    %467 = arith.addf %465, %466 : vector<8x128xf32>
    %468 = vector.extract_strided_slice %253 {offsets = [56, 0], sizes = [8, 384], strides = [1, 1]} : vector<64x384xf32> to vector<8x384xf32>
    %cst_81 = arith.constant dense<0.000000e+00> : vector<8x384xf32>
    %469 = tpu.matmul %467, %254, %cst_81 {dimension_numbers = #tpu.dot_dimension_numbers<[1], [0], [0], [1], [0, 0, 1, 1], [], []>} : vector<8x128xf32>, vector<128x384xf32>, vector<8x384xf32> -> vector<8x384xf32>
    %470 = vector.broadcast %255 : vector<1x384xf32> to vector<8x384xf32>
    %471 = arith.addf %469, %470 : vector<8x384xf32>
    %472 = vector.extract_strided_slice %468 {offsets = [0, 0], sizes = [8, 128], strides = [1, 1]} : vector<8x384xf32> to vector<8x128xf32>
    %473 = vector.extract_strided_slice %471 {offsets = [0, 0], sizes = [8, 128], strides = [1, 1]} : vector<8x384xf32> to vector<8x128xf32>
    %474 = arith.addf %472, %473 : vector<8x128xf32>
    %475 = arith.negf %474 : vector<8x128xf32>
    %476 = math.exp %475 : vector<8x128xf32>
    %cst_82 = arith.constant 1.000000e+00 : f32
    %477 = vector.broadcast %cst_82 : f32 to vector<8x128xf32>
    %478 = arith.addf %477, %476 : vector<8x128xf32>
    %479 = arith.divf %477, %478 : vector<8x128xf32>
    %480 = vector.extract_strided_slice %468 {offsets = [0, 128], sizes = [8, 128], strides = [1, 1]} : vector<8x384xf32> to vector<8x128xf32>
    %481 = vector.extract_strided_slice %471 {offsets = [0, 128], sizes = [8, 128], strides = [1, 1]} : vector<8x384xf32> to vector<8x128xf32>
    %482 = arith.addf %480, %481 : vector<8x128xf32>
    %483 = arith.negf %482 : vector<8x128xf32>
    %484 = math.exp %483 : vector<8x128xf32>
    %cst_83 = arith.constant 1.000000e+00 : f32
    %485 = vector.broadcast %cst_83 : f32 to vector<8x128xf32>
    %486 = arith.addf %485, %484 : vector<8x128xf32>
    %487 = arith.divf %485, %486 : vector<8x128xf32>
    %488 = vector.extract_strided_slice %468 {offsets = [0, 256], sizes = [8, 128], strides = [1, 1]} : vector<8x384xf32> to vector<8x128xf32>
    %489 = vector.extract_strided_slice %471 {offsets = [0, 256], sizes = [8, 128], strides = [1, 1]} : vector<8x384xf32> to vector<8x128xf32>
    %490 = arith.mulf %479, %489 : vector<8x128xf32>
    %491 = arith.addf %488, %490 : vector<8x128xf32>
    %492 = math.tanh %491 : vector<8x128xf32>
    %cst_84 = arith.constant 1.000000e+00 : f32
    %493 = vector.broadcast %cst_84 : f32 to vector<8x128xf32>
    %494 = arith.subf %493, %487 : vector<8x128xf32>
    %495 = arith.mulf %494, %492 : vector<8x128xf32>
    %496 = arith.mulf %487, %467 : vector<8x128xf32>
    %497 = arith.addf %495, %496 : vector<8x128xf32>
    %c1_85 = arith.constant 1 : index
    %c0_86 = arith.constant 0 : index
    %c0_87 = arith.constant 0 : index
    %498 = vector.load %arg11[%c1_85, %c0_86, %c0_87] : memref<2x8x128xf32, #tpu.memory_space<vmem>>, vector<1x8x128xf32>
    %499 = vector.shape_cast %498 : vector<1x8x128xf32> to vector<8x128xf32>
    %500 = vector.shape_cast %497 : vector<8x128xf32> to vector<1x8x128xf32>
    tpu.vector_store %arg11[%c1_85, %c0_86, %c0_87], %500 {strides = array<i32>} : memref<2x8x128xf32, #tpu.memory_space<vmem>>, vector<1x8x128xf32>,
    %501 = tpu.concatenate %287, %317, %347, %377, %407, %437, %467, %497 in 0 : vector<8x128xf32>, vector<8x128xf32>, vector<8x128xf32>, vector<8x128xf32>, vector<8x128xf32>, vector<8x128xf32>, vector<8x128xf32>, vector<8x128xf32> -> vector<64x128xf32>
    %c0_88 = arith.constant 0 : index
    %c0_89 = arith.constant 0 : index
    %502 = vector.load %arg8[%c0_88, %c0_89] : memref<128x128xf32, #tpu.memory_space<vmem>>, vector<128x128xf32>
    %cst_90 = arith.constant dense<0.000000e+00> : vector<64x128xf32>
    %503 = tpu.matmul %501, %502, %cst_90 {dimension_numbers = #tpu.dot_dimension_numbers<[1], [0], [0], [1], [0, 0, 1, 1], [], []>} : vector<64x128xf32>, vector<128x128xf32>, vector<64x128xf32> -> vector<64x128xf32>
    %c0_91 = arith.constant 0 : index
    %c0_92 = arith.constant 0 : index
    %504 = vector.load %arg9[%c0_91, %c0_92] : memref<1x128xf32, #tpu.memory_space<vmem>>, vector<1x128xf32>
    %505 = vector.broadcast %504 : vector<1x128xf32> to vector<64x128xf32>
    %506 = arith.addf %503, %505 : vector<64x128xf32>
    %c0_93 = arith.constant 0 : index
    %c0_94 = arith.constant 0 : index
    %507 = vector.load %arg10[%c0_93, %c0_94] : memref<64x128xf32, #tpu.memory_space<vmem>>, vector<64x128xf32>
    tpu.vector_store %arg10[%c0_93, %c0_94], %506 {strides = array<i32>} : memref<64x128xf32, #tpu.memory_space<vmem>>, vector<64x128xf32>,
    return
  }
}

</mosaic_0001>

<llo_original>
// kernel: tpu_custom_call.1
$region0: #{tpu_custom_call.1}
  #allocation0 [shape = 'u32[]', space=smem, size = 0x4, offset = 0x4, fixed_abs, tag = 'smem constant byte address 0x4 - core index']
  #allocation1 [shape = 'u32[144,128]{1,0:T(1,128)}', space=vmem, size = 0x12000, scoped, tag = 'internal scratch']
  %s0 = inlined_call_operand.hbm [shape: f32[64,384], index: 0, kind: input, shape index: {}]
  %s1 = inlined_call_operand.hbm [shape: f32[2,8,128], index: 1, kind: input, shape index: {}]
  %s2 = inlined_call_operand.hbm [shape: f32[128,384], index: 2, kind: input, shape index: {}]
  %s3 = inlined_call_operand.vmem [shape: f32[1,384], index: 3, kind: input, shape index: {}]
  %s4 = inlined_call_operand.hbm [shape: f32[128,384], index: 4, kind: input, shape index: {}]
  %s5 = inlined_call_operand.vmem [shape: f32[1,384], index: 5, kind: input, shape index: {}]
  %s6 = inlined_call_operand.hbm [shape: f32[128,384], index: 6, kind: input, shape index: {}]
  %s7 = inlined_call_operand.vmem [shape: f32[1,384], index: 7, kind: input, shape index: {}]
  %s8 = inlined_call_operand.hbm [shape: f32[128,128], index: 8, kind: input, shape index: {}]
  %s9 = inlined_call_operand.vmem [shape: f32[1,128], index: 9, kind: input, shape index: {}]
  %s10 = inlined_call_operand.hbm [shape: f32[64,128], index: 10, kind: output, shape index: {0}]
  %s11 = inlined_call_operand.hbm [shape: f32[2,8,128], index: 11, kind: output, shape index: {1}]
  %12 = xla_tuple %s10, %s11
  %s13 = sld [smem:[#allocation0]]
  $region82: #{tpu_custom_call.1} parent=0
    _
  %s15 = ssub.s32 1, %s13
  %s16 = scalar_select 0, %s15, %s13
  $region1: #{tpu_custom_call.1} parent=0
    #allocation2 [shape = 'u8[98304]{0}', space=vmem, size = 0x18000, scoped, tag = 'input window, operand 0, single buffered']
    #allocation3 [shape = 's32[1]{0}', space=sflag, size = 0x4, scoped, tag = 'scoped memory for tpu_custom_call.1']
    #allocation4 [shape = 's32[1]{0}', space=sflag, size = 0x4, scoped, tag = 'scoped memory for tpu_custom_call.1']
    #allocation5 [shape = 'u8[8192]{0}', space=vmem, size = 0x2000, scoped, tag = 'input window, operand 1, single buffered']
    #allocation6 [shape = 's32[1]{0}', space=sflag, size = 0x4, scoped, tag = 'scoped memory for tpu_custom_call.1']
    #allocation7 [shape = 'u8[196608]{0}', space=vmem, size = 0x30000, scoped, tag = 'input window, operand 2, single buffered']
    #allocation8 [shape = 'u8[196608]{0}', space=vmem, size = 0x30000, scoped, tag = 'input window, operand 4, single buffered']
    #allocation9 [shape = 's32[1]{0}', space=sflag, size = 0x4, scoped, tag = 'scoped memory for tpu_custom_call.1']
    #allocation10 [shape = 'u8[196608]{0}', space=vmem, size = 0x30000, scoped, tag = 'input window, operand 6, single buffered']
    #allocation11 [shape = 'u8[65536]{0}', space=vmem, size = 0x10000, scoped, tag = 'input window, operand 8, single buffered']
    #allocation12 [shape = 's32[1]{0}', space=sflag, size = 0x4, scoped, tag = 'scoped memory for tpu_custom_call.1']
    #allocation13 [shape = 'u8[32768]{0}', space=vmem, size = 0x8000, scoped, tag = 'output window, operand 0, single buffered']
    #allocation14 [shape = 'u8[8192]{0}', space=vmem, size = 0x2000, scoped, tag = 'output window, operand 1, single buffered']
    #allocation15 [shape = 's32[1]{0}', space=sflag, size = 0x4, scoped, tag = 'scoped memory for tpu_custom_call.1']
    %17 = vsyncpa [#allocation3], 0
    %18 = vsyncpa [#allocation6], 0
    %19 = vsyncpa [#allocation9], 0
    %20 = vsyncpa [#allocation12], 0
    %21 = vsyncpa [#allocation4], 0
    %22 = vsyncpa [#allocation15], 0
    // Predicated region
    $region2: #{tpu_custom_call.1} parent=1 // pred_check
      _
    $region3: #{tpu_custom_call.1} parent=1 // pred_check_branch
      %24 = sbr.rel (0) target = $region5
    $region4: #{tpu_custom_call.1} parent=1 // pred_region
      %s26 = ssub.s32 3072, 3072
      %27 = vsyncadd [#allocation3], %s26
      %s28 = sshll.u32 [#allocation2], 4
      %s29 = int_to_ptr.vmem [resolvable:$true] %s28
      %34 = dma.hbm_to_vmem [thread:$0]  %s0, 3072, %s29, [#allocation3], 384, 384, 24
    $region5: #{tpu_custom_call.1} parent=1 // pred_fallthru
      _
    // Predicated region
    $region6: #{tpu_custom_call.1} parent=1 // pred_check
      _
    $region7: #{tpu_custom_call.1} parent=1 // pred_check_branch
      %36 = sbr.rel (0) target = $region9
    $region8: #{tpu_custom_call.1} parent=1 // pred_region
      %s38 = ssub.s32 256, 256
      %39 = vsyncadd [#allocation6], %s38
      %s40 = sshll.u32 [#allocation5], 4
      %s41 = int_to_ptr.vmem [resolvable:$true] %s40
      %46 = dma.hbm_to_vmem [thread:$0]  %s1, 256, %s41, [#allocation6], 128, 128, 8
    $region9: #{tpu_custom_call.1} parent=1 // pred_fallthru
      _
    // Predicated region
    $region10: #{tpu_custom_call.1} parent=1 // pred_check
      _
    $region11: #{tpu_custom_call.1} parent=1 // pred_check_branch
      %48 = sbr.rel (0) target = $region13
    $region12: #{tpu_custom_call.1} parent=1 // pred_region
      %s50 = ssub.s32 6144, 6144
      %51 = vsyncadd [#allocation6], %s50
      %s52 = sshll.u32 [#allocation7], 4
      %s53 = int_to_ptr.vmem [resolvable:$true] %s52
      %58 = dma.hbm_to_vmem [thread:$0]  %s2, 6144, %s53, [#allocation6], 384, 384, 24
    $region13: #{tpu_custom_call.1} parent=1 // pred_fallthru
      _
    // Predicated region
    $region14: #{tpu_custom_call.1} parent=1 // pred_check
      _
    $region15: #{tpu_custom_call.1} parent=1 // pred_check_branch
      %60 = sbr.rel (0) target = $region17
    $region16: #{tpu_custom_call.1} parent=1 // pred_region
      _
    $region17: #{tpu_custom_call.1} parent=1 // pred_fallthru
      _
    // Predicated region
    $region18: #{tpu_custom_call.1} parent=1 // pred_check
      _
    $region19: #{tpu_custom_call.1} parent=1 // pred_check_branch
      %62 = sbr.rel (0) target = $region21
    $region20: #{tpu_custom_call.1} parent=1 // pred_region
      %s64 = ssub.s32 6144, 6144
      %65 = vsyncadd [#allocation9], %s64
      %s66 = sshll.u32 [#allocation8], 4
      %s67 = int_to_ptr.vmem [resolvable:$true] %s66
      %72 = dma.hbm_to_vmem [thread:$0]  %s4, 6144, %s67, [#allocation9], 384, 384, 24
    $region21: #{tpu_custom_call.1} parent=1 // pred_fallthru
      _
    // Predicated region
    $region22: #{tpu_custom_call.1} parent=1 // pred_check
      _
    $region23: #{tpu_custom_call.1} parent=1 // pred_check_branch
      %74 = sbr.rel (0) target = $region25
    $region24: #{tpu_custom_call.1} parent=1 // pred_region
      _
    $region25: #{tpu_custom_call.1} parent=1 // pred_fallthru
      _
    // Predicated region
    $region26: #{tpu_custom_call.1} parent=1 // pred_check
      _
    $region27: #{tpu_custom_call.1} parent=1 // pred_check_branch
      %76 = sbr.rel (0) target = $region29
    $region28: #{tpu_custom_call.1} parent=1 // pred_region
      %s78 = ssub.s32 6144, 6144
      %79 = vsyncadd [#allocation9], %s78
      %s80 = sshll.u32 [#allocation10], 4
      %s81 = int_to_ptr.vmem [resolvable:$true] %s80
      %86 = dma.hbm_to_vmem [thread:$0]  %s6, 6144, %s81, [#allocation9], 384, 384, 24
    $region29: #{tpu_custom_call.1} parent=1 // pred_fallthru
      _
    // Predicated region
    $region30: #{tpu_custom_call.1} parent=1 // pred_check
      _
    $region31: #{tpu_custom_call.1} parent=1 // pred_check_branch
      %88 = sbr.rel (0) target = $region33
    $region32: #{tpu_custom_call.1} parent=1 // pred_region
      _
    $region33: #{tpu_custom_call.1} parent=1 // pred_fallthru
      _
    // Predicated region
    $region34: #{tpu_custom_call.1} parent=1 // pred_check
      _
    $region35: #{tpu_custom_call.1} parent=1 // pred_check_branch
      %90 = sbr.rel (0) target = $region37
    $region36: #{tpu_custom_call.1} parent=1 // pred_region
      %s92 = ssub.s32 2048, 2048
      %93 = vsyncadd [#allocation12], %s92
      %s94 = sshll.u32 [#allocation11], 4
      %s95 = int_to_ptr.vmem [resolvable:$true] %s94
      %100 = dma.hbm_to_vmem [thread:$0]  %s8, 2048, %s95, [#allocation12], 128, 128, 8
    $region37: #{tpu_custom_call.1} parent=1 // pred_fallthru
      _
    // Predicated region
    $region38: #{tpu_custom_call.1} parent=1 // pred_check
      _
    $region39: #{tpu_custom_call.1} parent=1 // pred_check_branch
      %102 = sbr.rel (0) target = $region41
    $region40: #{tpu_custom_call.1} parent=1 // pred_region
      _
    $region41: #{tpu_custom_call.1} parent=1 // pred_fallthru
      _
    // Predicated region
    $region42: #{tpu_custom_call.1} parent=1 // pred_check
      _
    $region43: #{tpu_custom_call.1} parent=1 // pred_check_branch
      %104 = sbr.rel (0) target = $region45
    $region44: #{tpu_custom_call.1} parent=1 // pred_region
      %105 = dma.done [#allocation3], 3072
    $region45: #{tpu_custom_call.1} parent=1 // pred_fallthru
      _
    // Predicated region
    $region46: #{tpu_custom_call.1} parent=1 // pred_check
      _
    $region47: #{tpu_custom_call.1} parent=1 // pred_check_branch
      %107 = sbr.rel (0) target = $region49
    $region48: #{tpu_custom_call.1} parent=1 // pred_region
      %108 = dma.done [#allocation6], 256
    $region49: #{tpu_custom_call.1} parent=1 // pred_fallthru
      _
    // Predicated region
    $region50: #{tpu_custom_call.1} parent=1 // pred_check
      _
    $region51: #{tpu_custom_call.1} parent=1 // pred_check_branch
      %110 = sbr.rel (0) target = $region53
    $region52: #{tpu_custom_call.1} parent=1 // pred_region
      %111 = dma.done [#allocation6], 6144
    $region53: #{tpu_custom_call.1} parent=1 // pred_fallthru
      _
    // Predicated region
    $region54: #{tpu_custom_call.1} parent=1 // pred_check
      _
    $region55: #{tpu_custom_call.1} parent=1 // pred_check_branch
      %113 = sbr.rel (0) target = $region57
    $region56: #{tpu_custom_call.1} parent=1 // pred_region
      %114 = dma.done [#allocation9], 6144
    $region57: #{tpu_custom_call.1} parent=1 // pred_fallthru
      _
    // Predicated region
    $region58: #{tpu_custom_call.1} parent=1 // pred_check
      _
    $region59: #{tpu_custom_call.1} parent=1 // pred_check_branch
      %116 = sbr.rel (0) target = $region61
    $region60: #{tpu_custom_call.1} parent=1 // pred_region
      %117 = dma.done [#allocation9], 6144
    $region61: #{tpu_custom_call.1} parent=1 // pred_fallthru
      _
    // Predicated region
    $region62: #{tpu_custom_call.1} parent=1 // pred_check
      _
    $region63: #{tpu_custom_call.1} parent=1 // pred_check_branch
      %119 = sbr.rel (0) target = $region65
    $region64: #{tpu_custom_call.1} parent=1 // pred_region
      %120 = dma.done [#allocation12], 2048
    $region65: #{tpu_custom_call.1} parent=1 // pred_fallthru
      _
    %v121 = vld [vmem:[#allocation2] sm:$0xff]
    %v122 = vld [vmem:[#allocation2 + $0x8] sm:$0xff]
    %v123 = vld [vmem:[#allocation2 + $0x10] sm:$0xff]
    %v124 = vld [vmem:[#allocation2 + $0x18] sm:$0xff]
    %v125 = vld [vmem:[#allocation2 + $0x20] sm:$0xff]
    %v126 = vld [vmem:[#allocation2 + $0x28] sm:$0xff]
    %v127 = vld [vmem:[#allocation2 + $0x30] sm:$0xff]
    %v128 = vld [vmem:[#allocation2 + $0x38] sm:$0xff]
    %v129 = vld [vmem:[#allocation2 + $0x40] sm:$0xff]
    %v130 = vld [vmem:[#allocation2 + $0x48] sm:$0xff]
    %v131 = vld [vmem:[#allocation2 + $0x50] sm:$0xff]
    %v132 = vld [vmem:[#allocation2 + $0x58] sm:$0xff]
    %v133 = vld [vmem:[#allocation2 + $0x60] sm:$0xff]
    %v134 = vld [vmem:[#allocation2 + $0x68] sm:$0xff]
    %v135 = vld [vmem:[#allocation2 + $0x70] sm:$0xff]
    %v136 = vld [vmem:[#allocation2 + $0x78] sm:$0xff]
    %v137 = vld [vmem:[#allocation2 + $0x80] sm:$0xff]
    %v138 = vld [vmem:[#allocation2 + $0x88] sm:$0xff]
    %v139 = vld [vmem:[#allocation2 + $0x90] sm:$0xff]
    %v140 = vld [vmem:[#allocation2 + $0x98] sm:$0xff]
    %v141 = vld [vmem:[#allocation2 + $0xa0] sm:$0xff]
    %v142 = vld [vmem:[#allocation2 + $0xa8] sm:$0xff]
    %v143 = vld [vmem:[#allocation2 + $0xb0] sm:$0xff]
    %v144 = vld [vmem:[#allocation2 + $0xb8] sm:$0xff]
    %v145 = vld [vmem:[#allocation7] sm:$0xff]
    %v146 = vld [vmem:[#allocation7 + $0x8] sm:$0xff]
    %v147 = vld [vmem:[#allocation7 + $0x10] sm:$0xff]
    %v148 = vld [vmem:[#allocation7 + $0x18] sm:$0xff]
    %v149 = vld [vmem:[#allocation7 + $0x20] sm:$0xff]
    %v150 = vld [vmem:[#allocation7 + $0x28] sm:$0xff]
    %v151 = vld [vmem:[#allocation7 + $0x30] sm:$0xff]
    %v152 = vld [vmem:[#allocation7 + $0x38] sm:$0xff]
    %v153 = vld [vmem:[#allocation7 + $0x40] sm:$0xff]
    %v154 = vld [vmem:[#allocation7 + $0x48] sm:$0xff]
    %v155 = vld [vmem:[#allocation7 + $0x50] sm:$0xff]
    %v156 = vld [vmem:[#allocation7 + $0x58] sm:$0xff]
    %v157 = vld [vmem:[#allocation7 + $0x60] sm:$0xff]
    %v158 = vld [vmem:[#allocation7 + $0x68] sm:$0xff]
    %v159 = vld [vmem:[#allocation7 + $0x70] sm:$0xff]
    %v160 = vld [vmem:[#allocation7 + $0x78] sm:$0xff]
    %v161 = vld [vmem:[#allocation7 + $0x80] sm:$0xff]
    %v162 = vld [vmem:[#allocation7 + $0x88] sm:$0xff]
    %v163 = vld [vmem:[#allocation7 + $0x90] sm:$0xff]
    %v164 = vld [vmem:[#allocation7 + $0x98] sm:$0xff]
    %v165 = vld [vmem:[#allocation7 + $0xa0] sm:$0xff]
    %v166 = vld [vmem:[#allocation7 + $0xa8] sm:$0xff]
    %v167 = vld [vmem:[#allocation7 + $0xb0] sm:$0xff]
    %v168 = vld [vmem:[#allocation7 + $0xb8] sm:$0xff]
    %v169 = vld [vmem:[#allocation7 + $0xc0] sm:$0xff]
    %v170 = vld [vmem:[#allocation7 + $0xc8] sm:$0xff]
    %v171 = vld [vmem:[#allocation7 + $0xd0] sm:$0xff]
    %v172 = vld [vmem:[#allocation7 + $0xd8] sm:$0xff]
    %v173 = vld [vmem:[#allocation7 + $0xe0] sm:$0xff]
    %v174 = vld [vmem:[#allocation7 + $0xe8] sm:$0xff]
    %v175 = vld [vmem:[#allocation7 + $0xf0] sm:$0xff]
    %v176 = vld [vmem:[#allocation7 + $0xf8] sm:$0xff]
    %v177 = vld [vmem:[#allocation7 + $0x100] sm:$0xff]
    %v178 = vld [vmem:[#allocation7 + $0x108] sm:$0xff]
    %v179 = vld [vmem:[#allocation7 + $0x110] sm:$0xff]
    %v180 = vld [vmem:[#allocation7 + $0x118] sm:$0xff]
    %v181 = vld [vmem:[#allocation7 + $0x120] sm:$0xff]
    %v182 = vld [vmem:[#allocation7 + $0x128] sm:$0xff]
    %v183 = vld [vmem:[#allocation7 + $0x130] sm:$0xff]
    %v184 = vld [vmem:[#allocation7 + $0x138] sm:$0xff]
    %v185 = vld [vmem:[#allocation7 + $0x140] sm:$0xff]
    %v186 = vld [vmem:[#allocation7 + $0x148] sm:$0xff]
    %v187 = vld [vmem:[#allocation7 + $0x150] sm:$0xff]
    %v188 = vld [vmem:[#allocation7 + $0x158] sm:$0xff]
    %v189 = vld [vmem:[#allocation7 + $0x160] sm:$0xff]
    %v190 = vld [vmem:[#allocation7 + $0x168] sm:$0xff]
    %v191 = vld [vmem:[#allocation7 + $0x170] sm:$0xff]
    %v192 = vld [vmem:[#allocation7 + $0x178] sm:$0xff]
    %v193 = vld [vmem:[%s3] sm:$0x7]
    %v194 = vld [vmem:[#allocation5] sm:$0xff]
    %v196 = vlaneseq
    %v197 = vshrl.u32 %v196, 7
    %v198 = vsub.s32 0, %v197
    %v199 = vrot.slane %v193, %v198
    %v200 = vlaneseq
    %v201 = vshrl.u32 %v200, 7
    %v202 = vsub.s32 1, %v201
    %v203 = vrot.slane %v193, %v202
    %v204 = vlaneseq
    %v205 = vshrl.u32 %v204, 7
    %v206 = vsub.s32 2, %v205
    %v207 = vrot.slane %v193, %v206
    %211 = vmatprep.subr.mxu0 %v146
    %212 = vmatpush1.msra.mxu0 %v145
    %213 = vmatprep.subr.mxu0 %v149
    %214 = vmatpush1.msra.mxu0 %v148
    %215 = vmatprep.subr.mxu0 %v152
    %216 = vmatpush1.msra.mxu0 %v151
    %217 = vmatprep.subr.mxu0 %v155
    %218 = vmatpush1.msra.mxu0 %v154
    %219 = vmatprep.subr.mxu0 %v158
    %220 = vmatpush1.msra.mxu0 %v157
    %221 = vmatprep.subr.mxu0 %v161
    %222 = vmatpush1.msra.mxu0 %v160
    %223 = vmatprep.subr.mxu0 %v164
    %224 = vmatpush1.msra.mxu0 %v163
    %225 = vmatprep.subr.mxu0 %v167
    %226 = vmatpush1.msra.mxu0 %v166
    %227 = vmatprep.subr.mxu0 %v170
    %228 = vmatpush1.msra.mxu0 %v169
    %229 = vmatprep.subr.mxu0 %v173
    %230 = vmatpush1.msra.mxu0 %v172
    %231 = vmatprep.subr.mxu0 %v176
    %232 = vmatpush1.msra.mxu0 %v175
    %233 = vmatprep.subr.mxu0 %v179
    %234 = vmatpush1.msra.mxu0 %v178
    %235 = vmatprep.subr.mxu0 %v182
    %236 = vmatpush1.msra.mxu0 %v181
    %237 = vmatprep.subr.mxu0 %v185
    %238 = vmatpush1.msra.mxu0 %v184
    %239 = vmatprep.subr.mxu0 %v188
    %240 = vmatpush1.msra.mxu0 %v187
    %241 = vmatprep.subr.mxu0 %v191
    %242 = vmatpush1.msra.mxu0 %v190
    %243 = vmatprep.subr.mxu0 0.0
    %244 = vmatpush1.msra.mxu0 0.0
    %245 = vmatprep.subr.mxu0 0.0
    %246 = vmatpush1.msra.mxu0 0.0
    %247 = vmatprep.subr.mxu0 0.0
    %248 = vmatpush1.msra.mxu0 0.0
    %249 = vmatprep.subr.mxu0 0.0
    %250 = vmatpush1.msra.mxu0 0.0
    %251 = vmatprep.subr.mxu0 0.0
    %252 = vmatpush1.msra.mxu0 0.0
    %253 = vmatprep.subr.mxu0 0.0
    %254 = vmatpush1.msra.mxu0 0.0
    %255 = vmatprep.subr.mxu0 0.0
    %256 = vmatpush1.msra.mxu0 0.0
    %257 = vmatprep.subr.mxu0 0.0
    %258 = vmatpush1.msra.mxu0 0.0
    %259 = vmatprep.subr.mxu0 0.0
    %260 = vmatpush1.msra.mxu0 0.0
    %261 = vmatprep.subr.mxu0 0.0
    %262 = vmatpush1.msra.mxu0 0.0
    %263 = vmatprep.subr.mxu0 0.0
    %264 = vmatpush1.msra.mxu0 0.0
    %265 = vmatprep.subr.mxu0 0.0
    %266 = vmatpush1.msra.mxu0 0.0
    %267 = vmatprep.subr.mxu0 0.0
    %268 = vmatpush1.msra.mxu0 0.0
    %269 = vmatprep.subr.mxu0 0.0
    %270 = vmatpush1.msra.mxu0 0.0
    %271 = vmatprep.subr.mxu0 0.0
    %272 = vmatpush1.msra.mxu0 0.0
    %273 = vmatprep.subr.mxu0 0.0
    %274 = vmatpush1.msra.mxu0 0.0
    %275 = vmatprep.mubr.f32.mxu0 0.0
    %276 = vmatmul.mubr.f32.gmra.mrb[0].mxu0 %v194
    %v277 = vpop.f32.mrb[0].mxu0
    %v278 = vadd.f32 %v199, %v277
    %v279 = vpop.f32.mrb[0].mxu0
    %v280 = vadd.f32 %v203, %v279
    %281 = vdwg.mxu0
    %282 = vmatprep.subr.mxu0 0.0
    %283 = vmatpush1.msra.mxu0 %v147
    %284 = vmatprep.subr.mxu0 0.0
    %285 = vmatpush1.msra.mxu0 %v150
    %286 = vmatprep.subr.mxu0 0.0
    %287 = vmatpush1.msra.mxu0 %v153
    %288 = vmatprep.subr.mxu0 0.0
    %289 = vmatpush1.msra.mxu0 %v156
    %290 = vmatprep.subr.mxu0 0.0
    %291 = vmatpush1.msra.mxu0 %v159
    %292 = vmatprep.subr.mxu0 0.0
    %293 = vmatpush1.msra.mxu0 %v162
    %294 = vmatprep.subr.mxu0 0.0
    %295 = vmatpush1.msra.mxu0 %v165
    %296 = vmatprep.subr.mxu0 0.0
    %297 = vmatpush1.msra.mxu0 %v168
    %298 = vmatprep.subr.mxu0 0.0
    %299 = vmatpush1.msra.mxu0 %v171
    %300 = vmatprep.subr.mxu0 0.0
    %301 = vmatpush1.msra.mxu0 %v174
    %302 = vmatprep.subr.mxu0 0.0
    %303 = vmatpush1.msra.mxu0 %v177
    %304 = vmatprep.subr.mxu0 0.0
    %305 = vmatpush1.msra.mxu0 %v180
    %306 = vmatprep.subr.mxu0 0.0
    %307 = vmatpush1.msra.mxu0 %v183
    %308 = vmatprep.subr.mxu0 0.0
    %309 = vmatpush1.msra.mxu0 %v186
    %310 = vmatprep.subr.mxu0 0.0
    %311 = vmatpush1.msra.mxu0 %v189
    %312 = vmatprep.subr.mxu0 0.0
    %313 = vmatpush1.msra.mxu0 %v192
    %314 = vmatprep.subr.mxu0 0.0
    %315 = vmatpush1.msra.mxu0 0.0
    %316 = vmatprep.subr.mxu0 0.0
    %317 = vmatpush1.msra.mxu0 0.0
    %318 = vmatprep.subr.mxu0 0.0
    %319 = vmatpush1.msra.mxu0 0.0
    %320 = vmatprep.subr.mxu0 0.0
    %321 = vmatpush1.msra.mxu0 0.0
    %322 = vmatprep.subr.mxu0 0.0
    %323 = vmatpush1.msra.mxu0 0.0
    %324 = vmatprep.subr.mxu0 0.0
    %325 = vmatpush1.msra.mxu0 0.0
    %326 = vmatprep.subr.mxu0 0.0
    %327 = vmatpush1.msra.mxu0 0.0
    %328 = vmatprep.subr.mxu0 0.0
    %329 = vmatpush1.msra.mxu0 0.0
    %330 = vmatprep.subr.mxu0 0.0
    %331 = vmatpush1.msra.mxu0 0.0
    %332 = vmatprep.subr.mxu0 0.0
    %333 = vmatpush1.msra.mxu0 0.0
    %334 = vmatprep.subr.mxu0 0.0
    %335 = vmatpush1.msra.mxu0 0.0
    %336 = vmatprep.subr.mxu0 0.0
    %337 = vmatpush1.msra.mxu0 0.0
    %338 = vmatprep.subr.mxu0 0.0
    %339 = vmatpush1.msra.mxu0 0.0
    %340 = vmatprep.subr.mxu0 0.0
    %341 = vmatpush1.msra.mxu0 0.0
    %342 = vmatprep.subr.mxu0 0.0
    %343 = vmatpush1.msra.mxu0 0.0
    %344 = vmatprep.subr.mxu0 0.0
    %345 = vmatpush1.msra.mxu0 0.0
    %346 = vmatprep.mubr.f32.mxu0 0.0
    %347 = vmatmul.mubr.f32.gmra.mrb[0].mxu0 %v194
    %v348 = vpop.f32.mrb[0].mxu0
    %v349 = vadd.f32 %v207, %v348
    %v350 = vpop.f32.mrb[0].mxu0
    %351 = vdwg.mxu0
    %v352 = vadd.f32 %v121, %v278
    %v353 = vxor.u32 %v352, 2147483648
    %v354 = vmul.f32 %v353, 1.442695
    %v355 = vpow.pop %v354
    %v356 = vadd.f32 %v355, 1.0
    %v357 = vrcp.pop %v356
    %v358 = vmul.f32 1.0, %v357
    %v359 = vadd.f32 %v122, %v280
    %v360 = vxor.u32 %v359, 2147483648
    %v361 = vmul.f32 %v360, 1.442695
    %v362 = vpow.pop %v361
    %v363 = vadd.f32 %v362, 1.0
    %v364 = vrcp.pop %v363
    %v365 = vmul.f32 1.0, %v364
    %v366 = vmul.f32 %v358, %v349
    %v367 = vadd.f32 %v123, %v366
    %v368 = vtanh.pop %v367
    %v369 = vsub.f32 1.0, %v365
    %v370 = vmul.f32 %v369, %v368
    %v371 = vmul.f32 %v365, %v194
    %v372 = vadd.f32 %v370, %v371
    %373 = vmatprep.subr.mxu0 %v146
    %374 = vmatpush1.msra.mxu0 %v145
    %375 = vmatprep.subr.mxu0 %v149
    %376 = vmatpush1.msra.mxu0 %v148
    %377 = vmatprep.subr.mxu0 %v152
    %378 = vmatpush1.msra.mxu0 %v151
    %379 = vmatprep.subr.mxu0 %v155
    %380 = vmatpush1.msra.mxu0 %v154
    %381 = vmatprep.subr.mxu0 %v158
    %382 = vmatpush1.msra.mxu0 %v157
    %383 = vmatprep.subr.mxu0 %v161
    %384 = vmatpush1.msra.mxu0 %v160
    %385 = vmatprep.subr.mxu0 %v164
    %386 = vmatpush1.msra.mxu0 %v163
    %387 = vmatprep.subr.mxu0 %v167
    %388 = vmatpush1.msra.mxu0 %v166
    %389 = vmatprep.subr.mxu0 %v170
    %390 = vmatpush1.msra.mxu0 %v169
    %391 = vmatprep.subr.mxu0 %v173
    %392 = vmatpush1.msra.mxu0 %v172
    %393 = vmatprep.subr.mxu0 %v176
    %394 = vmatpush1.msra.mxu0 %v175
    %395 = vmatprep.subr.mxu0 %v179
    %396 = vmatpush1.msra.mxu0 %v178
    %397 = vmatprep.subr.mxu0 %v182
    %398 = vmatpush1.msra.mxu0 %v181
    %399 = vmatprep.subr.mxu0 %v185
    %400 = vmatpush1.msra.mxu0 %v184
    %401 = vmatprep.subr.mxu0 %v188
    %402 = vmatpush1.msra.mxu0 %v187
    %403 = vmatprep.subr.mxu0 %v191
    %404 = vmatpush1.msra.mxu0 %v190
    %405 = vmatprep.subr.mxu0 0.0
    %406 = vmatpush1.msra.mxu0 0.0
    %407 = vmatprep.subr.mxu0 0.0
    %408 = vmatpush1.msra.mxu0 0.0
    %409 = vmatprep.subr.mxu0 0.0
    %410 = vmatpush1.msra.mxu0 0.0
    %411 = vmatprep.subr.mxu0 0.0
    %412 = vmatpush1.msra.mxu0 0.0
    %413 = vmatprep.subr.mxu0 0.0
    %414 = vmatpush1.msra.mxu0 0.0
    %415 = vmatprep.subr.mxu0 0.0
    %416 = vmatpush1.msra.mxu0 0.0
    %417 = vmatprep.subr.mxu0 0.0
    %418 = vmatpush1.msra.mxu0 0.0
    %419 = vmatprep.subr.mxu0 0.0
    %420 = vmatpush1.msra.mxu0 0.0
    %421 = vmatprep.subr.mxu0 0.0
    %422 = vmatpush1.msra.mxu0 0.0
    %423 = vmatprep.subr.mxu0 0.0
    %424 = vmatpush1.msra.mxu0 0.0
    %425 = vmatprep.subr.mxu0 0.0
    %426 = vmatpush1.msra.mxu0 0.0
    %427 = vmatprep.subr.mxu0 0.0
    %428 = vmatpush1.msra.mxu0 0.0
    %429 = vmatprep.subr.mxu0 0.0
    %430 = vmatpush1.msra.mxu0 0.0
    %431 = vmatprep.subr.mxu0 0.0
    %432 = vmatpush1.msra.mxu0 0.0
    %433 = vmatprep.subr.mxu0 0.0
    %434 = vmatpush1.msra.mxu0 0.0
    %435 = vmatprep.subr.mxu0 0.0
    %436 = vmatpush1.msra.mxu0 0.0
    %437 = vmatprep.mubr.f32.mxu0 0.0
    %438 = vmatmul.mubr.f32.gmra.mrb[0].mxu0 %v372
    %v439 = vpop.f32.mrb[0].mxu0
    %v440 = vadd.f32 %v199, %v439
    %v441 = vpop.f32.mrb[0].mxu0
    %v442 = vadd.f32 %v203, %v441
    %443 = vdwg.mxu0
    %444 = vmatprep.subr.mxu0 0.0
    %445 = vmatpush1.msra.mxu0 %v147
    %446 = vmatprep.subr.mxu0 0.0
    %447 = vmatpush1.msra.mxu0 %v150
    %448 = vmatprep.subr.mxu0 0.0
    %449 = vmatpush1.msra.mxu0 %v153
    %450 = vmatprep.subr.mxu0 0.0
    %451 = vmatpush1.msra.mxu0 %v156
    %452 = vmatprep.subr.mxu0 0.0
    %453 = vmatpush1.msra.mxu0 %v159
    %454 = vmatprep.subr.mxu0 0.0
    %455 = vmatpush1.msra.mxu0 %v162
    %456 = vmatprep.subr.mxu0 0.0
    %457 = vmatpush1.msra.mxu0 %v165
    %458 = vmatprep.subr.mxu0 0.0
    %459 = vmatpush1.msra.mxu0 %v168
    %460 = vmatprep.subr.mxu0 0.0
    %461 = vmatpush1.msra.mxu0 %v171
    %462 = vmatprep.subr.mxu0 0.0
    %463 = vmatpush1.msra.mxu0 %v174
    %464 = vmatprep.subr.mxu0 0.0
    %465 = vmatpush1.msra.mxu0 %v177
    %466 = vmatprep.subr.mxu0 0.0
    %467 = vmatpush1.msra.mxu0 %v180
    %468 = vmatprep.subr.mxu0 0.0
    %469 = vmatpush1.msra.mxu0 %v183
    %470 = vmatprep.subr.mxu0 0.0
    %471 = vmatpush1.msra.mxu0 %v186
    %472 = vmatprep.subr.mxu0 0.0
    %473 = vmatpush1.msra.mxu0 %v189
    %474 = vmatprep.subr.mxu0 0.0
    %475 = vmatpush1.msra.mxu0 %v192
    %476 = vmatprep.subr.mxu0 0.0
    %477 = vmatpush1.msra.mxu0 0.0
    %478 = vmatprep.subr.mxu0 0.0
    %479 = vmatpush1.msra.mxu0 0.0
    %480 = vmatprep.subr.mxu0 0.0
    %481 = vmatpush1.msra.mxu0 0.0
    %482 = vmatprep.subr.mxu0 0.0
    %483 = vmatpush1.msra.mxu0 0.0
    %484 = vmatprep.subr.mxu0 0.0
    %485 = vmatpush1.msra.mxu0 0.0
    %486 = vmatprep.subr.mxu0 0.0
    %487 = vmatpush1.msra.mxu0 0.0
    %488 = vmatprep.subr.mxu0 0.0
    %489 = vmatpush1.msra.mxu0 0.0
    %490 = vmatprep.subr.mxu0 0.0
    %491 = vmatpush1.msra.mxu0 0.0
    %492 = vmatprep.subr.mxu0 0.0
    %493 = vmatpush1.msra.mxu0 0.0
    %494 = vmatprep.subr.mxu0 0.0
    %495 = vmatpush1.msra.mxu0 0.0
    %496 = vmatprep.subr.mxu0 0.0
    %497 = vmatpush1.msra.mxu0 0.0
    %498 = vmatprep.subr.mxu0 0.0
    %499 = vmatpush1.msra.mxu0 0.0
    %500 = vmatprep.subr.mxu0 0.0
    %501 = vmatpush1.msra.mxu0 0.0
    %502 = vmatprep.subr.mxu0 0.0
    %503 = vmatpush1.msra.mxu0 0.0
    %504 = vmatprep.subr.mxu0 0.0
    %505 = vmatpush1.msra.mxu0 0.0
    %506 = vmatprep.subr.mxu0 0.0
    %507 = vmatpush1.msra.mxu0 0.0
    %508 = vmatprep.mubr.f32.mxu0 0.0
    %509 = vmatmul.mubr.f32.gmra.mrb[0].mxu0 %v372
    %v510 = vpop.f32.mrb[0].mxu0
    %v511 = vadd.f32 %v207, %v510
    %v512 = vpop.f32.mrb[0].mxu0
    %513 = vdwg.mxu0
    %v514 = vadd.f32 %v124, %v440
    %v515 = vxor.u32 %v514, 2147483648
    %v516 = vmul.f32 %v515, 1.442695
    %v517 = vpow.pop %v516
    %v518 = vadd.f32 %v517, 1.0
    %v519 = vrcp.pop %v518
    %v520 = vmul.f32 1.0, %v519
    %v521 = vadd.f32 %v125, %v442
    %v522 = vxor.u32 %v521, 2147483648
    %v523 = vmul.f32 %v522, 1.442695
    %v524 = vpow.pop %v523
    %v525 = vadd.f32 %v524, 1.0
    %v526 = vrcp.pop %v525
    %v527 = vmul.f32 1.0, %v526
    %v528 = vmul.f32 %v520, %v511
    %v529 = vadd.f32 %v126, %v528
    %v530 = vtanh.pop %v529
    %v531 = vsub.f32 1.0, %v527
    %v532 = vmul.f32 %v531, %v530
    %v533 = vmul.f32 %v527, %v372
    %v534 = vadd.f32 %v532, %v533
    %535 = vmatprep.subr.mxu0 %v146
    %536 = vmatpush1.msra.mxu0 %v145
    %537 = vmatprep.subr.mxu0 %v149
    %538 = vmatpush1.msra.mxu0 %v148
    %539 = vmatprep.subr.mxu0 %v152
    %540 = vmatpush1.msra.mxu0 %v151
    %541 = vmatprep.subr.mxu0 %v155
    %542 = vmatpush1.msra.mxu0 %v154
    %543 = vmatprep.subr.mxu0 %v158
    %544 = vmatpush1.msra.mxu0 %v157
    %545 = vmatprep.subr.mxu0 %v161
    %546 = vmatpush1.msra.mxu0 %v160
    %547 = vmatprep.subr.mxu0 %v164
    %548 = vmatpush1.msra.mxu0 %v163
    %549 = vmatprep.subr.mxu0 %v167
    %550 = vmatpush1.msra.mxu0 %v166
    %551 = vmatprep.subr.mxu0 %v170
    %552 = vmatpush1.msra.mxu0 %v169
    %553 = vmatprep.subr.mxu0 %v173
    %554 = vmatpush1.msra.mxu0 %v172
    %555 = vmatprep.subr.mxu0 %v176
    %556 = vmatpush1.msra.mxu0 %v175
    %557 = vmatprep.subr.mxu0 %v179
    %558 = vmatpush1.msra.mxu0 %v178
    %559 = vmatprep.subr.mxu0 %v182
    %560 = vmatpush1.msra.mxu0 %v181
    %561 = vmatprep.subr.mxu0 %v185
    %562 = vmatpush1.msra.mxu0 %v184
    %563 = vmatprep.subr.mxu0 %v188
    %564 = vmatpush1.msra.mxu0 %v187
    %565 = vmatprep.subr.mxu0 %v191
    %566 = vmatpush1.msra.mxu0 %v190
    %567 = vmatprep.subr.mxu0 0.0
    %568 = vmatpush1.msra.mxu0 0.0
    %569 = vmatprep.subr.mxu0 0.0
    %570 = vmatpush1.msra.mxu0 0.0
    %571 = vmatprep.subr.mxu0 0.0
    %572 = vmatpush1.msra.mxu0 0.0
    %573 = vmatprep.subr.mxu0 0.0
    %574 = vmatpush1.msra.mxu0 0.0
    %575 = vmatprep.subr.mxu0 0.0
    %576 = vmatpush1.msra.mxu0 0.0
    %577 = vmatprep.subr.mxu0 0.0
    %578 = vmatpush1.msra.mxu0 0.0
    %579 = vmatprep.subr.mxu0 0.0
    %580 = vmatpush1.msra.mxu0 0.0
    %581 = vmatprep.subr.mxu0 0.0
    %582 = vmatpush1.msra.mxu0 0.0
    %583 = vmatprep.subr.mxu0 0.0
    %584 = vmatpush1.msra.mxu0 0.0
    %585 = vmatprep.subr.mxu0 0.0
    %586 = vmatpush1.msra.mxu0 0.0
    %587 = vmatprep.subr.mxu0 0.0
    %588 = vmatpush1.msra.mxu0 0.0
    %589 = vmatprep.subr.mxu0 0.0
    %590 = vmatpush1.msra.mxu0 0.0
    %591 = vmatprep.subr.mxu0 0.0
    %592 = vmatpush1.msra.mxu0 0.0
    %593 = vmatprep.subr.mxu0 0.0
    %594 = vmatpush1.msra.mxu0 0.0
    %595 = vmatprep.subr.mxu0 0.0
    %596 = vmatpush1.msra.mxu0 0.0
    %597 = vmatprep.subr.mxu0 0.0
    %598 = vmatpush1.msra.mxu0 0.0
    %599 = vmatprep.mubr.f32.mxu0 0.0
    %600 = vmatmul.mubr.f32.gmra.mrb[0].mxu0 %v534
    %v601 = vpop.f32.mrb[0].mxu0
    %v602 = vadd.f32 %v199, %v601
    %v603 = vpop.f32.mrb[0].mxu0
    %v604 = vadd.f32 %v203, %v603
    %605 = vdwg.mxu0
    %606 = vmatprep.subr.mxu0 0.0
    %607 = vmatpush1.msra.mxu0 %v147
    %608 = vmatprep.subr.mxu0 0.0
    %609 = vmatpush1.msra.mxu0 %v150
    %610 = vmatprep.subr.mxu0 0.0
    %611 = vmatpush1.msra.mxu0 %v153
    %612 = vmatprep.subr.mxu0 0.0
    %613 = vmatpush1.msra.mxu0 %v156
    %614 = vmatprep.subr.mxu0 0.0
    %615 = vmatpush1.msra.mxu0 %v159
    %616 = vmatprep.subr.mxu0 0.0
    %617 = vmatpush1.msra.mxu0 %v162
    %618 = vmatprep.subr.mxu0 0.0
    %619 = vmatpush1.msra.mxu0 %v165
    %620 = vmatprep.subr.mxu0 0.0
    %621 = vmatpush1.msra.mxu0 %v168
    %622 = vmatprep.subr.mxu0 0.0
    %623 = vmatpush1.msra.mxu0 %v171
    %624 = vmatprep.subr.mxu0 0.0
    %625 = vmatpush1.msra.mxu0 %v174
    %626 = vmatprep.subr.mxu0 0.0
    %627 = vmatpush1.msra.mxu0 %v177
    %628 = vmatprep.subr.mxu0 0.0
    %629 = vmatpush1.msra.mxu0 %v180
    %630 = vmatprep.subr.mxu0 0.0
    %631 = vmatpush1.msra.mxu0 %v183
    %632 = vmatprep.subr.mxu0 0.0
    %633 = vmatpush1.msra.mxu0 %v186
    %634 = vmatprep.subr.mxu0 0.0
    %635 = vmatpush1.msra.mxu0 %v189
    %636 = vmatprep.subr.mxu0 0.0
    %637 = vmatpush1.msra.mxu0 %v192
    %638 = vmatprep.subr.mxu0 0.0
    %639 = vmatpush1.msra.mxu0 0.0
    %640 = vmatprep.subr.mxu0 0.0
    %641 = vmatpush1.msra.mxu0 0.0
    %642 = vmatprep.subr.mxu0 0.0
    %643 = vmatpush1.msra.mxu0 0.0
    %644 = vmatprep.subr.mxu0 0.0
    %645 = vmatpush1.msra.mxu0 0.0
    %646 = vmatprep.subr.mxu0 0.0
    %647 = vmatpush1.msra.mxu0 0.0
    %648 = vmatprep.subr.mxu0 0.0
    %649 = vmatpush1.msra.mxu0 0.0
    %650 = vmatprep.subr.mxu0 0.0
    %651 = vmatpush1.msra.mxu0 0.0
    %652 = vmatprep.subr.mxu0 0.0
    %653 = vmatpush1.msra.mxu0 0.0
    %654 = vmatprep.subr.mxu0 0.0
    %655 = vmatpush1.msra.mxu0 0.0
    %656 = vmatprep.subr.mxu0 0.0
    %657 = vmatpush1.msra.mxu0 0.0
    %658 = vmatprep.subr.mxu0 0.0
    %659 = vmatpush1.msra.mxu0 0.0
    %660 = vmatprep.subr.mxu0 0.0
    %661 = vmatpush1.msra.mxu0 0.0
    %662 = vmatprep.subr.mxu0 0.0
    %663 = vmatpush1.msra.mxu0 0.0
    %664 = vmatprep.subr.mxu0 0.0
    %665 = vmatpush1.msra.mxu0 0.0
    %666 = vmatprep.subr.mxu0 0.0
    %667 = vmatpush1.msra.mxu0 0.0
    %668 = vmatprep.subr.mxu0 0.0
    %669 = vmatpush1.msra.mxu0 0.0
    %670 = vmatprep.mubr.f32.mxu0 0.0
    %671 = vmatmul.mubr.f32.gmra.mrb[0].mxu0 %v534
    %v672 = vpop.f32.mrb[0].mxu0
    %v673 = vadd.f32 %v207, %v672
    %v674 = vpop.f32.mrb[0].mxu0
    %675 = vdwg.mxu0
    %v676 = vadd.f32 %v127, %v602
    %v677 = vxor.u32 %v676, 2147483648
    %v678 = vmul.f32 %v677, 1.442695
    %v679 = vpow.pop %v678
    %v680 = vadd.f32 %v679, 1.0
    %v681 = vrcp.pop %v680
    %v682 = vmul.f32 1.0, %v681
    %v683 = vadd.f32 %v128, %v604
    %v684 = vxor.u32 %v683, 2147483648
    %v685 = vmul.f32 %v684, 1.442695
    %v686 = vpow.pop %v685
    %v687 = vadd.f32 %v686, 1.0
    %v688 = vrcp.pop %v687
    %v689 = vmul.f32 1.0, %v688
    %v690 = vmul.f32 %v682, %v673
    %v691 = vadd.f32 %v129, %v690
    %v692 = vtanh.pop %v691
    %v693 = vsub.f32 1.0, %v689
    %v694 = vmul.f32 %v693, %v692
    %v695 = vmul.f32 %v689, %v534
    %v696 = vadd.f32 %v694, %v695
    %697 = vmatprep.subr.mxu0 %v146
    %698 = vmatpush1.msra.mxu0 %v145
    %699 = vmatprep.subr.mxu0 %v149
    %700 = vmatpush1.msra.mxu0 %v148
    %701 = vmatprep.subr.mxu0 %v152
    %702 = vmatpush1.msra.mxu0 %v151
    %703 = vmatprep.subr.mxu0 %v155
    %704 = vmatpush1.msra.mxu0 %v154
    %705 = vmatprep.subr.mxu0 %v158
    %706 = vmatpush1.msra.mxu0 %v157
    %707 = vmatprep.subr.mxu0 %v161
    %708 = vmatpush1.msra.mxu0 %v160
    %709 = vmatprep.subr.mxu0 %v164
    %710 = vmatpush1.msra.mxu0 %v163
    %711 = vmatprep.subr.mxu0 %v167
    %712 = vmatpush1.msra.mxu0 %v166
    %713 = vmatprep.subr.mxu0 %v170
    %714 = vmatpush1.msra.mxu0 %v169
    %715 = vmatprep.subr.mxu0 %v173
    %716 = vmatpush1.msra.mxu0 %v172
    %717 = vmatprep.subr.mxu0 %v176
    %718 = vmatpush1.msra.mxu0 %v175
    %719 = vmatprep.subr.mxu0 %v179
    %720 = vmatpush1.msra.mxu0 %v178
    %721 = vmatprep.subr.mxu0 %v182
    %722 = vmatpush1.msra.mxu0 %v181
    %723 = vmatprep.subr.mxu0 %v185
    %724 = vmatpush1.msra.mxu0 %v184
    %725 = vmatprep.subr.mxu0 %v188
    %726 = vmatpush1.msra.mxu0 %v187
    %727 = vmatprep.subr.mxu0 %v191
    %728 = vmatpush1.msra.mxu0 %v190
    %729 = vmatprep.subr.mxu0 0.0
    %730 = vmatpush1.msra.mxu0 0.0
    %731 = vmatprep.subr.mxu0 0.0
    %732 = vmatpush1.msra.mxu0 0.0
    %733 = vmatprep.subr.mxu0 0.0
    %734 = vmatpush1.msra.mxu0 0.0
    %735 = vmatprep.subr.mxu0 0.0
    %736 = vmatpush1.msra.mxu0 0.0
    %737 = vmatprep.subr.mxu0 0.0
    %738 = vmatpush1.msra.mxu0 0.0
    %739 = vmatprep.subr.mxu0 0.0
    %740 = vmatpush1.msra.mxu0 0.0
    %741 = vmatprep.subr.mxu0 0.0
    %742 = vmatpush1.msra.mxu0 0.0
    %743 = vmatprep.subr.mxu0 0.0
    %744 = vmatpush1.msra.mxu0 0.0
    %745 = vmatprep.subr.mxu0 0.0
    %746 = vmatpush1.msra.mxu0 0.0
    %747 = vmatprep.subr.mxu0 0.0
    %748 = vmatpush1.msra.mxu0 0.0
    %749 = vmatprep.subr.mxu0 0.0
    %750 = vmatpush1.msra.mxu0 0.0
    %751 = vmatprep.subr.mxu0 0.0
    %752 = vmatpush1.msra.mxu0 0.0
    %753 = vmatprep.subr.mxu0 0.0
    %754 = vmatpush1.msra.mxu0 0.0
    %755 = vmatprep.subr.mxu0 0.0
    %756 = vmatpush1.msra.mxu0 0.0
    %757 = vmatprep.subr.mxu0 0.0
    %758 = vmatpush1.msra.mxu0 0.0
    %759 = vmatprep.subr.mxu0 0.0
    %760 = vmatpush1.msra.mxu0 0.0
    %761 = vmatprep.mubr.f32.mxu0 0.0
    %762 = vmatmul.mubr.f32.gmra.mrb[0].mxu0 %v696
    %v763 = vpop.f32.mrb[0].mxu0
    %v764 = vadd.f32 %v199, %v763
    %v765 = vpop.f32.mrb[0].mxu0
    %v766 = vadd.f32 %v203, %v765
    %767 = vdwg.mxu0
    %768 = vmatprep.subr.mxu0 0.0
    %769 = vmatpush1.msra.mxu0 %v147
    %770 = vmatprep.subr.mxu0 0.0
    %771 = vmatpush1.msra.mxu0 %v150
    %772 = vmatprep.subr.mxu0 0.0
    %773 = vmatpush1.msra.mxu0 %v153
    %774 = vmatprep.subr.mxu0 0.0
    %775 = vmatpush1.msra.mxu0 %v156
    %776 = vmatprep.subr.mxu0 0.0
    %777 = vmatpush1.msra.mxu0 %v159
    %778 = vmatprep.subr.mxu0 0.0
    %779 = vmatpush1.msra.mxu0 %v162
    %780 = vmatprep.subr.mxu0 0.0
    %781 = vmatpush1.msra.mxu0 %v165
    %782 = vmatprep.subr.mxu0 0.0
    %783 = vmatpush1.msra.mxu0 %v168
    %784 = vmatprep.subr.mxu0 0.0
    %785 = vmatpush1.msra.mxu0 %v171
    %786 = vmatprep.subr.mxu0 0.0
    %787 = vmatpush1.msra.mxu0 %v174
    %788 = vmatprep.subr.mxu0 0.0
    %789 = vmatpush1.msra.mxu0 %v177
    %790 = vmatprep.subr.mxu0 0.0
    %791 = vmatpush1.msra.mxu0 %v180
    %792 = vmatprep.subr.mxu0 0.0
    %793 = vmatpush1.msra.mxu0 %v183
    %794 = vmatprep.subr.mxu0 0.0
    %795 = vmatpush1.msra.mxu0 %v186
    %796 = vmatprep.subr.mxu0 0.0
    %797 = vmatpush1.msra.mxu0 %v189
    %798 = vmatprep.subr.mxu0 0.0
    %799 = vmatpush1.msra.mxu0 %v192
    %800 = vmatprep.subr.mxu0 0.0
    %801 = vmatpush1.msra.mxu0 0.0
    %802 = vmatprep.subr.mxu0 0.0
    %803 = vmatpush1.msra.mxu0 0.0
    %804 = vmatprep.subr.mxu0 0.0
    %805 = vmatpush1.msra.mxu0 0.0
    %806 = vmatprep.subr.mxu0 0.0
    %807 = vmatpush1.msra.mxu0 0.0
    %808 = vmatprep.subr.mxu0 0.0
    %809 = vmatpush1.msra.mxu0 0.0
    %810 = vmatprep.subr.mxu0 0.0
    %811 = vmatpush1.msra.mxu0 0.0
    %812 = vmatprep.subr.mxu0 0.0
    %813 = vmatpush1.msra.mxu0 0.0
    %814 = vmatprep.subr.mxu0 0.0
    %815 = vmatpush1.msra.mxu0 0.0
    %816 = vmatprep.subr.mxu0 0.0
    %817 = vmatpush1.msra.mxu0 0.0
    %818 = vmatprep.subr.mxu0 0.0
    %819 = vmatpush1.msra.mxu0 0.0
    %820 = vmatprep.subr.mxu0 0.0
    %821 = vmatpush1.msra.mxu0 0.0
    %822 = vmatprep.subr.mxu0 0.0
    %823 = vmatpush1.msra.mxu0 0.0
    %824 = vmatprep.subr.mxu0 0.0
    %825 = vmatpush1.msra.mxu0 0.0
    %826 = vmatprep.subr.mxu0 0.0
    %827 = vmatpush1.msra.mxu0 0.0
    %828 = vmatprep.subr.mxu0 0.0
    %829 = vmatpush1.msra.mxu0 0.0
    %830 = vmatprep.subr.mxu0 0.0
    %831 = vmatpush1.msra.mxu0 0.0
    %832 = vmatprep.mubr.f32.mxu0 0.0
    %833 = vmatmul.mubr.f32.gmra.mrb[0].mxu0 %v696
    %v834 = vpop.f32.mrb[0].mxu0
    %v835 = vadd.f32 %v207, %v834
    %v836 = vpop.f32.mrb[0].mxu0
    %837 = vdwg.mxu0
    %v838 = vadd.f32 %v130, %v764
    %v839 = vxor.u32 %v838, 2147483648
    %v840 = vmul.f32 %v839, 1.442695
    %v841 = vpow.pop %v840
    %v842 = vadd.f32 %v841, 1.0
    %v843 = vrcp.pop %v842
    %v844 = vmul.f32 1.0, %v843
    %v845 = vadd.f32 %v131, %v766
    %v846 = vxor.u32 %v845, 2147483648
    %v847 = vmul.f32 %v846, 1.442695
    %v848 = vpow.pop %v847
    %v849 = vadd.f32 %v848, 1.0
    %v850 = vrcp.pop %v849
    %v851 = vmul.f32 1.0, %v850
    %v852 = vmul.f32 %v844, %v835
    %v853 = vadd.f32 %v132, %v852
    %v854 = vtanh.pop %v853
    %v855 = vsub.f32 1.0, %v851
    %v856 = vmul.f32 %v855, %v854
    %v857 = vmul.f32 %v851, %v696
    %v858 = vadd.f32 %v856, %v857
    %859 = vmatprep.subr.mxu0 %v146
    %860 = vmatpush1.msra.mxu0 %v145
    %861 = vmatprep.subr.mxu0 %v149
    %862 = vmatpush1.msra.mxu0 %v148
    %863 = vmatprep.subr.mxu0 %v152
    %864 = vmatpush1.msra.mxu0 %v151
    %865 = vmatprep.subr.mxu0 %v155
    %866 = vmatpush1.msra.mxu0 %v154
    %867 = vmatprep.subr.mxu0 %v158
    %868 = vmatpush1.msra.mxu0 %v157
    %869 = vmatprep.subr.mxu0 %v161
    %870 = vmatpush1.msra.mxu0 %v160
    %871 = vmatprep.subr.mxu0 %v164
    %872 = vmatpush1.msra.mxu0 %v163
    %873 = vmatprep.subr.mxu0 %v167
    %874 = vmatpush1.msra.mxu0 %v166
    %875 = vmatprep.subr.mxu0 %v170
    %876 = vmatpush1.msra.mxu0 %v169
    %877 = vmatprep.subr.mxu0 %v173
    %878 = vmatpush1.msra.mxu0 %v172
    %879 = vmatprep.subr.mxu0 %v176
    %880 = vmatpush1.msra.mxu0 %v175
    %881 = vmatprep.subr.mxu0 %v179
    %882 = vmatpush1.msra.mxu0 %v178
    %883 = vmatprep.subr.mxu0 %v182
    %884 = vmatpush1.msra.mxu0 %v181
    %885 = vmatprep.subr.mxu0 %v185
    %886 = vmatpush1.msra.mxu0 %v184
    %887 = vmatprep.subr.mxu0 %v188
    %888 = vmatpush1.msra.mxu0 %v187
    %889 = vmatprep.subr.mxu0 %v191
    %890 = vmatpush1.msra.mxu0 %v190
    %891 = vmatprep.subr.mxu0 0.0
    %892 = vmatpush1.msra.mxu0 0.0
    %893 = vmatprep.subr.mxu0 0.0
    %894 = vmatpush1.msra.mxu0 0.0
    %895 = vmatprep.subr.mxu0 0.0
    %896 = vmatpush1.msra.mxu0 0.0
    %897 = vmatprep.subr.mxu0 0.0
    %898 = vmatpush1.msra.mxu0 0.0
    %899 = vmatprep.subr.mxu0 0.0
    %900 = vmatpush1.msra.mxu0 0.0
    %901 = vmatprep.subr.mxu0 0.0
    %902 = vmatpush1.msra.mxu0 0.0
    %903 = vmatprep.subr.mxu0 0.0
    %904 = vmatpush1.msra.mxu0 0.0
    %905 = vmatprep.subr.mxu0 0.0
    %906 = vmatpush1.msra.mxu0 0.0
    %907 = vmatprep.subr.mxu0 0.0
    %908 = vmatpush1.msra.mxu0 0.0
    %909 = vmatprep.subr.mxu0 0.0
    %910 = vmatpush1.msra.mxu0 0.0
    %911 = vmatprep.subr.mxu0 0.0
    %912 = vmatpush1.msra.mxu0 0.0
    %913 = vmatprep.subr.mxu0 0.0
    %914 = vmatpush1.msra.mxu0 0.0
    %915 = vmatprep.subr.mxu0 0.0
    %916 = vmatpush1.msra.mxu0 0.0
    %917 = vmatprep.subr.mxu0 0.0
    %918 = vmatpush1.msra.mxu0 0.0
    %919 = vmatprep.subr.mxu0 0.0
    %920 = vmatpush1.msra.mxu0 0.0
    %921 = vmatprep.subr.mxu0 0.0
    %922 = vmatpush1.msra.mxu0 0.0
    %923 = vmatprep.mubr.f32.mxu0 0.0
    %924 = vmatmul.mubr.f32.gmra.mrb[0].mxu0 %v858
    %v925 = vpop.f32.mrb[0].mxu0
    %v926 = vadd.f32 %v199, %v925
    %v927 = vpop.f32.mrb[0].mxu0
    %v928 = vadd.f32 %v203, %v927
    %929 = vdwg.mxu0
    %930 = vmatprep.subr.mxu0 0.0
    %931 = vmatpush1.msra.mxu0 %v147
    %932 = vmatprep.subr.mxu0 0.0
    %933 = vmatpush1.msra.mxu0 %v150
    %934 = vmatprep.subr.mxu0 0.0
    %935 = vmatpush1.msra.mxu0 %v153
    %936 = vmatprep.subr.mxu0 0.0
    %937 = vmatpush1.msra.mxu0 %v156
    %938 = vmatprep.subr.mxu0 0.0
    %939 = vmatpush1.msra.mxu0 %v159
    %940 = vmatprep.subr.mxu0 0.0
    %941 = vmatpush1.msra.mxu0 %v162
    %942 = vmatprep.subr.mxu0 0.0
    %943 = vmatpush1.msra.mxu0 %v165
    %944 = vmatprep.subr.mxu0 0.0
    %945 = vmatpush1.msra.mxu0 %v168
    %946 = vmatprep.subr.mxu0 0.0
    %947 = vmatpush1.msra.mxu0 %v171
    %948 = vmatprep.subr.mxu0 0.0
    %949 = vmatpush1.msra.mxu0 %v174
    %950 = vmatprep.subr.mxu0 0.0
    %951 = vmatpush1.msra.mxu0 %v177
    %952 = vmatprep.subr.mxu0 0.0
    %953 = vmatpush1.msra.mxu0 %v180
    %954 = vmatprep.subr.mxu0 0.0
    %955 = vmatpush1.msra.mxu0 %v183
    %956 = vmatprep.subr.mxu0 0.0
    %957 = vmatpush1.msra.mxu0 %v186
    %958 = vmatprep.subr.mxu0 0.0
    %959 = vmatpush1.msra.mxu0 %v189
    %960 = vmatprep.subr.mxu0 0.0
    %961 = vmatpush1.msra.mxu0 %v192
    %962 = vmatprep.subr.mxu0 0.0
    %963 = vmatpush1.msra.mxu0 0.0
    %964 = vmatprep.subr.mxu0 0.0
    %965 = vmatpush1.msra.mxu0 0.0
    %966 = vmatprep.subr.mxu0 0.0
    %967 = vmatpush1.msra.mxu0 0.0
    %968 = vmatprep.subr.mxu0 0.0
    %969 = vmatpush1.msra.mxu0 0.0
    %970 = vmatprep.subr.mxu0 0.0
    %971 = vmatpush1.msra.mxu0 0.0
    %972 = vmatprep.subr.mxu0 0.0
    %973 = vmatpush1.msra.mxu0 0.0
    %974 = vmatprep.subr.mxu0 0.0
    %975 = vmatpush1.msra.mxu0 0.0
    %976 = vmatprep.subr.mxu0 0.0
    %977 = vmatpush1.msra.mxu0 0.0
    %978 = vmatprep.subr.mxu0 0.0
    %979 = vmatpush1.msra.mxu0 0.0
    %980 = vmatprep.subr.mxu0 0.0
    %981 = vmatpush1.msra.mxu0 0.0
    %982 = vmatprep.subr.mxu0 0.0
    %983 = vmatpush1.msra.mxu0 0.0
    %984 = vmatprep.subr.mxu0 0.0
    %985 = vmatpush1.msra.mxu0 0.0
    %986 = vmatprep.subr.mxu0 0.0
    %987 = vmatpush1.msra.mxu0 0.0
    %988 = vmatprep.subr.mxu0 0.0
    %989 = vmatpush1.msra.mxu0 0.0
    %990 = vmatprep.subr.mxu0 0.0
    %991 = vmatpush1.msra.mxu0 0.0
    %992 = vmatprep.subr.mxu0 0.0
    %993 = vmatpush1.msra.mxu0 0.0
    %994 = vmatprep.mubr.f32.mxu0 0.0
    %995 = vmatmul.mubr.f32.gmra.mrb[0].mxu0 %v858
    %v996 = vpop.f32.mrb[0].mxu0
    %v997 = vadd.f32 %v207, %v996
    %v998 = vpop.f32.mrb[0].mxu0
    %999 = vdwg.mxu0
    %v1000 = vadd.f32 %v133, %v926
    %v1001 = vxor.u32 %v1000, 2147483648
    %v1002 = vmul.f32 %v1001, 1.442695
    %v1003 = vpow.pop %v1002
    %v1004 = vadd.f32 %v1003, 1.0
    %v1005 = vrcp.pop %v1004
    %v1006 = vmul.f32 1.0, %v1005
    %v1007 = vadd.f32 %v134, %v928
    %v1008 = vxor.u32 %v1007, 2147483648
    %v1009 = vmul.f32 %v1008, 1.442695
    %v1010 = vpow.pop %v1009
    %v1011 = vadd.f32 %v1010, 1.0
    %v1012 = vrcp.pop %v1011
    %v1013 = vmul.f32 1.0, %v1012
    %v1014 = vmul.f32 %v1006, %v997
    %v1015 = vadd.f32 %v135, %v1014
    %v1016 = vtanh.pop %v1015
    %v1017 = vsub.f32 1.0, %v1013
    %v1018 = vmul.f32 %v1017, %v1016
    %v1019 = vmul.f32 %v1013, %v858
    %v1020 = vadd.f32 %v1018, %v1019
    %1021 = vmatprep.subr.mxu0 %v146
    %1022 = vmatpush1.msra.mxu0 %v145
    %1023 = vmatprep.subr.mxu0 %v149
    %1024 = vmatpush1.msra.mxu0 %v148
    %1025 = vmatprep.subr.mxu0 %v152
    %1026 = vmatpush1.msra.mxu0 %v151
    %1027 = vmatprep.subr.mxu0 %v155
    %1028 = vmatpush1.msra.mxu0 %v154
    %1029 = vmatprep.subr.mxu0 %v158
    %1030 = vmatpush1.msra.mxu0 %v157
    %1031 = vmatprep.subr.mxu0 %v161
    %1032 = vmatpush1.msra.mxu0 %v160
    %1033 = vmatprep.subr.mxu0 %v164
    %1034 = vmatpush1.msra.mxu0 %v163
    %1035 = vmatprep.subr.mxu0 %v167
    %1036 = vmatpush1.msra.mxu0 %v166
    %1037 = vmatprep.subr.mxu0 %v170
    %1038 = vmatpush1.msra.mxu0 %v169
    %1039 = vmatprep.subr.mxu0 %v173
    %1040 = vmatpush1.msra.mxu0 %v172
    %1041 = vmatprep.subr.mxu0 %v176
    %1042 = vmatpush1.msra.mxu0 %v175
    %1043 = vmatprep.subr.mxu0 %v179
    %1044 = vmatpush1.msra.mxu0 %v178
    %1045 = vmatprep.subr.mxu0 %v182
    %1046 = vmatpush1.msra.mxu0 %v181
    %1047 = vmatprep.subr.mxu0 %v185
    %1048 = vmatpush1.msra.mxu0 %v184
    %1049 = vmatprep.subr.mxu0 %v188
    %1050 = vmatpush1.msra.mxu0 %v187
    %1051 = vmatprep.subr.mxu0 %v191
    %1052 = vmatpush1.msra.mxu0 %v190
    %1053 = vmatprep.subr.mxu0 0.0
    %1054 = vmatpush1.msra.mxu0 0.0
    %1055 = vmatprep.subr.mxu0 0.0
    %1056 = vmatpush1.msra.mxu0 0.0
    %1057 = vmatprep.subr.mxu0 0.0
    %1058 = vmatpush1.msra.mxu0 0.0
    %1059 = vmatprep.subr.mxu0 0.0
    %1060 = vmatpush1.msra.mxu0 0.0
    %1061 = vmatprep.subr.mxu0 0.0
    %1062 = vmatpush1.msra.mxu0 0.0
    %1063 = vmatprep.subr.mxu0 0.0
    %1064 = vmatpush1.msra.mxu0 0.0
    %1065 = vmatprep.subr.mxu0 0.0
    %1066 = vmatpush1.msra.mxu0 0.0
    %1067 = vmatprep.subr.mxu0 0.0
    %1068 = vmatpush1.msra.mxu0 0.0
    %1069 = vmatprep.subr.mxu0 0.0
    %1070 = vmatpush1.msra.mxu0 0.0
    %1071 = vmatprep.subr.mxu0 0.0
    %1072 = vmatpush1.msra.mxu0 0.0
    %1073 = vmatprep.subr.mxu0 0.0
    %1074 = vmatpush1.msra.mxu0 0.0
    %1075 = vmatprep.subr.mxu0 0.0
    %1076 = vmatpush1.msra.mxu0 0.0
    %1077 = vmatprep.subr.mxu0 0.0
    %1078 = vmatpush1.msra.mxu0 0.0
    %1079 = vmatprep.subr.mxu0 0.0
    %1080 = vmatpush1.msra.mxu0 0.0
    %1081 = vmatprep.subr.mxu0 0.0
    %1082 = vmatpush1.msra.mxu0 0.0
    %1083 = vmatprep.subr.mxu0 0.0
    %1084 = vmatpush1.msra.mxu0 0.0
    %1085 = vmatprep.mubr.f32.mxu0 0.0
    %1086 = vmatmul.mubr.f32.gmra.mrb[0].mxu0 %v1020
    %v1087 = vpop.f32.mrb[0].mxu0
    %v1088 = vadd.f32 %v199, %v1087
    %v1089 = vpop.f32.mrb[0].mxu0
    %v1090 = vadd.f32 %v203, %v1089
    %1091 = vdwg.mxu0
    %1092 = vmatprep.subr.mxu0 0.0
    %1093 = vmatpush1.msra.mxu0 %v147
    %1094 = vmatprep.subr.mxu0 0.0
    %1095 = vmatpush1.msra.mxu0 %v150
    %1096 = vmatprep.subr.mxu0 0.0
    %1097 = vmatpush1.msra.mxu0 %v153
    %1098 = vmatprep.subr.mxu0 0.0
    %1099 = vmatpush1.msra.mxu0 %v156
    %1100 = vmatprep.subr.mxu0 0.0
    %1101 = vmatpush1.msra.mxu0 %v159
    %1102 = vmatprep.subr.mxu0 0.0
    %1103 = vmatpush1.msra.mxu0 %v162
    %1104 = vmatprep.subr.mxu0 0.0
    %1105 = vmatpush1.msra.mxu0 %v165
    %1106 = vmatprep.subr.mxu0 0.0
    %1107 = vmatpush1.msra.mxu0 %v168
    %1108 = vmatprep.subr.mxu0 0.0
    %1109 = vmatpush1.msra.mxu0 %v171
    %1110 = vmatprep.subr.mxu0 0.0
    %1111 = vmatpush1.msra.mxu0 %v174
    %1112 = vmatprep.subr.mxu0 0.0
    %1113 = vmatpush1.msra.mxu0 %v177
    %1114 = vmatprep.subr.mxu0 0.0
    %1115 = vmatpush1.msra.mxu0 %v180
    %1116 = vmatprep.subr.mxu0 0.0
    %1117 = vmatpush1.msra.mxu0 %v183
    %1118 = vmatprep.subr.mxu0 0.0
    %1119 = vmatpush1.msra.mxu0 %v186
    %1120 = vmatprep.subr.mxu0 0.0
    %1121 = vmatpush1.msra.mxu0 %v189
    %1122 = vmatprep.subr.mxu0 0.0
    %1123 = vmatpush1.msra.mxu0 %v192
    %1124 = vmatprep.subr.mxu0 0.0
    %1125 = vmatpush1.msra.mxu0 0.0
    %1126 = vmatprep.subr.mxu0 0.0
    %1127 = vmatpush1.msra.mxu0 0.0
    %1128 = vmatprep.subr.mxu0 0.0
    %1129 = vmatpush1.msra.mxu0 0.0
    %1130 = vmatprep.subr.mxu0 0.0
    %1131 = vmatpush1.msra.mxu0 0.0
    %1132 = vmatprep.subr.mxu0 0.0
    %1133 = vmatpush1.msra.mxu0 0.0
    %1134 = vmatprep.subr.mxu0 0.0
    %1135 = vmatpush1.msra.mxu0 0.0
    %1136 = vmatprep.subr.mxu0 0.0
    %1137 = vmatpush1.msra.mxu0 0.0
    %1138 = vmatprep.subr.mxu0 0.0
    %1139 = vmatpush1.msra.mxu0 0.0
    %1140 = vmatprep.subr.mxu0 0.0
    %1141 = vmatpush1.msra.mxu0 0.0
    %1142 = vmatprep.subr.mxu0 0.0
    %1143 = vmatpush1.msra.mxu0 0.0
    %1144 = vmatprep.subr.mxu0 0.0
    %1145 = vmatpush1.msra.mxu0 0.0
    %1146 = vmatprep.subr.mxu0 0.0
    %1147 = vmatpush1.msra.mxu0 0.0
    %1148 = vmatprep.subr.mxu0 0.0
    %1149 = vmatpush1.msra.mxu0 0.0
    %1150 = vmatprep.subr.mxu0 0.0
    %1151 = vmatpush1.msra.mxu0 0.0
    %1152 = vmatprep.subr.mxu0 0.0
    %1153 = vmatpush1.msra.mxu0 0.0
    %1154 = vmatprep.subr.mxu0 0.0
    %1155 = vmatpush1.msra.mxu0 0.0
    %1156 = vmatprep.mubr.f32.mxu0 0.0
    %1157 = vmatmul.mubr.f32.gmra.mrb[0].mxu0 %v1020
    %v1158 = vpop.f32.mrb[0].mxu0
    %v1159 = vadd.f32 %v207, %v1158
    %v1160 = vpop.f32.mrb[0].mxu0
    %1161 = vdwg.mxu0
    %v1162 = vadd.f32 %v136, %v1088
    %v1163 = vxor.u32 %v1162, 2147483648
    %v1164 = vmul.f32 %v1163, 1.442695
    %v1165 = vpow.pop %v1164
    %v1166 = vadd.f32 %v1165, 1.0
    %v1167 = vrcp.pop %v1166
    %v1168 = vmul.f32 1.0, %v1167
    %v1169 = vadd.f32 %v137, %v1090
    %v1170 = vxor.u32 %v1169, 2147483648
    %v1171 = vmul.f32 %v1170, 1.442695
    %v1172 = vpow.pop %v1171
    %v1173 = vadd.f32 %v1172, 1.0
    %v1174 = vrcp.pop %v1173
    %v1175 = vmul.f32 1.0, %v1174
    %v1176 = vmul.f32 %v1168, %v1159
    %v1177 = vadd.f32 %v138, %v1176
    %v1178 = vtanh.pop %v1177
    %v1179 = vsub.f32 1.0, %v1175
    %v1180 = vmul.f32 %v1179, %v1178
    %v1181 = vmul.f32 %v1175, %v1020
    %v1182 = vadd.f32 %v1180, %v1181
    %1183 = vmatprep.subr.mxu0 %v146
    %1184 = vmatpush1.msra.mxu0 %v145
    %1185 = vmatprep.subr.mxu0 %v149
    %1186 = vmatpush1.msra.mxu0 %v148
    %1187 = vmatprep.subr.mxu0 %v152
    %1188 = vmatpush1.msra.mxu0 %v151
    %1189 = vmatprep.subr.mxu0 %v155
    %1190 = vmatpush1.msra.mxu0 %v154
    %1191 = vmatprep.subr.mxu0 %v158
    %1192 = vmatpush1.msra.mxu0 %v157
    %1193 = vmatprep.subr.mxu0 %v161
    %1194 = vmatpush1.msra.mxu0 %v160
    %1195 = vmatprep.subr.mxu0 %v164
    %1196 = vmatpush1.msra.mxu0 %v163
    %1197 = vmatprep.subr.mxu0 %v167
    %1198 = vmatpush1.msra.mxu0 %v166
    %1199 = vmatprep.subr.mxu0 %v170
    %1200 = vmatpush1.msra.mxu0 %v169
    %1201 = vmatprep.subr.mxu0 %v173
    %1202 = vmatpush1.msra.mxu0 %v172
    %1203 = vmatprep.subr.mxu0 %v176
    %1204 = vmatpush1.msra.mxu0 %v175
    %1205 = vmatprep.subr.mxu0 %v179
    %1206 = vmatpush1.msra.mxu0 %v178
    %1207 = vmatprep.subr.mxu0 %v182
    %1208 = vmatpush1.msra.mxu0 %v181
    %1209 = vmatprep.subr.mxu0 %v185
    %1210 = vmatpush1.msra.mxu0 %v184
    %1211 = vmatprep.subr.mxu0 %v188
    %1212 = vmatpush1.msra.mxu0 %v187
    %1213 = vmatprep.subr.mxu0 %v191
    %1214 = vmatpush1.msra.mxu0 %v190
    %1215 = vmatprep.subr.mxu0 0.0
    %1216 = vmatpush1.msra.mxu0 0.0
    %1217 = vmatprep.subr.mxu0 0.0
    %1218 = vmatpush1.msra.mxu0 0.0
    %1219 = vmatprep.subr.mxu0 0.0
    %1220 = vmatpush1.msra.mxu0 0.0
    %1221 = vmatprep.subr.mxu0 0.0
    %1222 = vmatpush1.msra.mxu0 0.0
    %1223 = vmatprep.subr.mxu0 0.0
    %1224 = vmatpush1.msra.mxu0 0.0
    %1225 = vmatprep.subr.mxu0 0.0
    %1226 = vmatpush1.msra.mxu0 0.0
    %1227 = vmatprep.subr.mxu0 0.0
    %1228 = vmatpush1.msra.mxu0 0.0
    %1229 = vmatprep.subr.mxu0 0.0
    %1230 = vmatpush1.msra.mxu0 0.0
    %1231 = vmatprep.subr.mxu0 0.0
    %1232 = vmatpush1.msra.mxu0 0.0
    %1233 = vmatprep.subr.mxu0 0.0
    %1234 = vmatpush1.msra.mxu0 0.0
    %1235 = vmatprep.subr.mxu0 0.0
    %1236 = vmatpush1.msra.mxu0 0.0
    %1237 = vmatprep.subr.mxu0 0.0
    %1238 = vmatpush1.msra.mxu0 0.0
    %1239 = vmatprep.subr.mxu0 0.0
    %1240 = vmatpush1.msra.mxu0 0.0
    %1241 = vmatprep.subr.mxu0 0.0
    %1242 = vmatpush1.msra.mxu0 0.0
    %1243 = vmatprep.subr.mxu0 0.0
    %1244 = vmatpush1.msra.mxu0 0.0
    %1245 = vmatprep.subr.mxu0 0.0
    %1246 = vmatpush1.msra.mxu0 0.0
    %1247 = vmatprep.mubr.f32.mxu0 0.0
    %1248 = vmatmul.mubr.f32.gmra.mrb[0].mxu0 %v1182
    %v1249 = vpop.f32.mrb[0].mxu0
    %v1250 = vadd.f32 %v199, %v1249
    %v1251 = vpop.f32.mrb[0].mxu0
    %v1252 = vadd.f32 %v203, %v1251
    %1253 = vdwg.mxu0
    %1254 = vmatprep.subr.mxu0 0.0
    %1255 = vmatpush1.msra.mxu0 %v147
    %1256 = vmatprep.subr.mxu0 0.0
    %1257 = vmatpush1.msra.mxu0 %v150
    %1258 = vmatprep.subr.mxu0 0.0
    %1259 = vmatpush1.msra.mxu0 %v153
    %1260 = vmatprep.subr.mxu0 0.0
    %1261 = vmatpush1.msra.mxu0 %v156
    %1262 = vmatprep.subr.mxu0 0.0
    %1263 = vmatpush1.msra.mxu0 %v159
    %1264 = vmatprep.subr.mxu0 0.0
    %1265 = vmatpush1.msra.mxu0 %v162
    %1266 = vmatprep.subr.mxu0 0.0
    %1267 = vmatpush1.msra.mxu0 %v165
    %1268 = vmatprep.subr.mxu0 0.0
    %1269 = vmatpush1.msra.mxu0 %v168
    %1270 = vmatprep.subr.mxu0 0.0
    %1271 = vmatpush1.msra.mxu0 %v171
    %1272 = vmatprep.subr.mxu0 0.0
    %1273 = vmatpush1.msra.mxu0 %v174
    %1274 = vmatprep.subr.mxu0 0.0
    %1275 = vmatpush1.msra.mxu0 %v177
    %1276 = vmatprep.subr.mxu0 0.0
    %1277 = vmatpush1.msra.mxu0 %v180
    %1278 = vmatprep.subr.mxu0 0.0
    %1279 = vmatpush1.msra.mxu0 %v183
    %1280 = vmatprep.subr.mxu0 0.0
    %1281 = vmatpush1.msra.mxu0 %v186
    %1282 = vmatprep.subr.mxu0 0.0
    %1283 = vmatpush1.msra.mxu0 %v189
    %1284 = vmatprep.subr.mxu0 0.0
    %1285 = vmatpush1.msra.mxu0 %v192
    %1286 = vmatprep.subr.mxu0 0.0
    %1287 = vmatpush1.msra.mxu0 0.0
    %1288 = vmatprep.subr.mxu0 0.0
    %1289 = vmatpush1.msra.mxu0 0.0
    %1290 = vmatprep.subr.mxu0 0.0
    %1291 = vmatpush1.msra.mxu0 0.0
    %1292 = vmatprep.subr.mxu0 0.0
    %1293 = vmatpush1.msra.mxu0 0.0
    %1294 = vmatprep.subr.mxu0 0.0
    %1295 = vmatpush1.msra.mxu0 0.0
    %1296 = vmatprep.subr.mxu0 0.0
    %1297 = vmatpush1.msra.mxu0 0.0
    %1298 = vmatprep.subr.mxu0 0.0
    %1299 = vmatpush1.msra.mxu0 0.0
    %1300 = vmatprep.subr.mxu0 0.0
    %1301 = vmatpush1.msra.mxu0 0.0
    %1302 = vmatprep.subr.mxu0 0.0
    %1303 = vmatpush1.msra.mxu0 0.0
    %1304 = vmatprep.subr.mxu0 0.0
    %1305 = vmatpush1.msra.mxu0 0.0
    %1306 = vmatprep.subr.mxu0 0.0
    %1307 = vmatpush1.msra.mxu0 0.0
    %1308 = vmatprep.subr.mxu0 0.0
    %1309 = vmatpush1.msra.mxu0 0.0
    %1310 = vmatprep.subr.mxu0 0.0
    %1311 = vmatpush1.msra.mxu0 0.0
    %1312 = vmatprep.subr.mxu0 0.0
    %1313 = vmatpush1.msra.mxu0 0.0
    %1314 = vmatprep.subr.mxu0 0.0
    %1315 = vmatpush1.msra.mxu0 0.0
    %1316 = vmatprep.subr.mxu0 0.0
    %1317 = vmatpush1.msra.mxu0 0.0
    %1318 = vmatprep.mubr.f32.mxu0 0.0
    %1319 = vmatmul.mubr.f32.gmra.mrb[0].mxu0 %v1182
    %v1320 = vpop.f32.mrb[0].mxu0
    %v1321 = vadd.f32 %v207, %v1320
    %v1322 = vpop.f32.mrb[0].mxu0
    %1323 = vdwg.mxu0
    %v1324 = vadd.f32 %v139, %v1250
    %v1325 = vxor.u32 %v1324, 2147483648
    %v1326 = vmul.f32 %v1325, 1.442695
    %v1327 = vpow.pop %v1326
    %v1328 = vadd.f32 %v1327, 1.0
    %v1329 = vrcp.pop %v1328
    %v1330 = vmul.f32 1.0, %v1329
    %v1331 = vadd.f32 %v140, %v1252
    %v1332 = vxor.u32 %v1331, 2147483648
    %v1333 = vmul.f32 %v1332, 1.442695
    %v1334 = vpow.pop %v1333
    %v1335 = vadd.f32 %v1334, 1.0
    %v1336 = vrcp.pop %v1335
    %v1337 = vmul.f32 1.0, %v1336
    %v1338 = vmul.f32 %v1330, %v1321
    %v1339 = vadd.f32 %v141, %v1338
    %v1340 = vtanh.pop %v1339
    %v1341 = vsub.f32 1.0, %v1337
    %v1342 = vmul.f32 %v1341, %v1340
    %v1343 = vmul.f32 %v1337, %v1182
    %v1344 = vadd.f32 %v1342, %v1343
    %1345 = vmatprep.subr.mxu0 %v146
    %1346 = vmatpush1.msra.mxu0 %v145
    %1347 = vmatprep.subr.mxu0 %v149
    %1348 = vmatpush1.msra.mxu0 %v148
    %1349 = vmatprep.subr.mxu0 %v152
    %1350 = vmatpush1.msra.mxu0 %v151
    %1351 = vmatprep.subr.mxu0 %v155
    %1352 = vmatpush1.msra.mxu0 %v154
    %1353 = vmatprep.subr.mxu0 %v158
    %1354 = vmatpush1.msra.mxu0 %v157
    %1355 = vmatprep.subr.mxu0 %v161
    %1356 = vmatpush1.msra.mxu0 %v160
    %1357 = vmatprep.subr.mxu0 %v164
    %1358 = vmatpush1.msra.mxu0 %v163
    %1359 = vmatprep.subr.mxu0 %v167
    %1360 = vmatpush1.msra.mxu0 %v166
    %1361 = vmatprep.subr.mxu0 %v170
    %1362 = vmatpush1.msra.mxu0 %v169
    %1363 = vmatprep.subr.mxu0 %v173
    %1364 = vmatpush1.msra.mxu0 %v172
    %1365 = vmatprep.subr.mxu0 %v176
    %1366 = vmatpush1.msra.mxu0 %v175
    %1367 = vmatprep.subr.mxu0 %v179
    %1368 = vmatpush1.msra.mxu0 %v178
    %1369 = vmatprep.subr.mxu0 %v182
    %1370 = vmatpush1.msra.mxu0 %v181
    %1371 = vmatprep.subr.mxu0 %v185
    %1372 = vmatpush1.msra.mxu0 %v184
    %1373 = vmatprep.subr.mxu0 %v188
    %1374 = vmatpush1.msra.mxu0 %v187
    %1375 = vmatprep.subr.mxu0 %v191
    %1376 = vmatpush1.msra.mxu0 %v190
    %1377 = vmatprep.subr.mxu0 0.0
    %1378 = vmatpush1.msra.mxu0 0.0
    %1379 = vmatprep.subr.mxu0 0.0
    %1380 = vmatpush1.msra.mxu0 0.0
    %1381 = vmatprep.subr.mxu0 0.0
    %1382 = vmatpush1.msra.mxu0 0.0
    %1383 = vmatprep.subr.mxu0 0.0
    %1384 = vmatpush1.msra.mxu0 0.0
    %1385 = vmatprep.subr.mxu0 0.0
    %1386 = vmatpush1.msra.mxu0 0.0
    %1387 = vmatprep.subr.mxu0 0.0
    %1388 = vmatpush1.msra.mxu0 0.0
    %1389 = vmatprep.subr.mxu0 0.0
    %1390 = vmatpush1.msra.mxu0 0.0
    %1391 = vmatprep.subr.mxu0 0.0
    %1392 = vmatpush1.msra.mxu0 0.0
    %1393 = vmatprep.subr.mxu0 0.0
    %1394 = vmatpush1.msra.mxu0 0.0
    %1395 = vmatprep.subr.mxu0 0.0
    %1396 = vmatpush1.msra.mxu0 0.0
    %1397 = vmatprep.subr.mxu0 0.0
    %1398 = vmatpush1.msra.mxu0 0.0
    %1399 = vmatprep.subr.mxu0 0.0
    %1400 = vmatpush1.msra.mxu0 0.0
    %1401 = vmatprep.subr.mxu0 0.0
    %1402 = vmatpush1.msra.mxu0 0.0
    %1403 = vmatprep.subr.mxu0 0.0
    %1404 = vmatpush1.msra.mxu0 0.0
    %1405 = vmatprep.subr.mxu0 0.0
    %1406 = vmatpush1.msra.mxu0 0.0
    %1407 = vmatprep.subr.mxu0 0.0
    %1408 = vmatpush1.msra.mxu0 0.0
    %1409 = vmatprep.mubr.f32.mxu0 0.0
    %1410 = vmatmul.mubr.f32.gmra.mrb[0].mxu0 %v1344
    %v1411 = vpop.f32.mrb[0].mxu0
    %v1412 = vadd.f32 %v199, %v1411
    %v1413 = vpop.f32.mrb[0].mxu0
    %v1414 = vadd.f32 %v203, %v1413
    %1415 = vdwg.mxu0
    %1416 = vmatprep.subr.mxu0 0.0
    %1417 = vmatpush1.msra.mxu0 %v147
    %1418 = vmatprep.subr.mxu0 0.0
    %1419 = vmatpush1.msra.mxu0 %v150
    %1420 = vmatprep.subr.mxu0 0.0
    %1421 = vmatpush1.msra.mxu0 %v153
    %1422 = vmatprep.subr.mxu0 0.0
    %1423 = vmatpush1.msra.mxu0 %v156
    %1424 = vmatprep.subr.mxu0 0.0
    %1425 = vmatpush1.msra.mxu0 %v159
    %1426 = vmatprep.subr.mxu0 0.0
    %1427 = vmatpush1.msra.mxu0 %v162
    %1428 = vmatprep.subr.mxu0 0.0
    %1429 = vmatpush1.msra.mxu0 %v165
    %1430 = vmatprep.subr.mxu0 0.0
    %1431 = vmatpush1.msra.mxu0 %v168
    %1432 = vmatprep.subr.mxu0 0.0
    %1433 = vmatpush1.msra.mxu0 %v171
    %1434 = vmatprep.subr.mxu0 0.0
    %1435 = vmatpush1.msra.mxu0 %v174
    %1436 = vmatprep.subr.mxu0 0.0
    %1437 = vmatpush1.msra.mxu0 %v177
    %1438 = vmatprep.subr.mxu0 0.0
    %1439 = vmatpush1.msra.mxu0 %v180
    %1440 = vmatprep.subr.mxu0 0.0
    %1441 = vmatpush1.msra.mxu0 %v183
    %1442 = vmatprep.subr.mxu0 0.0
    %1443 = vmatpush1.msra.mxu0 %v186
    %1444 = vmatprep.subr.mxu0 0.0
    %1445 = vmatpush1.msra.mxu0 %v189
    %1446 = vmatprep.subr.mxu0 0.0
    %1447 = vmatpush1.msra.mxu0 %v192
    %1448 = vmatprep.subr.mxu0 0.0
    %1449 = vmatpush1.msra.mxu0 0.0
    %1450 = vmatprep.subr.mxu0 0.0
    %1451 = vmatpush1.msra.mxu0 0.0
    %1452 = vmatprep.subr.mxu0 0.0
    %1453 = vmatpush1.msra.mxu0 0.0
    %1454 = vmatprep.subr.mxu0 0.0
    %1455 = vmatpush1.msra.mxu0 0.0
    %1456 = vmatprep.subr.mxu0 0.0
    %1457 = vmatpush1.msra.mxu0 0.0
    %1458 = vmatprep.subr.mxu0 0.0
    %1459 = vmatpush1.msra.mxu0 0.0
    %1460 = vmatprep.subr.mxu0 0.0
    %1461 = vmatpush1.msra.mxu0 0.0
    %1462 = vmatprep.subr.mxu0 0.0
    %1463 = vmatpush1.msra.mxu0 0.0
    %1464 = vmatprep.subr.mxu0 0.0
    %1465 = vmatpush1.msra.mxu0 0.0
    %1466 = vmatprep.subr.mxu0 0.0
    %1467 = vmatpush1.msra.mxu0 0.0
    %1468 = vmatprep.subr.mxu0 0.0
    %1469 = vmatpush1.msra.mxu0 0.0
    %1470 = vmatprep.subr.mxu0 0.0
    %1471 = vmatpush1.msra.mxu0 0.0
    %1472 = vmatprep.subr.mxu0 0.0
    %1473 = vmatpush1.msra.mxu0 0.0
    %1474 = vmatprep.subr.mxu0 0.0
    %1475 = vmatpush1.msra.mxu0 0.0
    %1476 = vmatprep.subr.mxu0 0.0
    %1477 = vmatpush1.msra.mxu0 0.0
    %1478 = vmatprep.subr.mxu0 0.0
    %1479 = vmatpush1.msra.mxu0 0.0
    %1480 = vmatprep.mubr.f32.mxu0 0.0
    %1481 = vmatmul.mubr.f32.gmra.mrb[0].mxu0 %v1344
    %v1482 = vpop.f32.mrb[0].mxu0
    %v1483 = vadd.f32 %v207, %v1482
    %v1484 = vpop.f32.mrb[0].mxu0
    %1485 = vdwg.mxu0
    %v1486 = vadd.f32 %v142, %v1412
    %v1487 = vxor.u32 %v1486, 2147483648
    %v1488 = vmul.f32 %v1487, 1.442695
    %v1489 = vpow.pop %v1488
    %v1490 = vadd.f32 %v1489, 1.0
    %v1491 = vrcp.pop %v1490
    %v1492 = vmul.f32 1.0, %v1491
    %v1493 = vadd.f32 %v143, %v1414
    %v1494 = vxor.u32 %v1493, 2147483648
    %v1495 = vmul.f32 %v1494, 1.442695
    %v1496 = vpow.pop %v1495
    %v1497 = vadd.f32 %v1496, 1.0
    %v1498 = vrcp.pop %v1497
    %v1499 = vmul.f32 1.0, %v1498
    %v1500 = vmul.f32 %v1492, %v1483
    %v1501 = vadd.f32 %v144, %v1500
    %v1502 = vtanh.pop %v1501
    %v1503 = vsub.f32 1.0, %v1499
    %v1504 = vmul.f32 %v1503, %v1502
    %v1505 = vmul.f32 %v1499, %v1344
    %v1506 = vadd.f32 %v1504, %v1505
    %1507 = vst [vmem:[#allocation14] sm:$0xff] %v1506
    %v1508 = vld [vmem:[#allocation10] sm:$0xff]
    %v1509 = vld [vmem:[#allocation10 + $0x8] sm:$0xff]
    %v1510 = vld [vmem:[#allocation10 + $0x10] sm:$0xff]
    %v1511 = vld [vmem:[#allocation10 + $0x18] sm:$0xff]
    %v1512 = vld [vmem:[#allocation10 + $0x20] sm:$0xff]
    %v1513 = vld [vmem:[#allocation10 + $0x28] sm:$0xff]
    %v1514 = vld [vmem:[#allocation10 + $0x30] sm:$0xff]
    %v1515 = vld [vmem:[#allocation10 + $0x38] sm:$0xff]
    %v1516 = vld [vmem:[#allocation10 + $0x40] sm:$0xff]
    %v1517 = vld [vmem:[#allocation10 + $0x48] sm:$0xff]
    %v1518 = vld [vmem:[#allocation10 + $0x50] sm:$0xff]
    %v1519 = vld [vmem:[#allocation10 + $0x58] sm:$0xff]
    %v1520 = vld [vmem:[#allocation10 + $0x60] sm:$0xff]
    %v1521 = vld [vmem:[#allocation10 + $0x68] sm:$0xff]
    %v1522 = vld [vmem:[#allocation10 + $0x70] sm:$0xff]
    %v1523 = vld [vmem:[#allocation10 + $0x78] sm:$0xff]
    %v1524 = vld [vmem:[#allocation10 + $0x80] sm:$0xff]
    %v1525 = vld [vmem:[#allocation10 + $0x88] sm:$0xff]
    %v1526 = vld [vmem:[#allocation10 + $0x90] sm:$0xff]
    %v1527 = vld [vmem:[#allocation10 + $0x98] sm:$0xff]
    %v1528 = vld [vmem:[#allocation10 + $0xa0] sm:$0xff]
    %v1529 = vld [vmem:[#allocation10 + $0xa8] sm:$0xff]
    %v1530 = vld [vmem:[#allocation10 + $0xb0] sm:$0xff]
    %v1531 = vld [vmem:[#allocation10 + $0xb8] sm:$0xff]
    %v1532 = vld [vmem:[#allocation10 + $0xc0] sm:$0xff]
    %v1533 = vld [vmem:[#allocation10 + $0xc8] sm:$0xff]
    %v1534 = vld [vmem:[#allocation10 + $0xd0] sm:$0xff]
    %v1535 = vld [vmem:[#allocation10 + $0xd8] sm:$0xff]
    %v1536 = vld [vmem:[#allocation10 + $0xe0] sm:$0xff]
    %v1537 = vld [vmem:[#allocation10 + $0xe8] sm:$0xff]
    %v1538 = vld [vmem:[#allocation10 + $0xf0] sm:$0xff]
    %v1539 = vld [vmem:[#allocation10 + $0xf8] sm:$0xff]
    %v1540 = vld [vmem:[#allocation10 + $0x100] sm:$0xff]
    %v1541 = vld [vmem:[#allocation10 + $0x108] sm:$0xff]
    %v1542 = vld [vmem:[#allocation10 + $0x110] sm:$0xff]
    %v1543 = vld [vmem:[#allocation10 + $0x118] sm:$0xff]
    %v1544 = vld [vmem:[#allocation10 + $0x120] sm:$0xff]
    %v1545 = vld [vmem:[#allocation10 + $0x128] sm:$0xff]
    %v1546 = vld [vmem:[#allocation10 + $0x130] sm:$0xff]
    %v1547 = vld [vmem:[#allocation10 + $0x138] sm:$0xff]
    %v1548 = vld [vmem:[#allocation10 + $0x140] sm:$0xff]
    %v1549 = vld [vmem:[#allocation10 + $0x148] sm:$0xff]
    %v1550 = vld [vmem:[#allocation10 + $0x150] sm:$0xff]
    %v1551 = vld [vmem:[#allocation10 + $0x158] sm:$0xff]
    %v1552 = vld [vmem:[#allocation10 + $0x160] sm:$0xff]
    %v1553 = vld [vmem:[#allocation10 + $0x168] sm:$0xff]
    %v1554 = vld [vmem:[#allocation10 + $0x170] sm:$0xff]
    %v1555 = vld [vmem:[#allocation10 + $0x178] sm:$0xff]
    %v1556 = vld [vmem:[%s7] sm:$0x7]
    %v1558 = vlaneseq
    %v1559 = vshrl.u32 %v1558, 7
    %v1560 = vsub.s32 0, %v1559
    %v1561 = vrot.slane %v1556, %v1560
    %v1562 = vlaneseq
    %v1563 = vshrl.u32 %v1562, 7
    %v1564 = vsub.s32 1, %v1563
    %v1565 = vrot.slane %v1556, %v1564
    %v1566 = vlaneseq
    %v1567 = vshrl.u32 %v1566, 7
    %v1568 = vsub.s32 2, %v1567
    %v1569 = vrot.slane %v1556, %v1568
    %1573 = vmatprep.subr.mxu0 %v1509
    %1574 = vmatpush1.msra.mxu0 %v1508
    %1575 = vmatprep.subr.mxu0 %v1512
    %1576 = vmatpush1.msra.mxu0 %v1511
    %1577 = vmatprep.subr.mxu0 %v1515
    %1578 = vmatpush1.msra.mxu0 %v1514
    %1579 = vmatprep.subr.mxu0 %v1518
    %1580 = vmatpush1.msra.mxu0 %v1517
    %1581 = vmatprep.subr.mxu0 %v1521
    %1582 = vmatpush1.msra.mxu0 %v1520
    %1583 = vmatprep.subr.mxu0 %v1524
    %1584 = vmatpush1.msra.mxu0 %v1523
    %1585 = vmatprep.subr.mxu0 %v1527
    %1586 = vmatpush1.msra.mxu0 %v1526
    %1587 = vmatprep.subr.mxu0 %v1530
    %1588 = vmatpush1.msra.mxu0 %v1529
    %1589 = vmatprep.subr.mxu0 %v1533
    %1590 = vmatpush1.msra.mxu0 %v1532
    %1591 = vmatprep.subr.mxu0 %v1536
    %1592 = vmatpush1.msra.mxu0 %v1535
    %1593 = vmatprep.subr.mxu0 %v1539
    %1594 = vmatpush1.msra.mxu0 %v1538
    %1595 = vmatprep.subr.mxu0 %v1542
    %1596 = vmatpush1.msra.mxu0 %v1541
    %1597 = vmatprep.subr.mxu0 %v1545
    %1598 = vmatpush1.msra.mxu0 %v1544
    %1599 = vmatprep.subr.mxu0 %v1548
    %1600 = vmatpush1.msra.mxu0 %v1547
    %1601 = vmatprep.subr.mxu0 %v1551
    %1602 = vmatpush1.msra.mxu0 %v1550
    %1603 = vmatprep.subr.mxu0 %v1554
    %1604 = vmatpush1.msra.mxu0 %v1553
    %1605 = vmatprep.subr.mxu0 0.0
    %1606 = vmatpush1.msra.mxu0 0.0
    %1607 = vmatprep.subr.mxu0 0.0
    %1608 = vmatpush1.msra.mxu0 0.0
    %1609 = vmatprep.subr.mxu0 0.0
    %1610 = vmatpush1.msra.mxu0 0.0
    %1611 = vmatprep.subr.mxu0 0.0
    %1612 = vmatpush1.msra.mxu0 0.0
    %1613 = vmatprep.subr.mxu0 0.0
    %1614 = vmatpush1.msra.mxu0 0.0
    %1615 = vmatprep.subr.mxu0 0.0
    %1616 = vmatpush1.msra.mxu0 0.0
    %1617 = vmatprep.subr.mxu0 0.0
    %1618 = vmatpush1.msra.mxu0 0.0
    %1619 = vmatprep.subr.mxu0 0.0
    %1620 = vmatpush1.msra.mxu0 0.0
    %1621 = vmatprep.subr.mxu0 0.0
    %1622 = vmatpush1.msra.mxu0 0.0
    %1623 = vmatprep.subr.mxu0 0.0
    %1624 = vmatpush1.msra.mxu0 0.0
    %1625 = vmatprep.subr.mxu0 0.0
    %1626 = vmatpush1.msra.mxu0 0.0
    %1627 = vmatprep.subr.mxu0 0.0
    %1628 = vmatpush1.msra.mxu0 0.0
    %1629 = vmatprep.subr.mxu0 0.0
    %1630 = vmatpush1.msra.mxu0 0.0
    %1631 = vmatprep.subr.mxu0 0.0
    %1632 = vmatpush1.msra.mxu0 0.0
    %1633 = vmatprep.subr.mxu0 0.0
    %1634 = vmatpush1.msra.mxu0 0.0
    %1635 = vmatprep.subr.mxu0 0.0
    %1636 = vmatpush1.msra.mxu0 0.0
    %1637 = vmatprep.mubr.f32.mxu0 0.0
    %1638 = vmatmul.mubr.f32.gmra.mrb[0].mxu0 %v372
    %v1639 = vpop.f32.mrb[0].mxu0
    %v1640 = vadd.f32 %v1561, %v1639
    %v1641 = vpop.f32.mrb[0].mxu0
    %v1642 = vadd.f32 %v1565, %v1641
    %1643 = vmatprep.mubr.f32.mxu0 0.0
    %1644 = vmatmul.mubr.f32.gmra.mrb[0].mxu0 %v534
    %v1645 = vpop.f32.mrb[0].mxu0
    %v1646 = vadd.f32 %v1561, %v1645
    %v1647 = vpop.f32.mrb[0].mxu0
    %v1648 = vadd.f32 %v1565, %v1647
    %1649 = vmatprep.mubr.f32.mxu0 0.0
    %1650 = vmatmul.mubr.f32.gmra.mrb[0].mxu0 %v696
    %v1651 = vpop.f32.mrb[0].mxu0
    %v1652 = vadd.f32 %v1561, %v1651
    %v1653 = vpop.f32.mrb[0].mxu0
    %v1654 = vadd.f32 %v1565, %v1653
    %1655 = vmatprep.mubr.f32.mxu0 0.0
    %1656 = vmatmul.mubr.f32.gmra.mrb[0].mxu0 %v858
    %v1657 = vpop.f32.mrb[0].mxu0
    %v1658 = vadd.f32 %v1561, %v1657
    %v1659 = vpop.f32.mrb[0].mxu0
    %v1660 = vadd.f32 %v1565, %v1659
    %1661 = vmatprep.mubr.f32.mxu0 0.0
    %1662 = vmatmul.mubr.f32.gmra.mrb[0].mxu0 %v1020
    %v1663 = vpop.f32.mrb[0].mxu0
    %v1664 = vadd.f32 %v1561, %v1663
    %v1665 = vpop.f32.mrb[0].mxu0
    %v1666 = vadd.f32 %v1565, %v1665
    %1667 = vmatprep.mubr.f32.mxu0 0.0
    %1668 = vmatmul.mubr.f32.gmra.mrb[0].mxu0 %v1182
    %v1669 = vpop.f32.mrb[0].mxu0
    %v1670 = vadd.f32 %v1561, %v1669
    %v1671 = vpop.f32.mrb[0].mxu0
    %v1672 = vadd.f32 %v1565, %v1671
    %1673 = vmatprep.mubr.f32.mxu0 0.0
    %1674 = vmatmul.mubr.f32.gmra.mrb[0].mxu0 %v1344
    %v1675 = vpop.f32.mrb[0].mxu0
    %v1676 = vadd.f32 %v1561, %v1675
    %v1677 = vpop.f32.mrb[0].mxu0
    %v1678 = vadd.f32 %v1565, %v1677
    %1679 = vmatprep.mubr.f32.mxu0 0.0
    %1680 = vmatmul.mubr.f32.gmra.mrb[0].mxu0 %v1506
    %v1681 = vpop.f32.mrb[0].mxu0
    %v1682 = vadd.f32 %v1561, %v1681
    %v1683 = vpop.f32.mrb[0].mxu0
    %v1684 = vadd.f32 %v1565, %v1683
    %1685 = vdwg.mxu0
    %1686 = vmatprep.subr.mxu0 0.0
    %1687 = vmatpush1.msra.mxu0 %v1510
    %1688 = vmatprep.subr.mxu0 0.0
    %1689 = vmatpush1.msra.mxu0 %v1513
    %1690 = vmatprep.subr.mxu0 0.0
    %1691 = vmatpush1.msra.mxu0 %v1516
    %1692 = vmatprep.subr.mxu0 0.0
    %1693 = vmatpush1.msra.mxu0 %v1519
    %1694 = vmatprep.subr.mxu0 0.0
    %1695 = vmatpush1.msra.mxu0 %v1522
    %1696 = vmatprep.subr.mxu0 0.0
    %1697 = vmatpush1.msra.mxu0 %v1525
    %1698 = vmatprep.subr.mxu0 0.0
    %1699 = vmatpush1.msra.mxu0 %v1528
    %1700 = vmatprep.subr.mxu0 0.0
    %1701 = vmatpush1.msra.mxu0 %v1531
    %1702 = vmatprep.subr.mxu0 0.0
    %1703 = vmatpush1.msra.mxu0 %v1534
    %1704 = vmatprep.subr.mxu0 0.0
    %1705 = vmatpush1.msra.mxu0 %v1537
    %1706 = vmatprep.subr.mxu0 0.0
    %1707 = vmatpush1.msra.mxu0 %v1540
    %1708 = vmatprep.subr.mxu0 0.0
    %1709 = vmatpush1.msra.mxu0 %v1543
    %1710 = vmatprep.subr.mxu0 0.0
    %1711 = vmatpush1.msra.mxu0 %v1546
    %1712 = vmatprep.subr.mxu0 0.0
    %1713 = vmatpush1.msra.mxu0 %v1549
    %1714 = vmatprep.subr.mxu0 0.0
    %1715 = vmatpush1.msra.mxu0 %v1552
    %1716 = vmatprep.subr.mxu0 0.0
    %1717 = vmatpush1.msra.mxu0 %v1555
    %1718 = vmatprep.subr.mxu0 0.0
    %1719 = vmatpush1.msra.mxu0 0.0
    %1720 = vmatprep.subr.mxu0 0.0
    %1721 = vmatpush1.msra.mxu0 0.0
    %1722 = vmatprep.subr.mxu0 0.0
    %1723 = vmatpush1.msra.mxu0 0.0
    %1724 = vmatprep.subr.mxu0 0.0
    %1725 = vmatpush1.msra.mxu0 0.0
    %1726 = vmatprep.subr.mxu0 0.0
    %1727 = vmatpush1.msra.mxu0 0.0
    %1728 = vmatprep.subr.mxu0 0.0
    %1729 = vmatpush1.msra.mxu0 0.0
    %1730 = vmatprep.subr.mxu0 0.0
    %1731 = vmatpush1.msra.mxu0 0.0
    %1732 = vmatprep.subr.mxu0 0.0
    %1733 = vmatpush1.msra.mxu0 0.0
    %1734 = vmatprep.subr.mxu0 0.0
    %1735 = vmatpush1.msra.mxu0 0.0
    %1736 = vmatprep.subr.mxu0 0.0
    %1737 = vmatpush1.msra.mxu0 0.0
    %1738 = vmatprep.subr.mxu0 0.0
    %1739 = vmatpush1.msra.mxu0 0.0
    %1740 = vmatprep.subr.mxu0 0.0
    %1741 = vmatpush1.msra.mxu0 0.0
    %1742 = vmatprep.subr.mxu0 0.0
    %1743 = vmatpush1.msra.mxu0 0.0
    %1744 = vmatprep.subr.mxu0 0.0
    %1745 = vmatpush1.msra.mxu0 0.0
    %1746 = vmatprep.subr.mxu0 0.0
    %1747 = vmatpush1.msra.mxu0 0.0
    %1748 = vmatprep.subr.mxu0 0.0
    %1749 = vmatpush1.msra.mxu0 0.0
    %1750 = vmatprep.mubr.f32.mxu0 0.0
    %1751 = vmatmul.mubr.f32.gmra.mrb[0].mxu0 %v372
    %v1752 = vpop.f32.mrb[0].mxu0
    %v1753 = vadd.f32 %v1569, %v1752
    %v1754 = vpop.f32.mrb[0].mxu0
    %1755 = vmatprep.mubr.f32.mxu0 0.0
    %1756 = vmatmul.mubr.f32.gmra.mrb[0].mxu0 %v534
    %v1757 = vpop.f32.mrb[0].mxu0
    %v1758 = vadd.f32 %v1569, %v1757
    %v1759 = vpop.f32.mrb[0].mxu0
    %1760 = vmatprep.mubr.f32.mxu0 0.0
    %1761 = vmatmul.mubr.f32.gmra.mrb[0].mxu0 %v696
    %v1762 = vpop.f32.mrb[0].mxu0
    %v1763 = vadd.f32 %v1569, %v1762
    %v1764 = vpop.f32.mrb[0].mxu0
    %1765 = vmatprep.mubr.f32.mxu0 0.0
    %1766 = vmatmul.mubr.f32.gmra.mrb[0].mxu0 %v858
    %v1767 = vpop.f32.mrb[0].mxu0
    %v1768 = vadd.f32 %v1569, %v1767
    %v1769 = vpop.f32.mrb[0].mxu0
    %1770 = vmatprep.mubr.f32.mxu0 0.0
    %1771 = vmatmul.mubr.f32.gmra.mrb[0].mxu0 %v1020
    %v1772 = vpop.f32.mrb[0].mxu0
    %v1773 = vadd.f32 %v1569, %v1772
    %v1774 = vpop.f32.mrb[0].mxu0
    %1775 = vmatprep.mubr.f32.mxu0 0.0
    %1776 = vmatmul.mubr.f32.gmra.mrb[0].mxu0 %v1182
    %v1777 = vpop.f32.mrb[0].mxu0
    %v1778 = vadd.f32 %v1569, %v1777
    %v1779 = vpop.f32.mrb[0].mxu0
    %1780 = vmatprep.mubr.f32.mxu0 0.0
    %1781 = vmatmul.mubr.f32.gmra.mrb[0].mxu0 %v1344
    %v1782 = vpop.f32.mrb[0].mxu0
    %v1783 = vadd.f32 %v1569, %v1782
    %v1784 = vpop.f32.mrb[0].mxu0
    %1785 = vmatprep.mubr.f32.mxu0 0.0
    %1786 = vmatmul.mubr.f32.gmra.mrb[0].mxu0 %v1506
    %v1787 = vpop.f32.mrb[0].mxu0
    %v1788 = vadd.f32 %v1569, %v1787
    %v1789 = vpop.f32.mrb[0].mxu0
    %1790 = vdwg.mxu0
    %v1791 = vld [vmem:[#allocation8] sm:$0xff]
    %v1792 = vld [vmem:[#allocation8 + $0x8] sm:$0xff]
    %v1793 = vld [vmem:[#allocation8 + $0x10] sm:$0xff]
    %v1794 = vld [vmem:[#allocation8 + $0x18] sm:$0xff]
    %v1795 = vld [vmem:[#allocation8 + $0x20] sm:$0xff]
    %v1796 = vld [vmem:[#allocation8 + $0x28] sm:$0xff]
    %v1797 = vld [vmem:[#allocation8 + $0x30] sm:$0xff]
    %v1798 = vld [vmem:[#allocation8 + $0x38] sm:$0xff]
    %v1799 = vld [vmem:[#allocation8 + $0x40] sm:$0xff]
    %v1800 = vld [vmem:[#allocation8 + $0x48] sm:$0xff]
    %v1801 = vld [vmem:[#allocation8 + $0x50] sm:$0xff]
    %v1802 = vld [vmem:[#allocation8 + $0x58] sm:$0xff]
    %v1803 = vld [vmem:[#allocation8 + $0x60] sm:$0xff]
    %v1804 = vld [vmem:[#allocation8 + $0x68] sm:$0xff]
    %v1805 = vld [vmem:[#allocation8 + $0x70] sm:$0xff]
    %v1806 = vld [vmem:[#allocation8 + $0x78] sm:$0xff]
    %v1807 = vld [vmem:[#allocation8 + $0x80] sm:$0xff]
    %v1808 = vld [vmem:[#allocation8 + $0x88] sm:$0xff]
    %v1809 = vld [vmem:[#allocation8 + $0x90] sm:$0xff]
    %v1810 = vld [vmem:[#allocation8 + $0x98] sm:$0xff]
    %v1811 = vld [vmem:[#allocation8 + $0xa0] sm:$0xff]
    %v1812 = vld [vmem:[#allocation8 + $0xa8] sm:$0xff]
    %v1813 = vld [vmem:[#allocation8 + $0xb0] sm:$0xff]
    %v1814 = vld [vmem:[#allocation8 + $0xb8] sm:$0xff]
    %v1815 = vld [vmem:[#allocation8 + $0xc0] sm:$0xff]
    %v1816 = vld [vmem:[#allocation8 + $0xc8] sm:$0xff]
    %v1817 = vld [vmem:[#allocation8 + $0xd0] sm:$0xff]
    %v1818 = vld [vmem:[#allocation8 + $0xd8] sm:$0xff]
    %v1819 = vld [vmem:[#allocation8 + $0xe0] sm:$0xff]
    %v1820 = vld [vmem:[#allocation8 + $0xe8] sm:$0xff]
    %v1821 = vld [vmem:[#allocation8 + $0xf0] sm:$0xff]
    %v1822 = vld [vmem:[#allocation8 + $0xf8] sm:$0xff]
    %v1823 = vld [vmem:[#allocation8 + $0x100] sm:$0xff]
    %v1824 = vld [vmem:[#allocation8 + $0x108] sm:$0xff]
    %v1825 = vld [vmem:[#allocation8 + $0x110] sm:$0xff]
    %v1826 = vld [vmem:[#allocation8 + $0x118] sm:$0xff]
    %v1827 = vld [vmem:[#allocation8 + $0x120] sm:$0xff]
    %v1828 = vld [vmem:[#allocation8 + $0x128] sm:$0xff]
    %v1829 = vld [vmem:[#allocation8 + $0x130] sm:$0xff]
    %v1830 = vld [vmem:[#allocation8 + $0x138] sm:$0xff]
    %v1831 = vld [vmem:[#allocation8 + $0x140] sm:$0xff]
    %v1832 = vld [vmem:[#allocation8 + $0x148] sm:$0xff]
    %v1833 = vld [vmem:[#allocation8 + $0x150] sm:$0xff]
    %v1834 = vld [vmem:[#allocation8 + $0x158] sm:$0xff]
    %v1835 = vld [vmem:[#allocation8 + $0x160] sm:$0xff]
    %v1836 = vld [vmem:[#allocation8 + $0x168] sm:$0xff]
    %v1837 = vld [vmem:[#allocation8 + $0x170] sm:$0xff]
    %v1838 = vld [vmem:[#allocation8 + $0x178] sm:$0xff]
    %v1839 = vld [vmem:[%s5] sm:$0x7]
    %s1840 = scalar_lea.vmem [#allocation5], 8
    %v1841 = vld [vmem:[%s1840] sm:$0xff]
    %v1843 = vlaneseq
    %v1844 = vshrl.u32 %v1843, 7
    %v1845 = vsub.s32 0, %v1844
    %v1846 = vrot.slane %v1839, %v1845
    %v1847 = vlaneseq
    %v1848 = vshrl.u32 %v1847, 7
    %v1849 = vsub.s32 1, %v1848
    %v1850 = vrot.slane %v1839, %v1849
    %v1851 = vlaneseq
    %v1852 = vshrl.u32 %v1851, 7
    %v1853 = vsub.s32 2, %v1852
    %v1854 = vrot.slane %v1839, %v1853
    %1858 = vmatprep.subr.mxu0 %v1792
    %1859 = vmatpush1.msra.mxu0 %v1791
    %1860 = vmatprep.subr.mxu0 %v1795
    %1861 = vmatpush1.msra.mxu0 %v1794
    %1862 = vmatprep.subr.mxu0 %v1798
    %1863 = vmatpush1.msra.mxu0 %v1797
    %1864 = vmatprep.subr.mxu0 %v1801
    %1865 = vmatpush1.msra.mxu0 %v1800
    %1866 = vmatprep.subr.mxu0 %v1804
    %1867 = vmatpush1.msra.mxu0 %v1803
    %1868 = vmatprep.subr.mxu0 %v1807
    %1869 = vmatpush1.msra.mxu0 %v1806
    %1870 = vmatprep.subr.mxu0 %v1810
    %1871 = vmatpush1.msra.mxu0 %v1809
    %1872 = vmatprep.subr.mxu0 %v1813
    %1873 = vmatpush1.msra.mxu0 %v1812
    %1874 = vmatprep.subr.mxu0 %v1816
    %1875 = vmatpush1.msra.mxu0 %v1815
    %1876 = vmatprep.subr.mxu0 %v1819
    %1877 = vmatpush1.msra.mxu0 %v1818
    %1878 = vmatprep.subr.mxu0 %v1822
    %1879 = vmatpush1.msra.mxu0 %v1821
    %1880 = vmatprep.subr.mxu0 %v1825
    %1881 = vmatpush1.msra.mxu0 %v1824
    %1882 = vmatprep.subr.mxu0 %v1828
    %1883 = vmatpush1.msra.mxu0 %v1827
    %1884 = vmatprep.subr.mxu0 %v1831
    %1885 = vmatpush1.msra.mxu0 %v1830
    %1886 = vmatprep.subr.mxu0 %v1834
    %1887 = vmatpush1.msra.mxu0 %v1833
    %1888 = vmatprep.subr.mxu0 %v1837
    %1889 = vmatpush1.msra.mxu0 %v1836
    %1890 = vmatprep.subr.mxu0 0.0
    %1891 = vmatpush1.msra.mxu0 0.0
    %1892 = vmatprep.subr.mxu0 0.0
    %1893 = vmatpush1.msra.mxu0 0.0
    %1894 = vmatprep.subr.mxu0 0.0
    %1895 = vmatpush1.msra.mxu0 0.0
    %1896 = vmatprep.subr.mxu0 0.0
    %1897 = vmatpush1.msra.mxu0 0.0
    %1898 = vmatprep.subr.mxu0 0.0
    %1899 = vmatpush1.msra.mxu0 0.0
    %1900 = vmatprep.subr.mxu0 0.0
    %1901 = vmatpush1.msra.mxu0 0.0
    %1902 = vmatprep.subr.mxu0 0.0
    %1903 = vmatpush1.msra.mxu0 0.0
    %1904 = vmatprep.subr.mxu0 0.0
    %1905 = vmatpush1.msra.mxu0 0.0
    %1906 = vmatprep.subr.mxu0 0.0
    %1907 = vmatpush1.msra.mxu0 0.0
    %1908 = vmatprep.subr.mxu0 0.0
    %1909 = vmatpush1.msra.mxu0 0.0
    %1910 = vmatprep.subr.mxu0 0.0
    %1911 = vmatpush1.msra.mxu0 0.0
    %1912 = vmatprep.subr.mxu0 0.0
    %1913 = vmatpush1.msra.mxu0 0.0
    %1914 = vmatprep.subr.mxu0 0.0
    %1915 = vmatpush1.msra.mxu0 0.0
    %1916 = vmatprep.subr.mxu0 0.0
    %1917 = vmatpush1.msra.mxu0 0.0
    %1918 = vmatprep.subr.mxu0 0.0
    %1919 = vmatpush1.msra.mxu0 0.0
    %1920 = vmatprep.subr.mxu0 0.0
    %1921 = vmatpush1.msra.mxu0 0.0
    %1922 = vmatprep.mubr.f32.mxu0 0.0
    %1923 = vmatmul.mubr.f32.gmra.mrb[0].mxu0 %v1841
    %v1924 = vpop.f32.mrb[0].mxu0
    %v1925 = vadd.f32 %v1846, %v1924
    %v1926 = vpop.f32.mrb[0].mxu0
    %v1927 = vadd.f32 %v1850, %v1926
    %1928 = vdwg.mxu0
    %1929 = vmatprep.subr.mxu0 0.0
    %1930 = vmatpush1.msra.mxu0 %v1793
    %1931 = vmatprep.subr.mxu0 0.0
    %1932 = vmatpush1.msra.mxu0 %v1796
    %1933 = vmatprep.subr.mxu0 0.0
    %1934 = vmatpush1.msra.mxu0 %v1799
    %1935 = vmatprep.subr.mxu0 0.0
    %1936 = vmatpush1.msra.mxu0 %v1802
    %1937 = vmatprep.subr.mxu0 0.0
    %1938 = vmatpush1.msra.mxu0 %v1805
    %1939 = vmatprep.subr.mxu0 0.0
    %1940 = vmatpush1.msra.mxu0 %v1808
    %1941 = vmatprep.subr.mxu0 0.0
    %1942 = vmatpush1.msra.mxu0 %v1811
    %1943 = vmatprep.subr.mxu0 0.0
    %1944 = vmatpush1.msra.mxu0 %v1814
    %1945 = vmatprep.subr.mxu0 0.0
    %1946 = vmatpush1.msra.mxu0 %v1817
    %1947 = vmatprep.subr.mxu0 0.0
    %1948 = vmatpush1.msra.mxu0 %v1820
    %1949 = vmatprep.subr.mxu0 0.0
    %1950 = vmatpush1.msra.mxu0 %v1823
    %1951 = vmatprep.subr.mxu0 0.0
    %1952 = vmatpush1.msra.mxu0 %v1826
    %1953 = vmatprep.subr.mxu0 0.0
    %1954 = vmatpush1.msra.mxu0 %v1829
    %1955 = vmatprep.subr.mxu0 0.0
    %1956 = vmatpush1.msra.mxu0 %v1832
    %1957 = vmatprep.subr.mxu0 0.0
    %1958 = vmatpush1.msra.mxu0 %v1835
    %1959 = vmatprep.subr.mxu0 0.0
    %1960 = vmatpush1.msra.mxu0 %v1838
    %1961 = vmatprep.subr.mxu0 0.0
    %1962 = vmatpush1.msra.mxu0 0.0
    %1963 = vmatprep.subr.mxu0 0.0
    %1964 = vmatpush1.msra.mxu0 0.0
    %1965 = vmatprep.subr.mxu0 0.0
    %1966 = vmatpush1.msra.mxu0 0.0
    %1967 = vmatprep.subr.mxu0 0.0
    %1968 = vmatpush1.msra.mxu0 0.0
    %1969 = vmatprep.subr.mxu0 0.0
    %1970 = vmatpush1.msra.mxu0 0.0
    %1971 = vmatprep.subr.mxu0 0.0
    %1972 = vmatpush1.msra.mxu0 0.0
    %1973 = vmatprep.subr.mxu0 0.0
    %1974 = vmatpush1.msra.mxu0 0.0
    %1975 = vmatprep.subr.mxu0 0.0
    %1976 = vmatpush1.msra.mxu0 0.0
    %1977 = vmatprep.subr.mxu0 0.0
    %1978 = vmatpush1.msra.mxu0 0.0
    %1979 = vmatprep.subr.mxu0 0.0
    %1980 = vmatpush1.msra.mxu0 0.0
    %1981 = vmatprep.subr.mxu0 0.0
    %1982 = vmatpush1.msra.mxu0 0.0
    %1983 = vmatprep.subr.mxu0 0.0
    %1984 = vmatpush1.msra.mxu0 0.0
    %1985 = vmatprep.subr.mxu0 0.0
    %1986 = vmatpush1.msra.mxu0 0.0
    %1987 = vmatprep.subr.mxu0 0.0
    %1988 = vmatpush1.msra.mxu0 0.0
    %1989 = vmatprep.subr.mxu0 0.0
    %1990 = vmatpush1.msra.mxu0 0.0
    %1991 = vmatprep.subr.mxu0 0.0
    %1992 = vmatpush1.msra.mxu0 0.0
    %1993 = vmatprep.mubr.f32.mxu0 0.0
    %1994 = vmatmul.mubr.f32.gmra.mrb[0].mxu0 %v1841
    %v1995 = vpop.f32.mrb[0].mxu0
    %v1996 = vadd.f32 %v1854, %v1995
    %v1997 = vpop.f32.mrb[0].mxu0
    %1998 = vdwg.mxu0
    %v1999 = vadd.f32 %v1640, %v1925
    %v2000 = vxor.u32 %v1999, 2147483648
    %v2001 = vmul.f32 %v2000, 1.442695
    %v2002 = vpow.pop %v2001
    %v2003 = vadd.f32 %v2002, 1.0
    %v2004 = vrcp.pop %v2003
    %v2005 = vmul.f32 1.0, %v2004
    %v2006 = vadd.f32 %v1642, %v1927
    %v2007 = vxor.u32 %v2006, 2147483648
    %v2008 = vmul.f32 %v2007, 1.442695
    %v2009 = vpow.pop %v2008
    %v2010 = vadd.f32 %v2009, 1.0
    %v2011 = vrcp.pop %v2010
    %v2012 = vmul.f32 1.0, %v2011
    %v2013 = vmul.f32 %v2005, %v1996
    %v2014 = vadd.f32 %v1753, %v2013
    %v2015 = vtanh.pop %v2014
    %v2016 = vsub.f32 1.0, %v2012
    %v2017 = vmul.f32 %v2016, %v2015
    %v2018 = vmul.f32 %v2012, %v1841
    %v2019 = vadd.f32 %v2017, %v2018
    %2020 = vmatprep.subr.mxu0 %v1792
    %2021 = vmatpush1.msra.mxu0 %v1791
    %2022 = vmatprep.subr.mxu0 %v1795
    %2023 = vmatpush1.msra.mxu0 %v1794
    %2024 = vmatprep.subr.mxu0 %v1798
    %2025 = vmatpush1.msra.mxu0 %v1797
    %2026 = vmatprep.subr.mxu0 %v1801
    %2027 = vmatpush1.msra.mxu0 %v1800
    %2028 = vmatprep.subr.mxu0 %v1804
    %2029 = vmatpush1.msra.mxu0 %v1803
    %2030 = vmatprep.subr.mxu0 %v1807
    %2031 = vmatpush1.msra.mxu0 %v1806
    %2032 = vmatprep.subr.mxu0 %v1810
    %2033 = vmatpush1.msra.mxu0 %v1809
    %2034 = vmatprep.subr.mxu0 %v1813
    %2035 = vmatpush1.msra.mxu0 %v1812
    %2036 = vmatprep.subr.mxu0 %v1816
    %2037 = vmatpush1.msra.mxu0 %v1815
    %2038 = vmatprep.subr.mxu0 %v1819
    %2039 = vmatpush1.msra.mxu0 %v1818
    %2040 = vmatprep.subr.mxu0 %v1822
    %2041 = vmatpush1.msra.mxu0 %v1821
    %2042 = vmatprep.subr.mxu0 %v1825
    %2043 = vmatpush1.msra.mxu0 %v1824
    %2044 = vmatprep.subr.mxu0 %v1828
    %2045 = vmatpush1.msra.mxu0 %v1827
    %2046 = vmatprep.subr.mxu0 %v1831
    %2047 = vmatpush1.msra.mxu0 %v1830
    %2048 = vmatprep.subr.mxu0 %v1834
    %2049 = vmatpush1.msra.mxu0 %v1833
    %2050 = vmatprep.subr.mxu0 %v1837
    %2051 = vmatpush1.msra.mxu0 %v1836
    %2052 = vmatprep.subr.mxu0 0.0
    %2053 = vmatpush1.msra.mxu0 0.0
    %2054 = vmatprep.subr.mxu0 0.0
    %2055 = vmatpush1.msra.mxu0 0.0
    %2056 = vmatprep.subr.mxu0 0.0
    %2057 = vmatpush1.msra.mxu0 0.0
    %2058 = vmatprep.subr.mxu0 0.0
    %2059 = vmatpush1.msra.mxu0 0.0
    %2060 = vmatprep.subr.mxu0 0.0
    %2061 = vmatpush1.msra.mxu0 0.0
    %2062 = vmatprep.subr.mxu0 0.0
    %2063 = vmatpush1.msra.mxu0 0.0
    %2064 = vmatprep.subr.mxu0 0.0
    %2065 = vmatpush1.msra.mxu0 0.0
    %2066 = vmatprep.subr.mxu0 0.0
    %2067 = vmatpush1.msra.mxu0 0.0
    %2068 = vmatprep.subr.mxu0 0.0
    %2069 = vmatpush1.msra.mxu0 0.0
    %2070 = vmatprep.subr.mxu0 0.0
    %2071 = vmatpush1.msra.mxu0 0.0
    %2072 = vmatprep.subr.mxu0 0.0
    %2073 = vmatpush1.msra.mxu0 0.0
    %2074 = vmatprep.subr.mxu0 0.0
    %2075 = vmatpush1.msra.mxu0 0.0
    %2076 = vmatprep.subr.mxu0 0.0
    %2077 = vmatpush1.msra.mxu0 0.0
    %2078 = vmatprep.subr.mxu0 0.0
    %2079 = vmatpush1.msra.mxu0 0.0
    %2080 = vmatprep.subr.mxu0 0.0
    %2081 = vmatpush1.msra.mxu0 0.0
    %2082 = vmatprep.subr.mxu0 0.0
    %2083 = vmatpush1.msra.mxu0 0.0
    %2084 = vmatprep.mubr.f32.mxu0 0.0
    %2085 = vmatmul.mubr.f32.gmra.mrb[0].mxu0 %v2019
    %v2086 = vpop.f32.mrb[0].mxu0
    %v2087 = vadd.f32 %v1846, %v2086
    %v2088 = vpop.f32.mrb[0].mxu0
    %v2089 = vadd.f32 %v1850, %v2088
    %2090 = vdwg.mxu0
    %2091 = vmatprep.subr.mxu0 0.0
    %2092 = vmatpush1.msra.mxu0 %v1793
    %2093 = vmatprep.subr.mxu0 0.0
    %2094 = vmatpush1.msra.mxu0 %v1796
    %2095 = vmatprep.subr.mxu0 0.0
    %2096 = vmatpush1.msra.mxu0 %v1799
    %2097 = vmatprep.subr.mxu0 0.0
    %2098 = vmatpush1.msra.mxu0 %v1802
    %2099 = vmatprep.subr.mxu0 0.0
    %2100 = vmatpush1.msra.mxu0 %v1805
    %2101 = vmatprep.subr.mxu0 0.0
    %2102 = vmatpush1.msra.mxu0 %v1808
    %2103 = vmatprep.subr.mxu0 0.0
    %2104 = vmatpush1.msra.mxu0 %v1811
    %2105 = vmatprep.subr.mxu0 0.0
    %2106 = vmatpush1.msra.mxu0 %v1814
    %2107 = vmatprep.subr.mxu0 0.0
    %2108 = vmatpush1.msra.mxu0 %v1817
    %2109 = vmatprep.subr.mxu0 0.0
    %2110 = vmatpush1.msra.mxu0 %v1820
    %2111 = vmatprep.subr.mxu0 0.0
    %2112 = vmatpush1.msra.mxu0 %v1823
    %2113 = vmatprep.subr.mxu0 0.0
    %2114 = vmatpush1.msra.mxu0 %v1826
    %2115 = vmatprep.subr.mxu0 0.0
    %2116 = vmatpush1.msra.mxu0 %v1829
    %2117 = vmatprep.subr.mxu0 0.0
    %2118 = vmatpush1.msra.mxu0 %v1832
    %2119 = vmatprep.subr.mxu0 0.0
    %2120 = vmatpush1.msra.mxu0 %v1835
    %2121 = vmatprep.subr.mxu0 0.0
    %2122 = vmatpush1.msra.mxu0 %v1838
    %2123 = vmatprep.subr.mxu0 0.0
    %2124 = vmatpush1.msra.mxu0 0.0
    %2125 = vmatprep.subr.mxu0 0.0
    %2126 = vmatpush1.msra.mxu0 0.0
    %2127 = vmatprep.subr.mxu0 0.0
    %2128 = vmatpush1.msra.mxu0 0.0
    %2129 = vmatprep.subr.mxu0 0.0
    %2130 = vmatpush1.msra.mxu0 0.0
    %2131 = vmatprep.subr.mxu0 0.0
    %2132 = vmatpush1.msra.mxu0 0.0
    %2133 = vmatprep.subr.mxu0 0.0
    %2134 = vmatpush1.msra.mxu0 0.0
    %2135 = vmatprep.subr.mxu0 0.0
    %2136 = vmatpush1.msra.mxu0 0.0
    %2137 = vmatprep.subr.mxu0 0.0
    %2138 = vmatpush1.msra.mxu0 0.0
    %2139 = vmatprep.subr.mxu0 0.0
    %2140 = vmatpush1.msra.mxu0 0.0
    %2141 = vmatprep.subr.mxu0 0.0
    %2142 = vmatpush1.msra.mxu0 0.0
    %2143 = vmatprep.subr.mxu0 0.0
    %2144 = vmatpush1.msra.mxu0 0.0
    %2145 = vmatprep.subr.mxu0 0.0
    %2146 = vmatpush1.msra.mxu0 0.0
    %2147 = vmatprep.subr.mxu0 0.0
    %2148 = vmatpush1.msra.mxu0 0.0
    %2149 = vmatprep.subr.mxu0 0.0
    %2150 = vmatpush1.msra.mxu0 0.0
    %2151 = vmatprep.subr.mxu0 0.0
    %2152 = vmatpush1.msra.mxu0 0.0
    %2153 = vmatprep.subr.mxu0 0.0
    %2154 = vmatpush1.msra.mxu0 0.0
    %2155 = vmatprep.mubr.f32.mxu0 0.0
    %2156 = vmatmul.mubr.f32.gmra.mrb[0].mxu0 %v2019
    %v2157 = vpop.f32.mrb[0].mxu0
    %v2158 = vadd.f32 %v1854, %v2157
    %v2159 = vpop.f32.mrb[0].mxu0
    %2160 = vdwg.mxu0
    %v2161 = vadd.f32 %v1646, %v2087
    %v2162 = vxor.u32 %v2161, 2147483648
    %v2163 = vmul.f32 %v2162, 1.442695
    %v2164 = vpow.pop %v2163
    %v2165 = vadd.f32 %v2164, 1.0
    %v2166 = vrcp.pop %v2165
    %v2167 = vmul.f32 1.0, %v2166
    %v2168 = vadd.f32 %v1648, %v2089
    %v2169 = vxor.u32 %v2168, 2147483648
    %v2170 = vmul.f32 %v2169, 1.442695
    %v2171 = vpow.pop %v2170
    %v2172 = vadd.f32 %v2171, 1.0
    %v2173 = vrcp.pop %v2172
    %v2174 = vmul.f32 1.0, %v2173
    %v2175 = vmul.f32 %v2167, %v2158
    %v2176 = vadd.f32 %v1758, %v2175
    %v2177 = vtanh.pop %v2176
    %v2178 = vsub.f32 1.0, %v2174
    %v2179 = vmul.f32 %v2178, %v2177
    %v2180 = vmul.f32 %v2174, %v2019
    %v2181 = vadd.f32 %v2179, %v2180
    %2182 = vmatprep.subr.mxu0 %v1792
    %2183 = vmatpush1.msra.mxu0 %v1791
    %2184 = vmatprep.subr.mxu0 %v1795
    %2185 = vmatpush1.msra.mxu0 %v1794
    %2186 = vmatprep.subr.mxu0 %v1798
    %2187 = vmatpush1.msra.mxu0 %v1797
    %2188 = vmatprep.subr.mxu0 %v1801
    %2189 = vmatpush1.msra.mxu0 %v1800
    %2190 = vmatprep.subr.mxu0 %v1804
    %2191 = vmatpush1.msra.mxu0 %v1803
    %2192 = vmatprep.subr.mxu0 %v1807
    %2193 = vmatpush1.msra.mxu0 %v1806
    %2194 = vmatprep.subr.mxu0 %v1810
    %2195 = vmatpush1.msra.mxu0 %v1809
    %2196 = vmatprep.subr.mxu0 %v1813
    %2197 = vmatpush1.msra.mxu0 %v1812
    %2198 = vmatprep.subr.mxu0 %v1816
    %2199 = vmatpush1.msra.mxu0 %v1815
    %2200 = vmatprep.subr.mxu0 %v1819
    %2201 = vmatpush1.msra.mxu0 %v1818
    %2202 = vmatprep.subr.mxu0 %v1822
    %2203 = vmatpush1.msra.mxu0 %v1821
    %2204 = vmatprep.subr.mxu0 %v1825
    %2205 = vmatpush1.msra.mxu0 %v1824
    %2206 = vmatprep.subr.mxu0 %v1828
    %2207 = vmatpush1.msra.mxu0 %v1827
    %2208 = vmatprep.subr.mxu0 %v1831
    %2209 = vmatpush1.msra.mxu0 %v1830
    %2210 = vmatprep.subr.mxu0 %v1834
    %2211 = vmatpush1.msra.mxu0 %v1833
    %2212 = vmatprep.subr.mxu0 %v1837
    %2213 = vmatpush1.msra.mxu0 %v1836
    %2214 = vmatprep.subr.mxu0 0.0
    %2215 = vmatpush1.msra.mxu0 0.0
    %2216 = vmatprep.subr.mxu0 0.0
    %2217 = vmatpush1.msra.mxu0 0.0
    %2218 = vmatprep.subr.mxu0 0.0
    %2219 = vmatpush1.msra.mxu0 0.0
    %2220 = vmatprep.subr.mxu0 0.0
    %2221 = vmatpush1.msra.mxu0 0.0
    %2222 = vmatprep.subr.mxu0 0.0
    %2223 = vmatpush1.msra.mxu0 0.0
    %2224 = vmatprep.subr.mxu0 0.0
    %2225 = vmatpush1.msra.mxu0 0.0
    %2226 = vmatprep.subr.mxu0 0.0
    %2227 = vmatpush1.msra.mxu0 0.0
    %2228 = vmatprep.subr.mxu0 0.0
    %2229 = vmatpush1.msra.mxu0 0.0
    %2230 = vmatprep.subr.mxu0 0.0
    %2231 = vmatpush1.msra.mxu0 0.0
    %2232 = vmatprep.subr.mxu0 0.0
    %2233 = vmatpush1.msra.mxu0 0.0
    %2234 = vmatprep.subr.mxu0 0.0
    %2235 = vmatpush1.msra.mxu0 0.0
    %2236 = vmatprep.subr.mxu0 0.0
    %2237 = vmatpush1.msra.mxu0 0.0
    %2238 = vmatprep.subr.mxu0 0.0
    %2239 = vmatpush1.msra.mxu0 0.0
    %2240 = vmatprep.subr.mxu0 0.0
    %2241 = vmatpush1.msra.mxu0 0.0
    %2242 = vmatprep.subr.mxu0 0.0
    %2243 = vmatpush1.msra.mxu0 0.0
    %2244 = vmatprep.subr.mxu0 0.0
    %2245 = vmatpush1.msra.mxu0 0.0
    %2246 = vmatprep.mubr.f32.mxu0 0.0
    %2247 = vmatmul.mubr.f32.gmra.mrb[0].mxu0 %v2181
    %v2248 = vpop.f32.mrb[0].mxu0
    %v2249 = vadd.f32 %v1846, %v2248
    %v2250 = vpop.f32.mrb[0].mxu0
    %v2251 = vadd.f32 %v1850, %v2250
    %2252 = vdwg.mxu0
    %2253 = vmatprep.subr.mxu0 0.0
    %2254 = vmatpush1.msra.mxu0 %v1793
    %2255 = vmatprep.subr.mxu0 0.0
    %2256 = vmatpush1.msra.mxu0 %v1796
    %2257 = vmatprep.subr.mxu0 0.0
    %2258 = vmatpush1.msra.mxu0 %v1799
    %2259 = vmatprep.subr.mxu0 0.0
    %2260 = vmatpush1.msra.mxu0 %v1802
    %2261 = vmatprep.subr.mxu0 0.0
    %2262 = vmatpush1.msra.mxu0 %v1805
    %2263 = vmatprep.subr.mxu0 0.0
    %2264 = vmatpush1.msra.mxu0 %v1808
    %2265 = vmatprep.subr.mxu0 0.0
    %2266 = vmatpush1.msra.mxu0 %v1811
    %2267 = vmatprep.subr.mxu0 0.0
    %2268 = vmatpush1.msra.mxu0 %v1814
    %2269 = vmatprep.subr.mxu0 0.0
    %2270 = vmatpush1.msra.mxu0 %v1817
    %2271 = vmatprep.subr.mxu0 0.0
    %2272 = vmatpush1.msra.mxu0 %v1820
    %2273 = vmatprep.subr.mxu0 0.0
    %2274 = vmatpush1.msra.mxu0 %v1823
    %2275 = vmatprep.subr.mxu0 0.0
    %2276 = vmatpush1.msra.mxu0 %v1826
    %2277 = vmatprep.subr.mxu0 0.0
    %2278 = vmatpush1.msra.mxu0 %v1829
    %2279 = vmatprep.subr.mxu0 0.0
    %2280 = vmatpush1.msra.mxu0 %v1832
    %2281 = vmatprep.subr.mxu0 0.0
    %2282 = vmatpush1.msra.mxu0 %v1835
    %2283 = vmatprep.subr.mxu0 0.0
    %2284 = vmatpush1.msra.mxu0 %v1838
    %2285 = vmatprep.subr.mxu0 0.0
    %2286 = vmatpush1.msra.mxu0 0.0
    %2287 = vmatprep.subr.mxu0 0.0
    %2288 = vmatpush1.msra.mxu0 0.0
    %2289 = vmatprep.subr.mxu0 0.0
    %2290 = vmatpush1.msra.mxu0 0.0
    %2291 = vmatprep.subr.mxu0 0.0
    %2292 = vmatpush1.msra.mxu0 0.0
    %2293 = vmatprep.subr.mxu0 0.0
    %2294 = vmatpush1.msra.mxu0 0.0
    %2295 = vmatprep.subr.mxu0 0.0
    %2296 = vmatpush1.msra.mxu0 0.0
    %2297 = vmatprep.subr.mxu0 0.0
    %2298 = vmatpush1.msra.mxu0 0.0
    %2299 = vmatprep.subr.mxu0 0.0
    %2300 = vmatpush1.msra.mxu0 0.0
    %2301 = vmatprep.subr.mxu0 0.0
    %2302 = vmatpush1.msra.mxu0 0.0
    %2303 = vmatprep.subr.mxu0 0.0
    %2304 = vmatpush1.msra.mxu0 0.0
    %2305 = vmatprep.subr.mxu0 0.0
    %2306 = vmatpush1.msra.mxu0 0.0
    %2307 = vmatprep.subr.mxu0 0.0
    %2308 = vmatpush1.msra.mxu0 0.0
    %2309 = vmatprep.subr.mxu0 0.0
    %2310 = vmatpush1.msra.mxu0 0.0
    %2311 = vmatprep.subr.mxu0 0.0
    %2312 = vmatpush1.msra.mxu0 0.0
    %2313 = vmatprep.subr.mxu0 0.0
    %2314 = vmatpush1.msra.mxu0 0.0
    %2315 = vmatprep.subr.mxu0 0.0
    %2316 = vmatpush1.msra.mxu0 0.0
    %2317 = vmatprep.mubr.f32.mxu0 0.0
    %2318 = vmatmul.mubr.f32.gmra.mrb[0].mxu0 %v2181
    %v2319 = vpop.f32.mrb[0].mxu0
    %v2320 = vadd.f32 %v1854, %v2319
    %v2321 = vpop.f32.mrb[0].mxu0
    %2322 = vdwg.mxu0
    %v2323 = vadd.f32 %v1652, %v2249
    %v2324 = vxor.u32 %v2323, 2147483648
    %v2325 = vmul.f32 %v2324, 1.442695
    %v2326 = vpow.pop %v2325
    %v2327 = vadd.f32 %v2326, 1.0
    %v2328 = vrcp.pop %v2327
    %v2329 = vmul.f32 1.0, %v2328
    %v2330 = vadd.f32 %v1654, %v2251
    %v2331 = vxor.u32 %v2330, 2147483648
    %v2332 = vmul.f32 %v2331, 1.442695
    %v2333 = vpow.pop %v2332
    %v2334 = vadd.f32 %v2333, 1.0
    %v2335 = vrcp.pop %v2334
    %v2336 = vmul.f32 1.0, %v2335
    %v2337 = vmul.f32 %v2329, %v2320
    %v2338 = vadd.f32 %v1763, %v2337
    %v2339 = vtanh.pop %v2338
    %v2340 = vsub.f32 1.0, %v2336
    %v2341 = vmul.f32 %v2340, %v2339
    %v2342 = vmul.f32 %v2336, %v2181
    %v2343 = vadd.f32 %v2341, %v2342
    %2344 = vmatprep.subr.mxu0 %v1792
    %2345 = vmatpush1.msra.mxu0 %v1791
    %2346 = vmatprep.subr.mxu0 %v1795
    %2347 = vmatpush1.msra.mxu0 %v1794
    %2348 = vmatprep.subr.mxu0 %v1798
    %2349 = vmatpush1.msra.mxu0 %v1797
    %2350 = vmatprep.subr.mxu0 %v1801
    %2351 = vmatpush1.msra.mxu0 %v1800
    %2352 = vmatprep.subr.mxu0 %v1804
    %2353 = vmatpush1.msra.mxu0 %v1803
    %2354 = vmatprep.subr.mxu0 %v1807
    %2355 = vmatpush1.msra.mxu0 %v1806
    %2356 = vmatprep.subr.mxu0 %v1810
    %2357 = vmatpush1.msra.mxu0 %v1809
    %2358 = vmatprep.subr.mxu0 %v1813
    %2359 = vmatpush1.msra.mxu0 %v1812
    %2360 = vmatprep.subr.mxu0 %v1816
    %2361 = vmatpush1.msra.mxu0 %v1815
    %2362 = vmatprep.subr.mxu0 %v1819
    %2363 = vmatpush1.msra.mxu0 %v1818
    %2364 = vmatprep.subr.mxu0 %v1822
    %2365 = vmatpush1.msra.mxu0 %v1821
    %2366 = vmatprep.subr.mxu0 %v1825
    %2367 = vmatpush1.msra.mxu0 %v1824
    %2368 = vmatprep.subr.mxu0 %v1828
    %2369 = vmatpush1.msra.mxu0 %v1827
    %2370 = vmatprep.subr.mxu0 %v1831
    %2371 = vmatpush1.msra.mxu0 %v1830
    %2372 = vmatprep.subr.mxu0 %v1834
    %2373 = vmatpush1.msra.mxu0 %v1833
    %2374 = vmatprep.subr.mxu0 %v1837
    %2375 = vmatpush1.msra.mxu0 %v1836
    %2376 = vmatprep.subr.mxu0 0.0
    %2377 = vmatpush1.msra.mxu0 0.0
    %2378 = vmatprep.subr.mxu0 0.0
    %2379 = vmatpush1.msra.mxu0 0.0
    %2380 = vmatprep.subr.mxu0 0.0
    %2381 = vmatpush1.msra.mxu0 0.0
    %2382 = vmatprep.subr.mxu0 0.0
    %2383 = vmatpush1.msra.mxu0 0.0
    %2384 = vmatprep.subr.mxu0 0.0
    %2385 = vmatpush1.msra.mxu0 0.0
    %2386 = vmatprep.subr.mxu0 0.0
    %2387 = vmatpush1.msra.mxu0 0.0
    %2388 = vmatprep.subr.mxu0 0.0
    %2389 = vmatpush1.msra.mxu0 0.0
    %2390 = vmatprep.subr.mxu0 0.0
    %2391 = vmatpush1.msra.mxu0 0.0
    %2392 = vmatprep.subr.mxu0 0.0
    %2393 = vmatpush1.msra.mxu0 0.0
    %2394 = vmatprep.subr.mxu0 0.0
    %2395 = vmatpush1.msra.mxu0 0.0
    %2396 = vmatprep.subr.mxu0 0.0
    %2397 = vmatpush1.msra.mxu0 0.0
    %2398 = vmatprep.subr.mxu0 0.0
    %2399 = vmatpush1.msra.mxu0 0.0
    %2400 = vmatprep.subr.mxu0 0.0
    %2401 = vmatpush1.msra.mxu0 0.0
    %2402 = vmatprep.subr.mxu0 0.0
    %2403 = vmatpush1.msra.mxu0 0.0
    %2404 = vmatprep.subr.mxu0 0.0
    %2405 = vmatpush1.msra.mxu0 0.0
    %2406 = vmatprep.subr.mxu0 0.0
    %2407 = vmatpush1.msra.mxu0 0.0
    %2408 = vmatprep.mubr.f32.mxu0 0.0
    %2409 = vmatmul.mubr.f32.gmra.mrb[0].mxu0 %v2343
    %v2410 = vpop.f32.mrb[0].mxu0
    %v2411 = vadd.f32 %v1846, %v2410
    %v2412 = vpop.f32.mrb[0].mxu0
    %v2413 = vadd.f32 %v1850, %v2412
    %2414 = vdwg.mxu0
    %2415 = vmatprep.subr.mxu0 0.0
    %2416 = vmatpush1.msra.mxu0 %v1793
    %2417 = vmatprep.subr.mxu0 0.0
    %2418 = vmatpush1.msra.mxu0 %v1796
    %2419 = vmatprep.subr.mxu0 0.0
    %2420 = vmatpush1.msra.mxu0 %v1799
    %2421 = vmatprep.subr.mxu0 0.0
    %2422 = vmatpush1.msra.mxu0 %v1802
    %2423 = vmatprep.subr.mxu0 0.0
    %2424 = vmatpush1.msra.mxu0 %v1805
    %2425 = vmatprep.subr.mxu0 0.0
    %2426 = vmatpush1.msra.mxu0 %v1808
    %2427 = vmatprep.subr.mxu0 0.0
    %2428 = vmatpush1.msra.mxu0 %v1811
    %2429 = vmatprep.subr.mxu0 0.0
    %2430 = vmatpush1.msra.mxu0 %v1814
    %2431 = vmatprep.subr.mxu0 0.0
    %2432 = vmatpush1.msra.mxu0 %v1817
    %2433 = vmatprep.subr.mxu0 0.0
    %2434 = vmatpush1.msra.mxu0 %v1820
    %2435 = vmatprep.subr.mxu0 0.0
    %2436 = vmatpush1.msra.mxu0 %v1823
    %2437 = vmatprep.subr.mxu0 0.0
    %2438 = vmatpush1.msra.mxu0 %v1826
    %2439 = vmatprep.subr.mxu0 0.0
    %2440 = vmatpush1.msra.mxu0 %v1829
    %2441 = vmatprep.subr.mxu0 0.0
    %2442 = vmatpush1.msra.mxu0 %v1832
    %2443 = vmatprep.subr.mxu0 0.0
    %2444 = vmatpush1.msra.mxu0 %v1835
    %2445 = vmatprep.subr.mxu0 0.0
    %2446 = vmatpush1.msra.mxu0 %v1838
    %2447 = vmatprep.subr.mxu0 0.0
    %2448 = vmatpush1.msra.mxu0 0.0
    %2449 = vmatprep.subr.mxu0 0.0
    %2450 = vmatpush1.msra.mxu0 0.0
    %2451 = vmatprep.subr.mxu0 0.0
    %2452 = vmatpush1.msra.mxu0 0.0
    %2453 = vmatprep.subr.mxu0 0.0
    %2454 = vmatpush1.msra.mxu0 0.0
    %2455 = vmatprep.subr.mxu0 0.0
    %2456 = vmatpush1.msra.mxu0 0.0
    %2457 = vmatprep.subr.mxu0 0.0
    %2458 = vmatpush1.msra.mxu0 0.0
    %2459 = vmatprep.subr.mxu0 0.0
    %2460 = vmatpush1.msra.mxu0 0.0
    %2461 = vmatprep.subr.mxu0 0.0
    %2462 = vmatpush1.msra.mxu0 0.0
    %2463 = vmatprep.subr.mxu0 0.0
    %2464 = vmatpush1.msra.mxu0 0.0
    %2465 = vmatprep.subr.mxu0 0.0
    %2466 = vmatpush1.msra.mxu0 0.0
    %2467 = vmatprep.subr.mxu0 0.0
    %2468 = vmatpush1.msra.mxu0 0.0
    %2469 = vmatprep.subr.mxu0 0.0
    %2470 = vmatpush1.msra.mxu0 0.0
    %2471 = vmatprep.subr.mxu0 0.0
    %2472 = vmatpush1.msra.mxu0 0.0
    %2473 = vmatprep.subr.mxu0 0.0
    %2474 = vmatpush1.msra.mxu0 0.0
    %2475 = vmatprep.subr.mxu0 0.0
    %2476 = vmatpush1.msra.mxu0 0.0
    %2477 = vmatprep.subr.mxu0 0.0
    %2478 = vmatpush1.msra.mxu0 0.0
    %2479 = vmatprep.mubr.f32.mxu0 0.0
    %2480 = vmatmul.mubr.f32.gmra.mrb[0].mxu0 %v2343
    %v2481 = vpop.f32.mrb[0].mxu0
    %v2482 = vadd.f32 %v1854, %v2481
    %v2483 = vpop.f32.mrb[0].mxu0
    %2484 = vdwg.mxu0
    %v2485 = vadd.f32 %v1658, %v2411
    %v2486 = vxor.u32 %v2485, 2147483648
    %v2487 = vmul.f32 %v2486, 1.442695
    %v2488 = vpow.pop %v2487
    %v2489 = vadd.f32 %v2488, 1.0
    %v2490 = vrcp.pop %v2489
    %v2491 = vmul.f32 1.0, %v2490
    %v2492 = vadd.f32 %v1660, %v2413
    %v2493 = vxor.u32 %v2492, 2147483648
    %v2494 = vmul.f32 %v2493, 1.442695
    %v2495 = vpow.pop %v2494
    %v2496 = vadd.f32 %v2495, 1.0
    %v2497 = vrcp.pop %v2496
    %v2498 = vmul.f32 1.0, %v2497
    %v2499 = vmul.f32 %v2491, %v2482
    %v2500 = vadd.f32 %v1768, %v2499
    %v2501 = vtanh.pop %v2500
    %v2502 = vsub.f32 1.0, %v2498
    %v2503 = vmul.f32 %v2502, %v2501
    %v2504 = vmul.f32 %v2498, %v2343
    %v2505 = vadd.f32 %v2503, %v2504
    %2506 = vmatprep.subr.mxu0 %v1792
    %2507 = vmatpush1.msra.mxu0 %v1791
    %2508 = vmatprep.subr.mxu0 %v1795
    %2509 = vmatpush1.msra.mxu0 %v1794
    %2510 = vmatprep.subr.mxu0 %v1798
    %2511 = vmatpush1.msra.mxu0 %v1797
    %2512 = vmatprep.subr.mxu0 %v1801
    %2513 = vmatpush1.msra.mxu0 %v1800
    %2514 = vmatprep.subr.mxu0 %v1804
    %2515 = vmatpush1.msra.mxu0 %v1803
    %2516 = vmatprep.subr.mxu0 %v1807
    %2517 = vmatpush1.msra.mxu0 %v1806
    %2518 = vmatprep.subr.mxu0 %v1810
    %2519 = vmatpush1.msra.mxu0 %v1809
    %2520 = vmatprep.subr.mxu0 %v1813
    %2521 = vmatpush1.msra.mxu0 %v1812
    %2522 = vmatprep.subr.mxu0 %v1816
    %2523 = vmatpush1.msra.mxu0 %v1815
    %2524 = vmatprep.subr.mxu0 %v1819
    %2525 = vmatpush1.msra.mxu0 %v1818
    %2526 = vmatprep.subr.mxu0 %v1822
    %2527 = vmatpush1.msra.mxu0 %v1821
    %2528 = vmatprep.subr.mxu0 %v1825
    %2529 = vmatpush1.msra.mxu0 %v1824
    %2530 = vmatprep.subr.mxu0 %v1828
    %2531 = vmatpush1.msra.mxu0 %v1827
    %2532 = vmatprep.subr.mxu0 %v1831
    %2533 = vmatpush1.msra.mxu0 %v1830
    %2534 = vmatprep.subr.mxu0 %v1834
    %2535 = vmatpush1.msra.mxu0 %v1833
    %2536 = vmatprep.subr.mxu0 %v1837
    %2537 = vmatpush1.msra.mxu0 %v1836
    %2538 = vmatprep.subr.mxu0 0.0
    %2539 = vmatpush1.msra.mxu0 0.0
    %2540 = vmatprep.subr.mxu0 0.0
    %2541 = vmatpush1.msra.mxu0 0.0
    %2542 = vmatprep.subr.mxu0 0.0
    %2543 = vmatpush1.msra.mxu0 0.0
    %2544 = vmatprep.subr.mxu0 0.0
    %2545 = vmatpush1.msra.mxu0 0.0
    %2546 = vmatprep.subr.mxu0 0.0
    %2547 = vmatpush1.msra.mxu0 0.0
    %2548 = vmatprep.subr.mxu0 0.0
    %2549 = vmatpush1.msra.mxu0 0.0
    %2550 = vmatprep.subr.mxu0 0.0
    %2551 = vmatpush1.msra.mxu0 0.0
    %2552 = vmatprep.subr.mxu0 0.0
    %2553 = vmatpush1.msra.mxu0 0.0
    %2554 = vmatprep.subr.mxu0 0.0
    %2555 = vmatpush1.msra.mxu0 0.0
    %2556 = vmatprep.subr.mxu0 0.0
    %2557 = vmatpush1.msra.mxu0 0.0
    %2558 = vmatprep.subr.mxu0 0.0
    %2559 = vmatpush1.msra.mxu0 0.0
    %2560 = vmatprep.subr.mxu0 0.0
    %2561 = vmatpush1.msra.mxu0 0.0
    %2562 = vmatprep.subr.mxu0 0.0
    %2563 = vmatpush1.msra.mxu0 0.0
    %2564 = vmatprep.subr.mxu0 0.0
    %2565 = vmatpush1.msra.mxu0 0.0
    %2566 = vmatprep.subr.mxu0 0.0
    %2567 = vmatpush1.msra.mxu0 0.0
    %2568 = vmatprep.subr.mxu0 0.0
    %2569 = vmatpush1.msra.mxu0 0.0
    %2570 = vmatprep.mubr.f32.mxu0 0.0
    %2571 = vmatmul.mubr.f32.gmra.mrb[0].mxu0 %v2505
    %v2572 = vpop.f32.mrb[0].mxu0
    %v2573 = vadd.f32 %v1846, %v2572
    %v2574 = vpop.f32.mrb[0].mxu0
    %v2575 = vadd.f32 %v1850, %v2574
    %2576 = vdwg.mxu0
    %2577 = vmatprep.subr.mxu0 0.0
    %2578 = vmatpush1.msra.mxu0 %v1793
    %2579 = vmatprep.subr.mxu0 0.0
    %2580 = vmatpush1.msra.mxu0 %v1796
    %2581 = vmatprep.subr.mxu0 0.0
    %2582 = vmatpush1.msra.mxu0 %v1799
    %2583 = vmatprep.subr.mxu0 0.0
    %2584 = vmatpush1.msra.mxu0 %v1802
    %2585 = vmatprep.subr.mxu0 0.0
    %2586 = vmatpush1.msra.mxu0 %v1805
    %2587 = vmatprep.subr.mxu0 0.0
    %2588 = vmatpush1.msra.mxu0 %v1808
    %2589 = vmatprep.subr.mxu0 0.0
    %2590 = vmatpush1.msra.mxu0 %v1811
    %2591 = vmatprep.subr.mxu0 0.0
    %2592 = vmatpush1.msra.mxu0 %v1814
    %2593 = vmatprep.subr.mxu0 0.0
    %2594 = vmatpush1.msra.mxu0 %v1817
    %2595 = vmatprep.subr.mxu0 0.0
    %2596 = vmatpush1.msra.mxu0 %v1820
    %2597 = vmatprep.subr.mxu0 0.0
    %2598 = vmatpush1.msra.mxu0 %v1823
    %2599 = vmatprep.subr.mxu0 0.0
    %2600 = vmatpush1.msra.mxu0 %v1826
    %2601 = vmatprep.subr.mxu0 0.0
    %2602 = vmatpush1.msra.mxu0 %v1829
    %2603 = vmatprep.subr.mxu0 0.0
    %2604 = vmatpush1.msra.mxu0 %v1832
    %2605 = vmatprep.subr.mxu0 0.0
    %2606 = vmatpush1.msra.mxu0 %v1835
    %2607 = vmatprep.subr.mxu0 0.0
    %2608 = vmatpush1.msra.mxu0 %v1838
    %2609 = vmatprep.subr.mxu0 0.0
    %2610 = vmatpush1.msra.mxu0 0.0
    %2611 = vmatprep.subr.mxu0 0.0
    %2612 = vmatpush1.msra.mxu0 0.0
    %2613 = vmatprep.subr.mxu0 0.0
    %2614 = vmatpush1.msra.mxu0 0.0
    %2615 = vmatprep.subr.mxu0 0.0
    %2616 = vmatpush1.msra.mxu0 0.0
    %2617 = vmatprep.subr.mxu0 0.0
    %2618 = vmatpush1.msra.mxu0 0.0
    %2619 = vmatprep.subr.mxu0 0.0
    %2620 = vmatpush1.msra.mxu0 0.0
    %2621 = vmatprep.subr.mxu0 0.0
    %2622 = vmatpush1.msra.mxu0 0.0
    %2623 = vmatprep.subr.mxu0 0.0
    %2624 = vmatpush1.msra.mxu0 0.0
    %2625 = vmatprep.subr.mxu0 0.0
    %2626 = vmatpush1.msra.mxu0 0.0
    %2627 = vmatprep.subr.mxu0 0.0
    %2628 = vmatpush1.msra.mxu0 0.0
    %2629 = vmatprep.subr.mxu0 0.0
    %2630 = vmatpush1.msra.mxu0 0.0
    %2631 = vmatprep.subr.mxu0 0.0
    %2632 = vmatpush1.msra.mxu0 0.0
    %2633 = vmatprep.subr.mxu0 0.0
    %2634 = vmatpush1.msra.mxu0 0.0
    %2635 = vmatprep.subr.mxu0 0.0
    %2636 = vmatpush1.msra.mxu0 0.0
    %2637 = vmatprep.subr.mxu0 0.0
    %2638 = vmatpush1.msra.mxu0 0.0
    %2639 = vmatprep.subr.mxu0 0.0
    %2640 = vmatpush1.msra.mxu0 0.0
    %2641 = vmatprep.mubr.f32.mxu0 0.0
    %2642 = vmatmul.mubr.f32.gmra.mrb[0].mxu0 %v2505
    %v2643 = vpop.f32.mrb[0].mxu0
    %v2644 = vadd.f32 %v1854, %v2643
    %v2645 = vpop.f32.mrb[0].mxu0
    %2646 = vdwg.mxu0
    %v2647 = vadd.f32 %v1664, %v2573
    %v2648 = vxor.u32 %v2647, 2147483648
    %v2649 = vmul.f32 %v2648, 1.442695
    %v2650 = vpow.pop %v2649
    %v2651 = vadd.f32 %v2650, 1.0
    %v2652 = vrcp.pop %v2651
    %v2653 = vmul.f32 1.0, %v2652
    %v2654 = vadd.f32 %v1666, %v2575
    %v2655 = vxor.u32 %v2654, 2147483648
    %v2656 = vmul.f32 %v2655, 1.442695
    %v2657 = vpow.pop %v2656
    %v2658 = vadd.f32 %v2657, 1.0
    %v2659 = vrcp.pop %v2658
    %v2660 = vmul.f32 1.0, %v2659
    %v2661 = vmul.f32 %v2653, %v2644
    %v2662 = vadd.f32 %v1773, %v2661
    %v2663 = vtanh.pop %v2662
    %v2664 = vsub.f32 1.0, %v2660
    %v2665 = vmul.f32 %v2664, %v2663
    %v2666 = vmul.f32 %v2660, %v2505
    %v2667 = vadd.f32 %v2665, %v2666
    %2668 = vmatprep.subr.mxu0 %v1792
    %2669 = vmatpush1.msra.mxu0 %v1791
    %2670 = vmatprep.subr.mxu0 %v1795
    %2671 = vmatpush1.msra.mxu0 %v1794
    %2672 = vmatprep.subr.mxu0 %v1798
    %2673 = vmatpush1.msra.mxu0 %v1797
    %2674 = vmatprep.subr.mxu0 %v1801
    %2675 = vmatpush1.msra.mxu0 %v1800
    %2676 = vmatprep.subr.mxu0 %v1804
    %2677 = vmatpush1.msra.mxu0 %v1803
    %2678 = vmatprep.subr.mxu0 %v1807
    %2679 = vmatpush1.msra.mxu0 %v1806
    %2680 = vmatprep.subr.mxu0 %v1810
    %2681 = vmatpush1.msra.mxu0 %v1809
    %2682 = vmatprep.subr.mxu0 %v1813
    %2683 = vmatpush1.msra.mxu0 %v1812
    %2684 = vmatprep.subr.mxu0 %v1816
    %2685 = vmatpush1.msra.mxu0 %v1815
    %2686 = vmatprep.subr.mxu0 %v1819
    %2687 = vmatpush1.msra.mxu0 %v1818
    %2688 = vmatprep.subr.mxu0 %v1822
    %2689 = vmatpush1.msra.mxu0 %v1821
    %2690 = vmatprep.subr.mxu0 %v1825
    %2691 = vmatpush1.msra.mxu0 %v1824
    %2692 = vmatprep.subr.mxu0 %v1828
    %2693 = vmatpush1.msra.mxu0 %v1827
    %2694 = vmatprep.subr.mxu0 %v1831
    %2695 = vmatpush1.msra.mxu0 %v1830
    %2696 = vmatprep.subr.mxu0 %v1834
    %2697 = vmatpush1.msra.mxu0 %v1833
    %2698 = vmatprep.subr.mxu0 %v1837
    %2699 = vmatpush1.msra.mxu0 %v1836
    %2700 = vmatprep.subr.mxu0 0.0
    %2701 = vmatpush1.msra.mxu0 0.0
    %2702 = vmatprep.subr.mxu0 0.0
    %2703 = vmatpush1.msra.mxu0 0.0
    %2704 = vmatprep.subr.mxu0 0.0
    %2705 = vmatpush1.msra.mxu0 0.0
    %2706 = vmatprep.subr.mxu0 0.0
    %2707 = vmatpush1.msra.mxu0 0.0
    %2708 = vmatprep.subr.mxu0 0.0
    %2709 = vmatpush1.msra.mxu0 0.0
    %2710 = vmatprep.subr.mxu0 0.0
    %2711 = vmatpush1.msra.mxu0 0.0
    %2712 = vmatprep.subr.mxu0 0.0
    %2713 = vmatpush1.msra.mxu0 0.0
    %2714 = vmatprep.subr.mxu0 0.0
    %2715 = vmatpush1.msra.mxu0 0.0
    %2716 = vmatprep.subr.mxu0 0.0
    %2717 = vmatpush1.msra.mxu0 0.0
    %2718 = vmatprep.subr.mxu0 0.0
    %2719 = vmatpush1.msra.mxu0 0.0
    %2720 = vmatprep.subr.mxu0 0.0
    %2721 = vmatpush1.msra.mxu0 0.0
    %2722 = vmatprep.subr.mxu0 0.0
    %2723 = vmatpush1.msra.mxu0 0.0
    %2724 = vmatprep.subr.mxu0 0.0
    %2725 = vmatpush1.msra.mxu0 0.0
    %2726 = vmatprep.subr.mxu0 0.0
    %2727 = vmatpush1.msra.mxu0 0.0
    %2728 = vmatprep.subr.mxu0 0.0
    %2729 = vmatpush1.msra.mxu0 0.0
    %2730 = vmatprep.subr.mxu0 0.0
    %2731 = vmatpush1.msra.mxu0 0.0
    %2732 = vmatprep.mubr.f32.mxu0 0.0
    %2733 = vmatmul.mubr.f32.gmra.mrb[0].mxu0 %v2667
    %v2734 = vpop.f32.mrb[0].mxu0
    %v2735 = vadd.f32 %v1846, %v2734
    %v2736 = vpop.f32.mrb[0].mxu0
    %v2737 = vadd.f32 %v1850, %v2736
    %2738 = vdwg.mxu0
    %2739 = vmatprep.subr.mxu0 0.0
    %2740 = vmatpush1.msra.mxu0 %v1793
    %2741 = vmatprep.subr.mxu0 0.0
    %2742 = vmatpush1.msra.mxu0 %v1796
    %2743 = vmatprep.subr.mxu0 0.0
    %2744 = vmatpush1.msra.mxu0 %v1799
    %2745 = vmatprep.subr.mxu0 0.0
    %2746 = vmatpush1.msra.mxu0 %v1802
    %2747 = vmatprep.subr.mxu0 0.0
    %2748 = vmatpush1.msra.mxu0 %v1805
    %2749 = vmatprep.subr.mxu0 0.0
    %2750 = vmatpush1.msra.mxu0 %v1808
    %2751 = vmatprep.subr.mxu0 0.0
    %2752 = vmatpush1.msra.mxu0 %v1811
    %2753 = vmatprep.subr.mxu0 0.0
    %2754 = vmatpush1.msra.mxu0 %v1814
    %2755 = vmatprep.subr.mxu0 0.0
    %2756 = vmatpush1.msra.mxu0 %v1817
    %2757 = vmatprep.subr.mxu0 0.0
    %2758 = vmatpush1.msra.mxu0 %v1820
    %2759 = vmatprep.subr.mxu0 0.0
    %2760 = vmatpush1.msra.mxu0 %v1823
    %2761 = vmatprep.subr.mxu0 0.0
    %2762 = vmatpush1.msra.mxu0 %v1826
    %2763 = vmatprep.subr.mxu0 0.0
    %2764 = vmatpush1.msra.mxu0 %v1829
    %2765 = vmatprep.subr.mxu0 0.0
    %2766 = vmatpush1.msra.mxu0 %v1832
    %2767 = vmatprep.subr.mxu0 0.0
    %2768 = vmatpush1.msra.mxu0 %v1835
    %2769 = vmatprep.subr.mxu0 0.0
    %2770 = vmatpush1.msra.mxu0 %v1838
    %2771 = vmatprep.subr.mxu0 0.0
    %2772 = vmatpush1.msra.mxu0 0.0
    %2773 = vmatprep.subr.mxu0 0.0
    %2774 = vmatpush1.msra.mxu0 0.0
    %2775 = vmatprep.subr.mxu0 0.0
    %2776 = vmatpush1.msra.mxu0 0.0
    %2777 = vmatprep.subr.mxu0 0.0
    %2778 = vmatpush1.msra.mxu0 0.0
    %2779 = vmatprep.subr.mxu0 0.0
    %2780 = vmatpush1.msra.mxu0 0.0
    %2781 = vmatprep.subr.mxu0 0.0
    %2782 = vmatpush1.msra.mxu0 0.0
    %2783 = vmatprep.subr.mxu0 0.0
    %2784 = vmatpush1.msra.mxu0 0.0
    %2785 = vmatprep.subr.mxu0 0.0
    %2786 = vmatpush1.msra.mxu0 0.0
    %2787 = vmatprep.subr.mxu0 0.0
    %2788 = vmatpush1.msra.mxu0 0.0
    %2789 = vmatprep.subr.mxu0 0.0
    %2790 = vmatpush1.msra.mxu0 0.0
    %2791 = vmatprep.subr.mxu0 0.0
    %2792 = vmatpush1.msra.mxu0 0.0
    %2793 = vmatprep.subr.mxu0 0.0
    %2794 = vmatpush1.msra.mxu0 0.0
    %2795 = vmatprep.subr.mxu0 0.0
    %2796 = vmatpush1.msra.mxu0 0.0
    %2797 = vmatprep.subr.mxu0 0.0
    %2798 = vmatpush1.msra.mxu0 0.0
    %2799 = vmatprep.subr.mxu0 0.0
    %2800 = vmatpush1.msra.mxu0 0.0
    %2801 = vmatprep.subr.mxu0 0.0
    %2802 = vmatpush1.msra.mxu0 0.0
    %2803 = vmatprep.mubr.f32.mxu0 0.0
    %2804 = vmatmul.mubr.f32.gmra.mrb[0].mxu0 %v2667
    %v2805 = vpop.f32.mrb[0].mxu0
    %v2806 = vadd.f32 %v1854, %v2805
    %v2807 = vpop.f32.mrb[0].mxu0
    %2808 = vdwg.mxu0
    %v2809 = vadd.f32 %v1670, %v2735
    %v2810 = vxor.u32 %v2809, 2147483648
    %v2811 = vmul.f32 %v2810, 1.442695
    %v2812 = vpow.pop %v2811
    %v2813 = vadd.f32 %v2812, 1.0
    %v2814 = vrcp.pop %v2813
    %v2815 = vmul.f32 1.0, %v2814
    %v2816 = vadd.f32 %v1672, %v2737
    %v2817 = vxor.u32 %v2816, 2147483648
    %v2818 = vmul.f32 %v2817, 1.442695
    %v2819 = vpow.pop %v2818
    %v2820 = vadd.f32 %v2819, 1.0
    %v2821 = vrcp.pop %v2820
    %v2822 = vmul.f32 1.0, %v2821
    %v2823 = vmul.f32 %v2815, %v2806
    %v2824 = vadd.f32 %v1778, %v2823
    %v2825 = vtanh.pop %v2824
    %v2826 = vsub.f32 1.0, %v2822
    %v2827 = vmul.f32 %v2826, %v2825
    %v2828 = vmul.f32 %v2822, %v2667
    %v2829 = vadd.f32 %v2827, %v2828
    %2830 = vmatprep.subr.mxu0 %v1792
    %2831 = vmatpush1.msra.mxu0 %v1791
    %2832 = vmatprep.subr.mxu0 %v1795
    %2833 = vmatpush1.msra.mxu0 %v1794
    %2834 = vmatprep.subr.mxu0 %v1798
    %2835 = vmatpush1.msra.mxu0 %v1797
    %2836 = vmatprep.subr.mxu0 %v1801
    %2837 = vmatpush1.msra.mxu0 %v1800
    %2838 = vmatprep.subr.mxu0 %v1804
    %2839 = vmatpush1.msra.mxu0 %v1803
    %2840 = vmatprep.subr.mxu0 %v1807
    %2841 = vmatpush1.msra.mxu0 %v1806
    %2842 = vmatprep.subr.mxu0 %v1810
    %2843 = vmatpush1.msra.mxu0 %v1809
    %2844 = vmatprep.subr.mxu0 %v1813
    %2845 = vmatpush1.msra.mxu0 %v1812
    %2846 = vmatprep.subr.mxu0 %v1816
    %2847 = vmatpush1.msra.mxu0 %v1815
    %2848 = vmatprep.subr.mxu0 %v1819
    %2849 = vmatpush1.msra.mxu0 %v1818
    %2850 = vmatprep.subr.mxu0 %v1822
    %2851 = vmatpush1.msra.mxu0 %v1821
    %2852 = vmatprep.subr.mxu0 %v1825
    %2853 = vmatpush1.msra.mxu0 %v1824
    %2854 = vmatprep.subr.mxu0 %v1828
    %2855 = vmatpush1.msra.mxu0 %v1827
    %2856 = vmatprep.subr.mxu0 %v1831
    %2857 = vmatpush1.msra.mxu0 %v1830
    %2858 = vmatprep.subr.mxu0 %v1834
    %2859 = vmatpush1.msra.mxu0 %v1833
    %2860 = vmatprep.subr.mxu0 %v1837
    %2861 = vmatpush1.msra.mxu0 %v1836
    %2862 = vmatprep.subr.mxu0 0.0
    %2863 = vmatpush1.msra.mxu0 0.0
    %2864 = vmatprep.subr.mxu0 0.0
    %2865 = vmatpush1.msra.mxu0 0.0
    %2866 = vmatprep.subr.mxu0 0.0
    %2867 = vmatpush1.msra.mxu0 0.0
    %2868 = vmatprep.subr.mxu0 0.0
    %2869 = vmatpush1.msra.mxu0 0.0
    %2870 = vmatprep.subr.mxu0 0.0
    %2871 = vmatpush1.msra.mxu0 0.0
    %2872 = vmatprep.subr.mxu0 0.0
    %2873 = vmatpush1.msra.mxu0 0.0
    %2874 = vmatprep.subr.mxu0 0.0
    %2875 = vmatpush1.msra.mxu0 0.0
    %2876 = vmatprep.subr.mxu0 0.0
    %2877 = vmatpush1.msra.mxu0 0.0
    %2878 = vmatprep.subr.mxu0 0.0
    %2879 = vmatpush1.msra.mxu0 0.0
    %2880 = vmatprep.subr.mxu0 0.0
    %2881 = vmatpush1.msra.mxu0 0.0
    %2882 = vmatprep.subr.mxu0 0.0
    %2883 = vmatpush1.msra.mxu0 0.0
    %2884 = vmatprep.subr.mxu0 0.0
    %2885 = vmatpush1.msra.mxu0 0.0
    %2886 = vmatprep.subr.mxu0 0.0
    %2887 = vmatpush1.msra.mxu0 0.0
    %2888 = vmatprep.subr.mxu0 0.0
    %2889 = vmatpush1.msra.mxu0 0.0
    %2890 = vmatprep.subr.mxu0 0.0
    %2891 = vmatpush1.msra.mxu0 0.0
    %2892 = vmatprep.subr.mxu0 0.0
    %2893 = vmatpush1.msra.mxu0 0.0
    %2894 = vmatprep.mubr.f32.mxu0 0.0
    %2895 = vmatmul.mubr.f32.gmra.mrb[0].mxu0 %v2829
    %v2896 = vpop.f32.mrb[0].mxu0
    %v2897 = vadd.f32 %v1846, %v2896
    %v2898 = vpop.f32.mrb[0].mxu0
    %v2899 = vadd.f32 %v1850, %v2898
    %2900 = vdwg.mxu0
    %2901 = vmatprep.subr.mxu0 0.0
    %2902 = vmatpush1.msra.mxu0 %v1793
    %2903 = vmatprep.subr.mxu0 0.0
    %2904 = vmatpush1.msra.mxu0 %v1796
    %2905 = vmatprep.subr.mxu0 0.0
    %2906 = vmatpush1.msra.mxu0 %v1799
    %2907 = vmatprep.subr.mxu0 0.0
    %2908 = vmatpush1.msra.mxu0 %v1802
    %2909 = vmatprep.subr.mxu0 0.0
    %2910 = vmatpush1.msra.mxu0 %v1805
    %2911 = vmatprep.subr.mxu0 0.0
    %2912 = vmatpush1.msra.mxu0 %v1808
    %2913 = vmatprep.subr.mxu0 0.0
    %2914 = vmatpush1.msra.mxu0 %v1811
    %2915 = vmatprep.subr.mxu0 0.0
    %2916 = vmatpush1.msra.mxu0 %v1814
    %2917 = vmatprep.subr.mxu0 0.0
    %2918 = vmatpush1.msra.mxu0 %v1817
    %2919 = vmatprep.subr.mxu0 0.0
    %2920 = vmatpush1.msra.mxu0 %v1820
    %2921 = vmatprep.subr.mxu0 0.0
    %2922 = vmatpush1.msra.mxu0 %v1823
    %2923 = vmatprep.subr.mxu0 0.0
    %2924 = vmatpush1.msra.mxu0 %v1826
    %2925 = vmatprep.subr.mxu0 0.0
    %2926 = vmatpush1.msra.mxu0 %v1829
    %2927 = vmatprep.subr.mxu0 0.0
    %2928 = vmatpush1.msra.mxu0 %v1832
    %2929 = vmatprep.subr.mxu0 0.0
    %2930 = vmatpush1.msra.mxu0 %v1835
    %2931 = vmatprep.subr.mxu0 0.0
    %2932 = vmatpush1.msra.mxu0 %v1838
    %2933 = vmatprep.subr.mxu0 0.0
    %2934 = vmatpush1.msra.mxu0 0.0
    %2935 = vmatprep.subr.mxu0 0.0
    %2936 = vmatpush1.msra.mxu0 0.0
    %2937 = vmatprep.subr.mxu0 0.0
    %2938 = vmatpush1.msra.mxu0 0.0
    %2939 = vmatprep.subr.mxu0 0.0
    %2940 = vmatpush1.msra.mxu0 0.0
    %2941 = vmatprep.subr.mxu0 0.0
    %2942 = vmatpush1.msra.mxu0 0.0
    %2943 = vmatprep.subr.mxu0 0.0
    %2944 = vmatpush1.msra.mxu0 0.0
    %2945 = vmatprep.subr.mxu0 0.0
    %2946 = vmatpush1.msra.mxu0 0.0
    %2947 = vmatprep.subr.mxu0 0.0
    %2948 = vmatpush1.msra.mxu0 0.0
    %2949 = vmatprep.subr.mxu0 0.0
    %2950 = vmatpush1.msra.mxu0 0.0
    %2951 = vmatprep.subr.mxu0 0.0
    %2952 = vmatpush1.msra.mxu0 0.0
    %2953 = vmatprep.subr.mxu0 0.0
    %2954 = vmatpush1.msra.mxu0 0.0
    %2955 = vmatprep.subr.mxu0 0.0
    %2956 = vmatpush1.msra.mxu0 0.0
    %2957 = vmatprep.subr.mxu0 0.0
    %2958 = vmatpush1.msra.mxu0 0.0
    %2959 = vmatprep.subr.mxu0 0.0
    %2960 = vmatpush1.msra.mxu0 0.0
    %2961 = vmatprep.subr.mxu0 0.0
    %2962 = vmatpush1.msra.mxu0 0.0
    %2963 = vmatprep.subr.mxu0 0.0
    %2964 = vmatpush1.msra.mxu0 0.0
    %2965 = vmatprep.mubr.f32.mxu0 0.0
    %2966 = vmatmul.mubr.f32.gmra.mrb[0].mxu0 %v2829
    %v2967 = vpop.f32.mrb[0].mxu0
    %v2968 = vadd.f32 %v1854, %v2967
    %v2969 = vpop.f32.mrb[0].mxu0
    %2970 = vdwg.mxu0
    %v2971 = vadd.f32 %v1676, %v2897
    %v2972 = vxor.u32 %v2971, 2147483648
    %v2973 = vmul.f32 %v2972, 1.442695
    %v2974 = vpow.pop %v2973
    %v2975 = vadd.f32 %v2974, 1.0
    %v2976 = vrcp.pop %v2975
    %v2977 = vmul.f32 1.0, %v2976
    %v2978 = vadd.f32 %v1678, %v2899
    %v2979 = vxor.u32 %v2978, 2147483648
    %v2980 = vmul.f32 %v2979, 1.442695
    %v2981 = vpow.pop %v2980
    %v2982 = vadd.f32 %v2981, 1.0
    %v2983 = vrcp.pop %v2982
    %v2984 = vmul.f32 1.0, %v2983
    %v2985 = vmul.f32 %v2977, %v2968
    %v2986 = vadd.f32 %v1783, %v2985
    %v2987 = vtanh.pop %v2986
    %v2988 = vsub.f32 1.0, %v2984
    %v2989 = vmul.f32 %v2988, %v2987
    %v2990 = vmul.f32 %v2984, %v2829
    %v2991 = vadd.f32 %v2989, %v2990
    %2992 = vmatprep.subr.mxu0 %v1792
    %2993 = vmatpush1.msra.mxu0 %v1791
    %2994 = vmatprep.subr.mxu0 %v1795
    %2995 = vmatpush1.msra.mxu0 %v1794
    %2996 = vmatprep.subr.mxu0 %v1798
    %2997 = vmatpush1.msra.mxu0 %v1797
    %2998 = vmatprep.subr.mxu0 %v1801
    %2999 = vmatpush1.msra.mxu0 %v1800
    %3000 = vmatprep.subr.mxu0 %v1804
    %3001 = vmatpush1.msra.mxu0 %v1803
    %3002 = vmatprep.subr.mxu0 %v1807
    %3003 = vmatpush1.msra.mxu0 %v1806
    %3004 = vmatprep.subr.mxu0 %v1810
    %3005 = vmatpush1.msra.mxu0 %v1809
    %3006 = vmatprep.subr.mxu0 %v1813
    %3007 = vmatpush1.msra.mxu0 %v1812
    %3008 = vmatprep.subr.mxu0 %v1816
    %3009 = vmatpush1.msra.mxu0 %v1815
    %3010 = vmatprep.subr.mxu0 %v1819
    %3011 = vmatpush1.msra.mxu0 %v1818
    %3012 = vmatprep.subr.mxu0 %v1822
    %3013 = vmatpush1.msra.mxu0 %v1821
    %3014 = vmatprep.subr.mxu0 %v1825
    %3015 = vmatpush1.msra.mxu0 %v1824
    %3016 = vmatprep.subr.mxu0 %v1828
    %3017 = vmatpush1.msra.mxu0 %v1827
    %3018 = vmatprep.subr.mxu0 %v1831
    %3019 = vmatpush1.msra.mxu0 %v1830
    %3020 = vmatprep.subr.mxu0 %v1834
    %3021 = vmatpush1.msra.mxu0 %v1833
    %3022 = vmatprep.subr.mxu0 %v1837
    %3023 = vmatpush1.msra.mxu0 %v1836
    %3024 = vmatprep.subr.mxu0 0.0
    %3025 = vmatpush1.msra.mxu0 0.0
    %3026 = vmatprep.subr.mxu0 0.0
    %3027 = vmatpush1.msra.mxu0 0.0
    %3028 = vmatprep.subr.mxu0 0.0
    %3029 = vmatpush1.msra.mxu0 0.0
    %3030 = vmatprep.subr.mxu0 0.0
    %3031 = vmatpush1.msra.mxu0 0.0
    %3032 = vmatprep.subr.mxu0 0.0
    %3033 = vmatpush1.msra.mxu0 0.0
    %3034 = vmatprep.subr.mxu0 0.0
    %3035 = vmatpush1.msra.mxu0 0.0
    %3036 = vmatprep.subr.mxu0 0.0
    %3037 = vmatpush1.msra.mxu0 0.0
    %3038 = vmatprep.subr.mxu0 0.0
    %3039 = vmatpush1.msra.mxu0 0.0
    %3040 = vmatprep.subr.mxu0 0.0
    %3041 = vmatpush1.msra.mxu0 0.0
    %3042 = vmatprep.subr.mxu0 0.0
    %3043 = vmatpush1.msra.mxu0 0.0
    %3044 = vmatprep.subr.mxu0 0.0
    %3045 = vmatpush1.msra.mxu0 0.0
    %3046 = vmatprep.subr.mxu0 0.0
    %3047 = vmatpush1.msra.mxu0 0.0
    %3048 = vmatprep.subr.mxu0 0.0
    %3049 = vmatpush1.msra.mxu0 0.0
    %3050 = vmatprep.subr.mxu0 0.0
    %3051 = vmatpush1.msra.mxu0 0.0
    %3052 = vmatprep.subr.mxu0 0.0
    %3053 = vmatpush1.msra.mxu0 0.0
    %3054 = vmatprep.subr.mxu0 0.0
    %3055 = vmatpush1.msra.mxu0 0.0
    %3056 = vmatprep.mubr.f32.mxu0 0.0
    %3057 = vmatmul.mubr.f32.gmra.mrb[0].mxu0 %v2991
    %v3058 = vpop.f32.mrb[0].mxu0
    %v3059 = vadd.f32 %v1846, %v3058
    %v3060 = vpop.f32.mrb[0].mxu0
    %v3061 = vadd.f32 %v1850, %v3060
    %3062 = vdwg.mxu0
    %3063 = vmatprep.subr.mxu0 0.0
    %3064 = vmatpush1.msra.mxu0 %v1793
    %3065 = vmatprep.subr.mxu0 0.0
    %3066 = vmatpush1.msra.mxu0 %v1796
    %3067 = vmatprep.subr.mxu0 0.0
    %3068 = vmatpush1.msra.mxu0 %v1799
    %3069 = vmatprep.subr.mxu0 0.0
    %3070 = vmatpush1.msra.mxu0 %v1802
    %3071 = vmatprep.subr.mxu0 0.0
    %3072 = vmatpush1.msra.mxu0 %v1805
    %3073 = vmatprep.subr.mxu0 0.0
    %3074 = vmatpush1.msra.mxu0 %v1808
    %3075 = vmatprep.subr.mxu0 0.0
    %3076 = vmatpush1.msra.mxu0 %v1811
    %3077 = vmatprep.subr.mxu0 0.0
    %3078 = vmatpush1.msra.mxu0 %v1814
    %3079 = vmatprep.subr.mxu0 0.0
    %3080 = vmatpush1.msra.mxu0 %v1817
    %3081 = vmatprep.subr.mxu0 0.0
    %3082 = vmatpush1.msra.mxu0 %v1820
    %3083 = vmatprep.subr.mxu0 0.0
    %3084 = vmatpush1.msra.mxu0 %v1823
    %3085 = vmatprep.subr.mxu0 0.0
    %3086 = vmatpush1.msra.mxu0 %v1826
    %3087 = vmatprep.subr.mxu0 0.0
    %3088 = vmatpush1.msra.mxu0 %v1829
    %3089 = vmatprep.subr.mxu0 0.0
    %3090 = vmatpush1.msra.mxu0 %v1832
    %3091 = vmatprep.subr.mxu0 0.0
    %3092 = vmatpush1.msra.mxu0 %v1835
    %3093 = vmatprep.subr.mxu0 0.0
    %3094 = vmatpush1.msra.mxu0 %v1838
    %3095 = vmatprep.subr.mxu0 0.0
    %3096 = vmatpush1.msra.mxu0 0.0
    %3097 = vmatprep.subr.mxu0 0.0
    %3098 = vmatpush1.msra.mxu0 0.0
    %3099 = vmatprep.subr.mxu0 0.0
    %3100 = vmatpush1.msra.mxu0 0.0
    %3101 = vmatprep.subr.mxu0 0.0
    %3102 = vmatpush1.msra.mxu0 0.0
    %3103 = vmatprep.subr.mxu0 0.0
    %3104 = vmatpush1.msra.mxu0 0.0
    %3105 = vmatprep.subr.mxu0 0.0
    %3106 = vmatpush1.msra.mxu0 0.0
    %3107 = vmatprep.subr.mxu0 0.0
    %3108 = vmatpush1.msra.mxu0 0.0
    %3109 = vmatprep.subr.mxu0 0.0
    %3110 = vmatpush1.msra.mxu0 0.0
    %3111 = vmatprep.subr.mxu0 0.0
    %3112 = vmatpush1.msra.mxu0 0.0
    %3113 = vmatprep.subr.mxu0 0.0
    %3114 = vmatpush1.msra.mxu0 0.0
    %3115 = vmatprep.subr.mxu0 0.0
    %3116 = vmatpush1.msra.mxu0 0.0
    %3117 = vmatprep.subr.mxu0 0.0
    %3118 = vmatpush1.msra.mxu0 0.0
    %3119 = vmatprep.subr.mxu0 0.0
    %3120 = vmatpush1.msra.mxu0 0.0
    %3121 = vmatprep.subr.mxu0 0.0
    %3122 = vmatpush1.msra.mxu0 0.0
    %3123 = vmatprep.subr.mxu0 0.0
    %3124 = vmatpush1.msra.mxu0 0.0
    %3125 = vmatprep.subr.mxu0 0.0
    %3126 = vmatpush1.msra.mxu0 0.0
    %3127 = vmatprep.mubr.f32.mxu0 0.0
    %3128 = vmatmul.mubr.f32.gmra.mrb[0].mxu0 %v2991
    %v3129 = vpop.f32.mrb[0].mxu0
    %v3130 = vadd.f32 %v1854, %v3129
    %v3131 = vpop.f32.mrb[0].mxu0
    %3132 = vdwg.mxu0
    %v3133 = vadd.f32 %v1682, %v3059
    %v3134 = vxor.u32 %v3133, 2147483648
    %v3135 = vmul.f32 %v3134, 1.442695
    %v3136 = vpow.pop %v3135
    %v3137 = vadd.f32 %v3136, 1.0
    %v3138 = vrcp.pop %v3137
    %v3139 = vmul.f32 1.0, %v3138
    %v3140 = vadd.f32 %v1684, %v3061
    %v3141 = vxor.u32 %v3140, 2147483648
    %v3142 = vmul.f32 %v3141, 1.442695
    %v3143 = vpow.pop %v3142
    %v3144 = vadd.f32 %v3143, 1.0
    %v3145 = vrcp.pop %v3144
    %v3146 = vmul.f32 1.0, %v3145
    %v3147 = vmul.f32 %v3139, %v3130
    %v3148 = vadd.f32 %v1788, %v3147
    %v3149 = vtanh.pop %v3148
    %v3150 = vsub.f32 1.0, %v3146
    %v3151 = vmul.f32 %v3150, %v3149
    %v3152 = vmul.f32 %v3146, %v2991
    %v3153 = vadd.f32 %v3151, %v3152
    %s3154 = scalar_lea.vmem [#allocation14], 8
    %3155 = vst [vmem:[%s3154] sm:$0xff] %v3153
    %v3156 = vld [vmem:[#allocation11] sm:$0xff]
    %v3157 = vld [vmem:[#allocation11 + $0x8] sm:$0xff]
    %v3158 = vld [vmem:[#allocation11 + $0x10] sm:$0xff]
    %v3159 = vld [vmem:[#allocation11 + $0x18] sm:$0xff]
    %v3160 = vld [vmem:[#allocation11 + $0x20] sm:$0xff]
    %v3161 = vld [vmem:[#allocation11 + $0x28] sm:$0xff]
    %v3162 = vld [vmem:[#allocation11 + $0x30] sm:$0xff]
    %v3163 = vld [vmem:[#allocation11 + $0x38] sm:$0xff]
    %v3164 = vld [vmem:[#allocation11 + $0x40] sm:$0xff]
    %v3165 = vld [vmem:[#allocation11 + $0x48] sm:$0xff]
    %v3166 = vld [vmem:[#allocation11 + $0x50] sm:$0xff]
    %v3167 = vld [vmem:[#allocation11 + $0x58] sm:$0xff]
    %v3168 = vld [vmem:[#allocation11 + $0x60] sm:$0xff]
    %v3169 = vld [vmem:[#allocation11 + $0x68] sm:$0xff]
    %v3170 = vld [vmem:[#allocation11 + $0x70] sm:$0xff]
    %v3171 = vld [vmem:[#allocation11 + $0x78] sm:$0xff]
    %v3172 = vld [vmem:[%s9] sm:$0x1]
    %v3174 = vlaneseq
    %v3175 = vshrl.u32 %v3174, 7
    %v3176 = vsub.s32 0, %v3175
    %v3177 = vrot.slane %v3172, %v3176
    %3179 = vmatprep.subr.mxu0 0.0
    %3180 = vmatpush1.msra.mxu0 %v3156
    %3181 = vmatprep.subr.mxu0 0.0
    %3182 = vmatpush1.msra.mxu0 %v3157
    %3183 = vmatprep.subr.mxu0 0.0
    %3184 = vmatpush1.msra.mxu0 %v3158
    %3185 = vmatprep.subr.mxu0 0.0
    %3186 = vmatpush1.msra.mxu0 %v3159
    %3187 = vmatprep.subr.mxu0 0.0
    %3188 = vmatpush1.msra.mxu0 %v3160
    %3189 = vmatprep.subr.mxu0 0.0
    %3190 = vmatpush1.msra.mxu0 %v3161
    %3191 = vmatprep.subr.mxu0 0.0
    %3192 = vmatpush1.msra.mxu0 %v3162
    %3193 = vmatprep.subr.mxu0 0.0
    %3194 = vmatpush1.msra.mxu0 %v3163
    %3195 = vmatprep.subr.mxu0 0.0
    %3196 = vmatpush1.msra.mxu0 %v3164
    %3197 = vmatprep.subr.mxu0 0.0
    %3198 = vmatpush1.msra.mxu0 %v3165
    %3199 = vmatprep.subr.mxu0 0.0
    %3200 = vmatpush1.msra.mxu0 %v3166
    %3201 = vmatprep.subr.mxu0 0.0
    %3202 = vmatpush1.msra.mxu0 %v3167
    %3203 = vmatprep.subr.mxu0 0.0
    %3204 = vmatpush1.msra.mxu0 %v3168
    %3205 = vmatprep.subr.mxu0 0.0
    %3206 = vmatpush1.msra.mxu0 %v3169
    %3207 = vmatprep.subr.mxu0 0.0
    %3208 = vmatpush1.msra.mxu0 %v3170
    %3209 = vmatprep.subr.mxu0 0.0
    %3210 = vmatpush1.msra.mxu0 %v3171
    %3211 = vmatprep.subr.mxu0 0.0
    %3212 = vmatpush1.msra.mxu0 0.0
    %3213 = vmatprep.subr.mxu0 0.0
    %3214 = vmatpush1.msra.mxu0 0.0
    %3215 = vmatprep.subr.mxu0 0.0
    %3216 = vmatpush1.msra.mxu0 0.0
    %3217 = vmatprep.subr.mxu0 0.0
    %3218 = vmatpush1.msra.mxu0 0.0
    %3219 = vmatprep.subr.mxu0 0.0
    %3220 = vmatpush1.msra.mxu0 0.0
    %3221 = vmatprep.subr.mxu0 0.0
    %3222 = vmatpush1.msra.mxu0 0.0
    %3223 = vmatprep.subr.mxu0 0.0
    %3224 = vmatpush1.msra.mxu0 0.0
    %3225 = vmatprep.subr.mxu0 0.0
    %3226 = vmatpush1.msra.mxu0 0.0
    %3227 = vmatprep.subr.mxu0 0.0
    %3228 = vmatpush1.msra.mxu0 0.0
    %3229 = vmatprep.subr.mxu0 0.0
    %3230 = vmatpush1.msra.mxu0 0.0
    %3231 = vmatprep.subr.mxu0 0.0
    %3232 = vmatpush1.msra.mxu0 0.0
    %3233 = vmatprep.subr.mxu0 0.0
    %3234 = vmatpush1.msra.mxu0 0.0
    %3235 = vmatprep.subr.mxu0 0.0
    %3236 = vmatpush1.msra.mxu0 0.0
    %3237 = vmatprep.subr.mxu0 0.0
    %3238 = vmatpush1.msra.mxu0 0.0
    %3239 = vmatprep.subr.mxu0 0.0
    %3240 = vmatpush1.msra.mxu0 0.0
    %3241 = vmatprep.subr.mxu0 0.0
    %3242 = vmatpush1.msra.mxu0 0.0
    %3243 = vmatprep.mubr.f32.mxu0 0.0
    %3244 = vmatmul.mubr.f32.gmra.mrb[0].mxu0 %v2019
    %v3245 = vpop.f32.mrb[0].mxu0
    %v3246 = vadd.f32 %v3177, %v3245
    %v3247 = vpop.f32.mrb[0].mxu0
    %3248 = vmatprep.mubr.f32.mxu0 0.0
    %3249 = vmatmul.mubr.f32.gmra.mrb[0].mxu0 %v2181
    %v3250 = vpop.f32.mrb[0].mxu0
    %v3251 = vadd.f32 %v3177, %v3250
    %v3252 = vpop.f32.mrb[0].mxu0
    %3253 = vmatprep.mubr.f32.mxu0 0.0
    %3254 = vmatmul.mubr.f32.gmra.mrb[0].mxu0 %v2343
    %v3255 = vpop.f32.mrb[0].mxu0
    %v3256 = vadd.f32 %v3177, %v3255
    %v3257 = vpop.f32.mrb[0].mxu0
    %3258 = vmatprep.mubr.f32.mxu0 0.0
    %3259 = vmatmul.mubr.f32.gmra.mrb[0].mxu0 %v2505
    %v3260 = vpop.f32.mrb[0].mxu0
    %v3261 = vadd.f32 %v3177, %v3260
    %v3262 = vpop.f32.mrb[0].mxu0
    %3263 = vmatprep.mubr.f32.mxu0 0.0
    %3264 = vmatmul.mubr.f32.gmra.mrb[0].mxu0 %v2667
    %v3265 = vpop.f32.mrb[0].mxu0
    %v3266 = vadd.f32 %v3177, %v3265
    %v3267 = vpop.f32.mrb[0].mxu0
    %3268 = vmatprep.mubr.f32.mxu0 0.0
    %3269 = vmatmul.mubr.f32.gmra.mrb[0].mxu0 %v2829
    %v3270 = vpop.f32.mrb[0].mxu0
    %v3271 = vadd.f32 %v3177, %v3270
    %v3272 = vpop.f32.mrb[0].mxu0
    %3273 = vmatprep.mubr.f32.mxu0 0.0
    %3274 = vmatmul.mubr.f32.gmra.mrb[0].mxu0 %v2991
    %v3275 = vpop.f32.mrb[0].mxu0
    %v3276 = vadd.f32 %v3177, %v3275
    %v3277 = vpop.f32.mrb[0].mxu0
    %3278 = vmatprep.mubr.f32.mxu0 0.0
    %3279 = vmatmul.mubr.f32.gmra.mrb[0].mxu0 %v3153
    %v3280 = vpop.f32.mrb[0].mxu0
    %v3281 = vadd.f32 %v3177, %v3280
    %v3282 = vpop.f32.mrb[0].mxu0
    %3283 = vdwg.mxu0
    %3284 = vst [vmem:[#allocation13] sm:$0xff] %v3246
    %3285 = vst [vmem:[#allocation13 + $0x8] sm:$0xff] %v3251
    %3286 = vst [vmem:[#allocation13 + $0x10] sm:$0xff] %v3256
    %3287 = vst [vmem:[#allocation13 + $0x18] sm:$0xff] %v3261
    %3288 = vst [vmem:[#allocation13 + $0x20] sm:$0xff] %v3266
    %3289 = vst [vmem:[#allocation13 + $0x28] sm:$0xff] %v3271
    %3290 = vst [vmem:[#allocation13 + $0x30] sm:$0xff] %v3276
    %3291 = vst [vmem:[#allocation13 + $0x38] sm:$0xff] %v3281
    // Predicated region
    $region66: #{tpu_custom_call.1} parent=1 // pred_check
      _
    $region67: #{tpu_custom_call.1} parent=1 // pred_check_branch
      %3293 = sbr.rel (0) target = $region69
    $region68: #{tpu_custom_call.1} parent=1 // pred_region
      %s3295 = ssub.s32 1024, 1024
      %3296 = vsyncadd [#allocation4], %s3295
      %s3297 = sshll.u32 [#allocation13], 4
      %s3298 = int_to_ptr.vmem [resolvable:$true] %s3297
      %3303 = dma.vmem_to_hbm [thread:$0]  %s3298, 1024, %s10, [#allocation4], 128, 128, 8
    $region69: #{tpu_custom_call.1} parent=1 // pred_fallthru
      _
    // Predicated region
    $region70: #{tpu_custom_call.1} parent=1 // pred_check
      _
    $region71: #{tpu_custom_call.1} parent=1 // pred_check_branch
      %3305 = sbr.rel (0) target = $region73
    $region72: #{tpu_custom_call.1} parent=1 // pred_region
      %s3307 = ssub.s32 256, 256
      %3308 = vsyncadd [#allocation15], %s3307
      %s3309 = sshll.u32 [#allocation14], 4
      %s3310 = int_to_ptr.vmem [resolvable:$true] %s3309
      %3315 = dma.vmem_to_hbm [thread:$0]  %s3310, 256, %s11, [#allocation15], 128, 128, 8
    $region73: #{tpu_custom_call.1} parent=1 // pred_fallthru
      _
    // Predicated region
    $region74: #{tpu_custom_call.1} parent=1 // pred_check
      _
    $region75: #{tpu_custom_call.1} parent=1 // pred_check_branch
      %3317 = sbr.rel (0) target = $region77
    $region76: #{tpu_custom_call.1} parent=1 // pred_region
      %3318 = dma.done [#allocation4], 1024
    $region77: #{tpu_custom_call.1} parent=1 // pred_fallthru
      _
    // Predicated region
    $region78: #{tpu_custom_call.1} parent=1 // pred_check
      _
    $region79: #{tpu_custom_call.1} parent=1 // pred_check_branch
      %3320 = sbr.rel (0) target = $region81
    $region80: #{tpu_custom_call.1} parent=1 // pred_region
      %3321 = dma.done [#allocation15], 256
    $region81: #{tpu_custom_call.1} parent=1 // pred_fallthru
      _
    %3322 = vsyncpa [#allocation3], 1
    %3323 = vsyncpa [#allocation6], 1
    %3324 = vsyncpa [#allocation9], 1
    %3325 = vsyncpa [#allocation12], 1
    %3326 = vsyncpa [#allocation4], 1
    %3327 = vsyncpa [#allocation15], 1

</llo_original>
